<compile_context>
chip_gen: v6e
topology: v6e:2x2x1
jax: 0.10.0
libtpu: 0.0.40
codegen_flags: <defaults>
</compile_context>

<pallas_src>
import jax
import jax.numpy as jnp
from jax import lax
from jax.experimental import pallas as pl
from jax.experimental.pallas import tpu as pltpu

_LANES = 128
_SUBLANES = 8
_B_BLK = 8          # batch rows per grid step (one sublane group)


def _round_up(x, m):
    return (x + m - 1) // m * m


def _lstm_gates(z, c, Hp):
    """PyTorch gate order (i, f, g, o); each gate sits in its own 128-lane block."""
    i = jax.nn.sigmoid(z[:, 0 * Hp:1 * Hp])
    f = jax.nn.sigmoid(z[:, 1 * Hp:2 * Hp])
    g = jnp.tanh(z[:, 2 * Hp:3 * Hp])
    o = jax.nn.sigmoid(z[:, 3 * Hp:4 * Hp])
    c_new = f * c + i * g
    h_new = o * jnp.tanh(c_new)
    return h_new, c_new


def _encoder_lstm_kernel(x_ref, h0_ref, c0_ref,
                         wih0_ref, whh0_ref, b0_ref,
                         wih1_ref, whh1_ref, b1_ref,
                         y_ref, hn_ref, cn_ref,
                         zproj_ref):
    S, Bb, Ip = x_ref.shape
    Hp = whh0_ref.shape[0]
    G = 4 * Hp

    # ---------------- layer 0 ----------------
    # One batched MXU pass for the input projection of every timestep.
    x_all = x_ref[...].reshape(S * Bb, Ip)
    zproj_ref[...] = (jnp.dot(x_all, wih0_ref[...],
                              preferred_element_type=jnp.float32)
                      + b0_ref[...]).reshape(S, Bb, G)

    whh0 = whh0_ref[...]          # hoisted out of the time loop

    def step0(t, carry):
        h, c = carry
        z = jnp.dot(h, whh0, preferred_element_type=jnp.float32) + zproj_ref[t]
        h, c = _lstm_gates(z, c, Hp)
        y_ref[t] = h              # y doubles as the layer-0 output buffer
        return (h, c)

    h, c = lax.fori_loop(0, S, step0, (h0_ref[0], c0_ref[0]), unroll=True)
    hn_ref[0] = h
    cn_ref[0] = c

    # TODO(synk): nn.LSTM applies dropout between layers only in training mode; skipped (eval).

    # ---------------- layer 1 ----------------
    y0_all = y_ref[...].reshape(S * Bb, Hp)
    zproj_ref[...] = (jnp.dot(y0_all, wih1_ref[...],
                              preferred_element_type=jnp.float32)
                      + b1_ref[...]).reshape(S, Bb, G)

    whh1 = whh1_ref[...]

    def step1(t, carry):
        h, c = carry
        z = jnp.dot(h, whh1, preferred_element_type=jnp.float32) + zproj_ref[t]
        h, c = _lstm_gates(z, c, Hp)
        y_ref[t] = h              # overwrite layer-0 output in place
        return (h, c)

    h, c = lax.fori_loop(0, S, step1, (h0_ref[1], c0_ref[1]), unroll=True)
    hn_ref[1] = h
    cn_ref[1] = c


def _pad_gate_cols(w, H, Hp):
    """(in, 4H) -> (in, 4*Hp); gate k occupies the lane-aligned block [k*Hp, k*Hp+H)."""
    out = jnp.zeros((w.shape[0], 4 * Hp), w.dtype)
    for k in range(4):
        out = out.at[:, k * Hp:k * Hp + H].set(w[:, k * H:(k + 1) * H])
    return out


def _pad_rows(w, rows):
    return jnp.pad(w, ((0, rows - w.shape[0]), (0, 0)))


@jax.jit
def encoder_rnn_forward(input_seq, encoder_hidden, params):
    """EncoderRNN.forward.

    input_seq: (B, S, I) float32 (batch_first, like the PyTorch module)
    encoder_hidden: (h0, c0), each (L=2, B, H), or None
    params: dict of LSTM weights, (in, 4H) layout with fused biases (1, 4H)
    Returns (output (B, S, H), (h_n, c_n)).
    """
    B, S, I = input_seq.shape
    H = params["whh0"].shape[0]
    L = 2

    if encoder_hidden is None:
        h0 = jnp.zeros((L, B, H), jnp.float32)
        c0 = jnp.zeros((L, B, H), jnp.float32)
    else:
        h0, c0 = encoder_hidden

    Bp = _round_up(max(B, _B_BLK), _B_BLK)
    Hp = _round_up(H, _LANES)
    Ip = _round_up(I, _LANES)
    G = 4 * Hp
    nb = Bp // _B_BLK

    # time-major, padded input  (S, Bp, Ip)
    x_tm = jnp.transpose(input_seq.astype(jnp.float32), (1, 0, 2))
    x_tm = jnp.pad(x_tm, ((0, 0), (0, Bp - B), (0, Ip - I)))

    h0p = jnp.pad(h0.astype(jnp.float32), ((0, 0), (0, Bp - B), (0, Hp - H)))
    c0p = jnp.pad(c0.astype(jnp.float32), ((0, 0), (0, Bp - B), (0, Hp - H)))

    # Gate-block lane padding + zero row padding; zero pads keep the padded hidden
    # lanes exactly zero through the recurrence, so real lanes match the reference.
    wih0 = _pad_rows(_pad_gate_cols(params["wih0"], H, Hp), Ip)
    whh0 = _pad_rows(_pad_gate_cols(params["whh0"], H, Hp), Hp)
    wih1 = _pad_rows(_pad_gate_cols(params["wih1"], H, Hp), Hp)
    whh1 = _pad_rows(_pad_gate_cols(params["whh1"], H, Hp), Hp)
    b0 = _pad_gate_cols(params["b0"], H, Hp)
    b1 = _pad_gate_cols(params["b1"], H, Hp)

    # Advisory cost estimate (MXU flops dominate: 2*S*B*(Ip + 3*Hp)*4Hp).
    flops = 2 * S * Bp * G * (Ip + 3 * Hp) + 12 * S * Bp * G
    transcendentals = 2 * S * Bp * (G + Hp)
    bytes_accessed = 4 * (x_tm.size + 2 * h0p.size + 2 * c0p.size
                          + wih0.size + whh0.size + wih1.size + whh1.size
                          + b0.size + b1.size + S * Bp * Hp)

    # Per-block VMEM budget (doubled for pipelining) with headroom, capped for v7x.
    vmem_need = 4 * (2 * S * _B_BLK * Ip               # x block
                     + 4 * 2 * L * _B_BLK * Hp          # h0/c0 + hn/cn blocks
                     + (Ip + 3 * Hp + 2) * G            # weights + biases (resident)
                     + 2 * S * _B_BLK * Hp              # y block
                     + S * _B_BLK * G)                  # zproj scratch
    vmem_limit = int(min(max(2 * vmem_need, 32 * 1024 * 1024), 64 * 1024 * 1024))

    y_tm, h_n, c_n = pl.pallas_call(
        _encoder_lstm_kernel,
        out_shape=(
            jax.ShapeDtypeStruct((S, Bp, Hp), jnp.float32),   # output, time-major
            jax.ShapeDtypeStruct((L, Bp, Hp), jnp.float32),   # h_n
            jax.ShapeDtypeStruct((L, Bp, Hp), jnp.float32),   # c_n
        ),
        grid_spec=pltpu.PrefetchScalarGridSpec(
            num_scalar_prefetch=0,
            grid=(nb,),
            in_specs=[
                pl.BlockSpec((S, _B_BLK, Ip), lambda b: (0, b, 0)),   # x
                pl.BlockSpec((L, _B_BLK, Hp), lambda b: (0, b, 0)),   # h0
                pl.BlockSpec((L, _B_BLK, Hp), lambda b: (0, b, 0)),   # c0
                pl.BlockSpec((Ip, G), lambda b: (0, 0)),              # wih0
                pl.BlockSpec((Hp, G), lambda b: (0, 0)),              # whh0
                pl.BlockSpec((1, G), lambda b: (0, 0)),               # b0
                pl.BlockSpec((Hp, G), lambda b: (0, 0)),              # wih1
                pl.BlockSpec((Hp, G), lambda b: (0, 0)),              # whh1
                pl.BlockSpec((1, G), lambda b: (0, 0)),               # b1
            ],
            out_specs=[
                pl.BlockSpec((S, _B_BLK, Hp), lambda b: (0, b, 0)),   # y
                pl.BlockSpec((L, _B_BLK, Hp), lambda b: (0, b, 0)),   # h_n
                pl.BlockSpec((L, _B_BLK, Hp), lambda b: (0, b, 0)),   # c_n
            ],
            scratch_shapes=[pltpu.VMEM((S, _B_BLK, G), jnp.float32)],  # gate projections
        ),
        compiler_params=pltpu.CompilerParams(
            dimension_semantics=("parallel",),        # batch shards across TCs on v7x
            vmem_limit_bytes=vmem_limit,
        ),
        cost_estimate=pl.CostEstimate(
            flops=int(flops),
            transcendentals=int(transcendentals),
            bytes_accessed=int(bytes_accessed),
        ),
    )(x_tm, h0p, c0p, wih0, whh0, b0, wih1, whh1, b1)

    output = jnp.transpose(y_tm[:, :B, :H], (1, 0, 2))   # back to batch_first
    return output, (h_n[:, :B, :H], c_n[:, :B, :H])


def init_lstm_params(key, input_size, hidden_size):
    """Deterministic init matching nn.LSTM parameter shapes.

    PyTorch stores weight_ih_l{k}: (4H, in), weight_hh_l{k}: (4H, H),
    bias_ih / bias_hh: (4H,).  We pre-transpose weights to (in, 4H) and fuse
    the two biases into one (1, 4H) row for the kernel.
    """
    H = hidden_size
    bound = 1.0 / jnp.sqrt(jnp.float32(H))
    ks = jax.random.split(key, 8)

    def u(k, shape):
        return jax.random.uniform(k, shape, jnp.float32, -bound, bound)

    wih0 = u(ks[0], (4 * H, input_size))
    whh0 = u(ks[1], (4 * H, H))
    bih0 = u(ks[2], (4 * H,))
    bhh0 = u(ks[3], (4 * H,))
    wih1 = u(ks[4], (4 * H, H))
    whh1 = u(ks[5], (4 * H, H))
    bih1 = u(ks[6], (4 * H,))
    bhh1 = u(ks[7], (4 * H,))

    return {
        "wih0": wih0.T, "whh0": whh0.T, "b0": (bih0 + bhh0)[None, :],
        "wih1": wih1.T, "whh1": whh1.T, "b1": (bih1 + bhh1)[None, :],
    }


def _reference_lstm(x, h0, c0, params):
    """Pure-JAX reference of the same 2-layer LSTM (for verification)."""
    B, S, I = x.shape
    H = params["whh0"].shape[0]

    def run_layer(inp, h, c, wih, whh, b):
        outs = []
        for t in range(S):
            z = inp[:, t, :] @ wih + h @ whh + b
            i = jax.nn.sigmoid(z[:, 0 * H:1 * H])
            f = jax.nn.sigmoid(z[:, 1 * H:2 * H])
            g = jnp.tanh(z[:, 2 * H:3 * H])
            o = jax.nn.sigmoid(z[:, 3 * H:4 * H])
            c = f * c + i * g
            h = o * jnp.tanh(c)
            outs.append(h)
        return jnp.stack(outs, axis=1), h, c

    y0, h_0, c_0 = run_layer(x, h0[0], c0[0], params["wih0"], params["whh0"], params["b0"])
    y1, h_1, c_1 = run_layer(y0, h0[1], c0[1], params["wih1"], params["whh1"], params["b1"])
    return y1, jnp.stack([h_0, h_1]), jnp.stack([c_0, c_1])


if __name__ == "__main__":
    B, S, I, H, L = 2, 8, 16, 32, 2

    key = jax.random.PRNGKey(0)
    k_x, k_h, k_c, k_p = jax.random.split(key, 4)

    x = jax.random.normal(k_x, (B, S, I), jnp.float32)
    h0 = jax.random.normal(k_h, (L, B, H), jnp.float32)
    c0 = jax.random.normal(k_c, (L, B, H), jnp.float32)
    params = init_lstm_params(k_p, I, H)

    # with provided initial hidden state
    out, (h_n, c_n) = encoder_rnn_forward(x, (h0, c0), params)
    jax.block_until_ready((out, h_n, c_n))

    ref_y, ref_h, ref_c = _reference_lstm(x, h0, c0, params)
    assert out.shape == (B, S, H) and h_n.shape == (L, B, H) and c_n.shape == (L, B, H)
    assert jnp.allclose(out, ref_y, atol=1e-5)
    assert jnp.allclose(h_n, ref_h, atol=1e-5)
    assert jnp.allclose(c_n, ref_c, atol=1e-5)

    # without initial hidden state (the `else` branch of EncoderRNN.forward)
    out0, (h_n0, c_n0) = encoder_rnn_forward(x, None, params)
    jax.block_until_ready((out0, h_n0, c_n0))
    zeros = jnp.zeros((L, B, H), jnp.float32)
    ref_y0, ref_h0, ref_c0 = _reference_lstm(x, zeros, zeros, params)
    assert jnp.allclose(out0, ref_y0, atol=1e-5)
    assert jnp.allclose(h_n0, ref_h0, atol=1e-5)
    assert jnp.allclose(c_n0, ref_c0, atol=1e-5)

    print("KERNEL_OK")
</pallas_src>

<mosaic_0001>
module attributes {stable_mosaic.version = 11 : i64} {
  func.func @_encoder_lstm_kernel(%arg0: i32, %arg1: memref<8x8x128xf32, #tpu.memory_space<vmem>>, %arg2: memref<2x8x128xf32, #tpu.memory_space<vmem>>, %arg3: memref<2x8x128xf32, #tpu.memory_space<vmem>>, %arg4: memref<128x512xf32, #tpu.memory_space<vmem>>, %arg5: memref<128x512xf32, #tpu.memory_space<vmem>>, %arg6: memref<1x512xf32, #tpu.memory_space<vmem>>, %arg7: memref<128x512xf32, #tpu.memory_space<vmem>>, %arg8: memref<128x512xf32, #tpu.memory_space<vmem>>, %arg9: memref<1x512xf32, #tpu.memory_space<vmem>>, %arg10: memref<8x8x128xf32, #tpu.memory_space<vmem>>, %arg11: memref<2x8x128xf32, #tpu.memory_space<vmem>>, %arg12: memref<2x8x128xf32, #tpu.memory_space<vmem>>, %arg13: memref<8x8x512xf32, #tpu.memory_space<vmem>>) attributes {dimension_semantics = [#tpu.dimension_semantics<parallel>], iteration_bounds = array<i64: 1>, scalar_prefetch = 0 : i64, scratch_operands = 1 : i64, tpu.core_type = #tpu.core_type<tc>, window_params = [{transform_indices = @transform_0, window_bounds = array<i64: 8, 8, 128>}, {transform_indices = @transform_1, window_bounds = array<i64: 2, 8, 128>}, {transform_indices = @transform_2, window_bounds = array<i64: 2, 8, 128>}, {pipeline_mode = #tpu.pipeline_mode<synchronous>, transform_indices = @transform_3, window_bounds = array<i64: 128, 512>}, {pipeline_mode = #tpu.pipeline_mode<synchronous>, transform_indices = @transform_4, window_bounds = array<i64: 128, 512>}, {pipeline_mode = #tpu.pipeline_mode<synchronous>, transform_indices = @transform_5, window_bounds = array<i64: 1, 512>}, {pipeline_mode = #tpu.pipeline_mode<synchronous>, transform_indices = @transform_6, window_bounds = array<i64: 128, 512>}, {pipeline_mode = #tpu.pipeline_mode<synchronous>, transform_indices = @transform_7, window_bounds = array<i64: 128, 512>}, {pipeline_mode = #tpu.pipeline_mode<synchronous>, transform_indices = @transform_8, window_bounds = array<i64: 1, 512>}, {transform_indices = @transform_9, window_bounds = array<i64: 8, 8, 128>}, {transform_indices = @transform_10, window_bounds = array<i64: 2, 8, 128>}, {transform_indices = @transform_11, window_bounds = array<i64: 2, 8, 128>}]} {
    %c0 = arith.constant 0 : index
    %c0_0 = arith.constant 0 : index
    %c0_1 = arith.constant 0 : index
    %0 = vector.load %arg1[%c0, %c0_0, %c0_1] : memref<8x8x128xf32, #tpu.memory_space<vmem>>, vector<8x8x128xf32>
    %1 = vector.shape_cast %0 : vector<8x8x128xf32> to vector<64x128xf32>
    %c0_2 = arith.constant 0 : index
    %c0_3 = arith.constant 0 : index
    %2 = vector.load %arg4[%c0_2, %c0_3] : memref<128x512xf32, #tpu.memory_space<vmem>>, vector<128x512xf32>
    %cst = arith.constant dense<0.000000e+00> : vector<64x512xf32>
    %3 = tpu.matmul %1, %2, %cst {dimension_numbers = #tpu.dot_dimension_numbers<[1], [0], [0], [1], [0, 0, 1, 1], [], []>} : vector<64x128xf32>, vector<128x512xf32>, vector<64x512xf32> -> vector<64x512xf32>
    %c0_4 = arith.constant 0 : index
    %c0_5 = arith.constant 0 : index
    %4 = vector.load %arg6[%c0_4, %c0_5] : memref<1x512xf32, #tpu.memory_space<vmem>>, vector<1x512xf32>
    %5 = vector.broadcast %4 : vector<1x512xf32> to vector<64x512xf32>
    %6 = arith.addf %3, %5 : vector<64x512xf32>
    %7 = vector.shape_cast %6 : vector<64x512xf32> to vector<8x8x512xf32>
    %c0_6 = arith.constant 0 : index
    %c0_7 = arith.constant 0 : index
    %c0_8 = arith.constant 0 : index
    %8 = vector.load %arg13[%c0_6, %c0_7, %c0_8] : memref<8x8x512xf32, #tpu.memory_space<vmem>>, vector<8x8x512xf32>
    tpu.vector_store %arg13[%c0_6, %c0_7, %c0_8], %7 {strides = array<i32>} : memref<8x8x512xf32, #tpu.memory_space<vmem>>, vector<8x8x512xf32>,
    %c0_9 = arith.constant 0 : index
    %c0_10 = arith.constant 0 : index
    %9 = vector.load %arg5[%c0_9, %c0_10] : memref<128x512xf32, #tpu.memory_space<vmem>>, vector<128x512xf32>
    %c0_11 = arith.constant 0 : index
    %c0_12 = arith.constant 0 : index
    %c0_13 = arith.constant 0 : index
    %10 = vector.load %arg2[%c0_11, %c0_12, %c0_13] : memref<2x8x128xf32, #tpu.memory_space<vmem>>, vector<1x8x128xf32>
    %11 = vector.shape_cast %10 : vector<1x8x128xf32> to vector<8x128xf32>
    %c0_14 = arith.constant 0 : index
    %c0_15 = arith.constant 0 : index
    %c0_16 = arith.constant 0 : index
    %12 = vector.load %arg3[%c0_14, %c0_15, %c0_16] : memref<2x8x128xf32, #tpu.memory_space<vmem>>, vector<1x8x128xf32>
    %13 = vector.shape_cast %12 : vector<1x8x128xf32> to vector<8x128xf32>
    %c0_i32 = arith.constant 0 : i32
    %cst_17 = arith.constant dense<0.000000e+00> : vector<8x512xf32>
    %14 = tpu.matmul %11, %9, %cst_17 {dimension_numbers = #tpu.dot_dimension_numbers<[1], [0], [0], [1], [0, 0, 1, 1], [], []>} : vector<8x128xf32>, vector<128x512xf32>, vector<8x512xf32> -> vector<8x512xf32>
    %15 = arith.index_cast %c0_i32 : i32 to index
    %c0_18 = arith.constant 0 : index
    %c0_19 = arith.constant 0 : index
    %16 = vector.load %arg13[%15, %c0_18, %c0_19] : memref<8x8x512xf32, #tpu.memory_space<vmem>>, vector<1x8x512xf32>
    %17 = vector.shape_cast %16 : vector<1x8x512xf32> to vector<8x512xf32>
    %18 = arith.addf %14, %17 : vector<8x512xf32>
    %19 = vector.extract_strided_slice %18 {offsets = [0, 0], sizes = [8, 128], strides = [1, 1]} : vector<8x512xf32> to vector<8x128xf32>
    %20 = arith.negf %19 : vector<8x128xf32>
    %21 = math.exp %20 : vector<8x128xf32>
    %cst_20 = arith.constant 1.000000e+00 : f32
    %22 = vector.broadcast %cst_20 : f32 to vector<8x128xf32>
    %23 = arith.addf %22, %21 : vector<8x128xf32>
    %24 = arith.divf %22, %23 : vector<8x128xf32>
    %25 = vector.extract_strided_slice %18 {offsets = [0, 128], sizes = [8, 128], strides = [1, 1]} : vector<8x512xf32> to vector<8x128xf32>
    %26 = arith.negf %25 : vector<8x128xf32>
    %27 = math.exp %26 : vector<8x128xf32>
    %cst_21 = arith.constant 1.000000e+00 : f32
    %28 = vector.broadcast %cst_21 : f32 to vector<8x128xf32>
    %29 = arith.addf %28, %27 : vector<8x128xf32>
    %30 = arith.divf %28, %29 : vector<8x128xf32>
    %31 = vector.extract_strided_slice %18 {offsets = [0, 256], sizes = [8, 128], strides = [1, 1]} : vector<8x512xf32> to vector<8x128xf32>
    %32 = math.tanh %31 : vector<8x128xf32>
    %33 = vector.extract_strided_slice %18 {offsets = [0, 384], sizes = [8, 128], strides = [1, 1]} : vector<8x512xf32> to vector<8x128xf32>
    %34 = arith.negf %33 : vector<8x128xf32>
    %35 = math.exp %34 : vector<8x128xf32>
    %cst_22 = arith.constant 1.000000e+00 : f32
    %36 = vector.broadcast %cst_22 : f32 to vector<8x128xf32>
    %37 = arith.addf %36, %35 : vector<8x128xf32>
    %38 = arith.divf %36, %37 : vector<8x128xf32>
    %39 = arith.mulf %30, %13 : vector<8x128xf32>
    %40 = arith.mulf %24, %32 : vector<8x128xf32>
    %41 = arith.addf %39, %40 : vector<8x128xf32>
    %42 = math.tanh %41 : vector<8x128xf32>
    %43 = arith.mulf %38, %42 : vector<8x128xf32>
    %44 = arith.index_cast %c0_i32 : i32 to index
    %c0_23 = arith.constant 0 : index
    %c0_24 = arith.constant 0 : index
    %45 = vector.load %arg10[%44, %c0_23, %c0_24] : memref<8x8x128xf32, #tpu.memory_space<vmem>>, vector<1x8x128xf32>
    %46 = vector.shape_cast %45 : vector<1x8x128xf32> to vector<8x128xf32>
    %47 = vector.shape_cast %43 : vector<8x128xf32> to vector<1x8x128xf32>
    tpu.vector_store %arg10[%44, %c0_23, %c0_24], %47 {strides = array<i32>} : memref<8x8x128xf32, #tpu.memory_space<vmem>>, vector<1x8x128xf32>,
    %c1_i32 = arith.constant 1 : i32
    %cst_25 = arith.constant dense<0.000000e+00> : vector<8x512xf32>
    %48 = tpu.matmul %43, %9, %cst_25 {dimension_numbers = #tpu.dot_dimension_numbers<[1], [0], [0], [1], [0, 0, 1, 1], [], []>} : vector<8x128xf32>, vector<128x512xf32>, vector<8x512xf32> -> vector<8x512xf32>
    %49 = arith.index_cast %c1_i32 : i32 to index
    %c0_26 = arith.constant 0 : index
    %c0_27 = arith.constant 0 : index
    %50 = vector.load %arg13[%49, %c0_26, %c0_27] : memref<8x8x512xf32, #tpu.memory_space<vmem>>, vector<1x8x512xf32>
    %51 = vector.shape_cast %50 : vector<1x8x512xf32> to vector<8x512xf32>
    %52 = arith.addf %48, %51 : vector<8x512xf32>
    %53 = vector.extract_strided_slice %52 {offsets = [0, 0], sizes = [8, 128], strides = [1, 1]} : vector<8x512xf32> to vector<8x128xf32>
    %54 = arith.negf %53 : vector<8x128xf32>
    %55 = math.exp %54 : vector<8x128xf32>
    %cst_28 = arith.constant 1.000000e+00 : f32
    %56 = vector.broadcast %cst_28 : f32 to vector<8x128xf32>
    %57 = arith.addf %56, %55 : vector<8x128xf32>
    %58 = arith.divf %56, %57 : vector<8x128xf32>
    %59 = vector.extract_strided_slice %52 {offsets = [0, 128], sizes = [8, 128], strides = [1, 1]} : vector<8x512xf32> to vector<8x128xf32>
    %60 = arith.negf %59 : vector<8x128xf32>
    %61 = math.exp %60 : vector<8x128xf32>
    %cst_29 = arith.constant 1.000000e+00 : f32
    %62 = vector.broadcast %cst_29 : f32 to vector<8x128xf32>
    %63 = arith.addf %62, %61 : vector<8x128xf32>
    %64 = arith.divf %62, %63 : vector<8x128xf32>
    %65 = vector.extract_strided_slice %52 {offsets = [0, 256], sizes = [8, 128], strides = [1, 1]} : vector<8x512xf32> to vector<8x128xf32>
    %66 = math.tanh %65 : vector<8x128xf32>
    %67 = vector.extract_strided_slice %52 {offsets = [0, 384], sizes = [8, 128], strides = [1, 1]} : vector<8x512xf32> to vector<8x128xf32>
    %68 = arith.negf %67 : vector<8x128xf32>
    %69 = math.exp %68 : vector<8x128xf32>
    %cst_30 = arith.constant 1.000000e+00 : f32
    %70 = vector.broadcast %cst_30 : f32 to vector<8x128xf32>
    %71 = arith.addf %70, %69 : vector<8x128xf32>
    %72 = arith.divf %70, %71 : vector<8x128xf32>
    %73 = arith.mulf %64, %41 : vector<8x128xf32>
    %74 = arith.mulf %58, %66 : vector<8x128xf32>
    %75 = arith.addf %73, %74 : vector<8x128xf32>
    %76 = math.tanh %75 : vector<8x128xf32>
    %77 = arith.mulf %72, %76 : vector<8x128xf32>
    %78 = arith.index_cast %c1_i32 : i32 to index
    %c0_31 = arith.constant 0 : index
    %c0_32 = arith.constant 0 : index
    %79 = vector.load %arg10[%78, %c0_31, %c0_32] : memref<8x8x128xf32, #tpu.memory_space<vmem>>, vector<1x8x128xf32>
    %80 = vector.shape_cast %79 : vector<1x8x128xf32> to vector<8x128xf32>
    %81 = vector.shape_cast %77 : vector<8x128xf32> to vector<1x8x128xf32>
    tpu.vector_store %arg10[%78, %c0_31, %c0_32], %81 {strides = array<i32>} : memref<8x8x128xf32, #tpu.memory_space<vmem>>, vector<1x8x128xf32>,
    %c2_i32 = arith.constant 2 : i32
    %cst_33 = arith.constant dense<0.000000e+00> : vector<8x512xf32>
    %82 = tpu.matmul %77, %9, %cst_33 {dimension_numbers = #tpu.dot_dimension_numbers<[1], [0], [0], [1], [0, 0, 1, 1], [], []>} : vector<8x128xf32>, vector<128x512xf32>, vector<8x512xf32> -> vector<8x512xf32>
    %83 = arith.index_cast %c2_i32 : i32 to index
    %c0_34 = arith.constant 0 : index
    %c0_35 = arith.constant 0 : index
    %84 = vector.load %arg13[%83, %c0_34, %c0_35] : memref<8x8x512xf32, #tpu.memory_space<vmem>>, vector<1x8x512xf32>
    %85 = vector.shape_cast %84 : vector<1x8x512xf32> to vector<8x512xf32>
    %86 = arith.addf %82, %85 : vector<8x512xf32>
    %87 = vector.extract_strided_slice %86 {offsets = [0, 0], sizes = [8, 128], strides = [1, 1]} : vector<8x512xf32> to vector<8x128xf32>
    %88 = arith.negf %87 : vector<8x128xf32>
    %89 = math.exp %88 : vector<8x128xf32>
    %cst_36 = arith.constant 1.000000e+00 : f32
    %90 = vector.broadcast %cst_36 : f32 to vector<8x128xf32>
    %91 = arith.addf %90, %89 : vector<8x128xf32>
    %92 = arith.divf %90, %91 : vector<8x128xf32>
    %93 = vector.extract_strided_slice %86 {offsets = [0, 128], sizes = [8, 128], strides = [1, 1]} : vector<8x512xf32> to vector<8x128xf32>
    %94 = arith.negf %93 : vector<8x128xf32>
    %95 = math.exp %94 : vector<8x128xf32>
    %cst_37 = arith.constant 1.000000e+00 : f32
    %96 = vector.broadcast %cst_37 : f32 to vector<8x128xf32>
    %97 = arith.addf %96, %95 : vector<8x128xf32>
    %98 = arith.divf %96, %97 : vector<8x128xf32>
    %99 = vector.extract_strided_slice %86 {offsets = [0, 256], sizes = [8, 128], strides = [1, 1]} : vector<8x512xf32> to vector<8x128xf32>
    %100 = math.tanh %99 : vector<8x128xf32>
    %101 = vector.extract_strided_slice %86 {offsets = [0, 384], sizes = [8, 128], strides = [1, 1]} : vector<8x512xf32> to vector<8x128xf32>
    %102 = arith.negf %101 : vector<8x128xf32>
    %103 = math.exp %102 : vector<8x128xf32>
    %cst_38 = arith.constant 1.000000e+00 : f32
    %104 = vector.broadcast %cst_38 : f32 to vector<8x128xf32>
    %105 = arith.addf %104, %103 : vector<8x128xf32>
    %106 = arith.divf %104, %105 : vector<8x128xf32>
    %107 = arith.mulf %98, %75 : vector<8x128xf32>
    %108 = arith.mulf %92, %100 : vector<8x128xf32>
    %109 = arith.addf %107, %108 : vector<8x128xf32>
    %110 = math.tanh %109 : vector<8x128xf32>
    %111 = arith.mulf %106, %110 : vector<8x128xf32>
    %112 = arith.index_cast %c2_i32 : i32 to index
    %c0_39 = arith.constant 0 : index
    %c0_40 = arith.constant 0 : index
    %113 = vector.load %arg10[%112, %c0_39, %c0_40] : memref<8x8x128xf32, #tpu.memory_space<vmem>>, vector<1x8x128xf32>
    %114 = vector.shape_cast %113 : vector<1x8x128xf32> to vector<8x128xf32>
    %115 = vector.shape_cast %111 : vector<8x128xf32> to vector<1x8x128xf32>
    tpu.vector_store %arg10[%112, %c0_39, %c0_40], %115 {strides = array<i32>} : memref<8x8x128xf32, #tpu.memory_space<vmem>>, vector<1x8x128xf32>,
    %c3_i32 = arith.constant 3 : i32
    %cst_41 = arith.constant dense<0.000000e+00> : vector<8x512xf32>
    %116 = tpu.matmul %111, %9, %cst_41 {dimension_numbers = #tpu.dot_dimension_numbers<[1], [0], [0], [1], [0, 0, 1, 1], [], []>} : vector<8x128xf32>, vector<128x512xf32>, vector<8x512xf32> -> vector<8x512xf32>
    %117 = arith.index_cast %c3_i32 : i32 to index
    %c0_42 = arith.constant 0 : index
    %c0_43 = arith.constant 0 : index
    %118 = vector.load %arg13[%117, %c0_42, %c0_43] : memref<8x8x512xf32, #tpu.memory_space<vmem>>, vector<1x8x512xf32>
    %119 = vector.shape_cast %118 : vector<1x8x512xf32> to vector<8x512xf32>
    %120 = arith.addf %116, %119 : vector<8x512xf32>
    %121 = vector.extract_strided_slice %120 {offsets = [0, 0], sizes = [8, 128], strides = [1, 1]} : vector<8x512xf32> to vector<8x128xf32>
    %122 = arith.negf %121 : vector<8x128xf32>
    %123 = math.exp %122 : vector<8x128xf32>
    %cst_44 = arith.constant 1.000000e+00 : f32
    %124 = vector.broadcast %cst_44 : f32 to vector<8x128xf32>
    %125 = arith.addf %124, %123 : vector<8x128xf32>
    %126 = arith.divf %124, %125 : vector<8x128xf32>
    %127 = vector.extract_strided_slice %120 {offsets = [0, 128], sizes = [8, 128], strides = [1, 1]} : vector<8x512xf32> to vector<8x128xf32>
    %128 = arith.negf %127 : vector<8x128xf32>
    %129 = math.exp %128 : vector<8x128xf32>
    %cst_45 = arith.constant 1.000000e+00 : f32
    %130 = vector.broadcast %cst_45 : f32 to vector<8x128xf32>
    %131 = arith.addf %130, %129 : vector<8x128xf32>
    %132 = arith.divf %130, %131 : vector<8x128xf32>
    %133 = vector.extract_strided_slice %120 {offsets = [0, 256], sizes = [8, 128], strides = [1, 1]} : vector<8x512xf32> to vector<8x128xf32>
    %134 = math.tanh %133 : vector<8x128xf32>
    %135 = vector.extract_strided_slice %120 {offsets = [0, 384], sizes = [8, 128], strides = [1, 1]} : vector<8x512xf32> to vector<8x128xf32>
    %136 = arith.negf %135 : vector<8x128xf32>
    %137 = math.exp %136 : vector<8x128xf32>
    %cst_46 = arith.constant 1.000000e+00 : f32
    %138 = vector.broadcast %cst_46 : f32 to vector<8x128xf32>
    %139 = arith.addf %138, %137 : vector<8x128xf32>
    %140 = arith.divf %138, %139 : vector<8x128xf32>
    %141 = arith.mulf %132, %109 : vector<8x128xf32>
    %142 = arith.mulf %126, %134 : vector<8x128xf32>
    %143 = arith.addf %141, %142 : vector<8x128xf32>
    %144 = math.tanh %143 : vector<8x128xf32>
    %145 = arith.mulf %140, %144 : vector<8x128xf32>
    %146 = arith.index_cast %c3_i32 : i32 to index
    %c0_47 = arith.constant 0 : index
    %c0_48 = arith.constant 0 : index
    %147 = vector.load %arg10[%146, %c0_47, %c0_48] : memref<8x8x128xf32, #tpu.memory_space<vmem>>, vector<1x8x128xf32>
    %148 = vector.shape_cast %147 : vector<1x8x128xf32> to vector<8x128xf32>
    %149 = vector.shape_cast %145 : vector<8x128xf32> to vector<1x8x128xf32>
    tpu.vector_store %arg10[%146, %c0_47, %c0_48], %149 {strides = array<i32>} : memref<8x8x128xf32, #tpu.memory_space<vmem>>, vector<1x8x128xf32>,
    %c4_i32 = arith.constant 4 : i32
    %cst_49 = arith.constant dense<0.000000e+00> : vector<8x512xf32>
    %150 = tpu.matmul %145, %9, %cst_49 {dimension_numbers = #tpu.dot_dimension_numbers<[1], [0], [0], [1], [0, 0, 1, 1], [], []>} : vector<8x128xf32>, vector<128x512xf32>, vector<8x512xf32> -> vector<8x512xf32>
    %151 = arith.index_cast %c4_i32 : i32 to index
    %c0_50 = arith.constant 0 : index
    %c0_51 = arith.constant 0 : index
    %152 = vector.load %arg13[%151, %c0_50, %c0_51] : memref<8x8x512xf32, #tpu.memory_space<vmem>>, vector<1x8x512xf32>
    %153 = vector.shape_cast %152 : vector<1x8x512xf32> to vector<8x512xf32>
    %154 = arith.addf %150, %153 : vector<8x512xf32>
    %155 = vector.extract_strided_slice %154 {offsets = [0, 0], sizes = [8, 128], strides = [1, 1]} : vector<8x512xf32> to vector<8x128xf32>
    %156 = arith.negf %155 : vector<8x128xf32>
    %157 = math.exp %156 : vector<8x128xf32>
    %cst_52 = arith.constant 1.000000e+00 : f32
    %158 = vector.broadcast %cst_52 : f32 to vector<8x128xf32>
    %159 = arith.addf %158, %157 : vector<8x128xf32>
    %160 = arith.divf %158, %159 : vector<8x128xf32>
    %161 = vector.extract_strided_slice %154 {offsets = [0, 128], sizes = [8, 128], strides = [1, 1]} : vector<8x512xf32> to vector<8x128xf32>
    %162 = arith.negf %161 : vector<8x128xf32>
    %163 = math.exp %162 : vector<8x128xf32>
    %cst_53 = arith.constant 1.000000e+00 : f32
    %164 = vector.broadcast %cst_53 : f32 to vector<8x128xf32>
    %165 = arith.addf %164, %163 : vector<8x128xf32>
    %166 = arith.divf %164, %165 : vector<8x128xf32>
    %167 = vector.extract_strided_slice %154 {offsets = [0, 256], sizes = [8, 128], strides = [1, 1]} : vector<8x512xf32> to vector<8x128xf32>
    %168 = math.tanh %167 : vector<8x128xf32>
    %169 = vector.extract_strided_slice %154 {offsets = [0, 384], sizes = [8, 128], strides = [1, 1]} : vector<8x512xf32> to vector<8x128xf32>
    %170 = arith.negf %169 : vector<8x128xf32>
    %171 = math.exp %170 : vector<8x128xf32>
    %cst_54 = arith.constant 1.000000e+00 : f32
    %172 = vector.broadcast %cst_54 : f32 to vector<8x128xf32>
    %173 = arith.addf %172, %171 : vector<8x128xf32>
    %174 = arith.divf %172, %173 : vector<8x128xf32>
    %175 = arith.mulf %166, %143 : vector<8x128xf32>
    %176 = arith.mulf %160, %168 : vector<8x128xf32>
    %177 = arith.addf %175, %176 : vector<8x128xf32>
    %178 = math.tanh %177 : vector<8x128xf32>
    %179 = arith.mulf %174, %178 : vector<8x128xf32>
    %180 = arith.index_cast %c4_i32 : i32 to index
    %c0_55 = arith.constant 0 : index
    %c0_56 = arith.constant 0 : index
    %181 = vector.load %arg10[%180, %c0_55, %c0_56] : memref<8x8x128xf32, #tpu.memory_space<vmem>>, vector<1x8x128xf32>
    %182 = vector.shape_cast %181 : vector<1x8x128xf32> to vector<8x128xf32>
    %183 = vector.shape_cast %179 : vector<8x128xf32> to vector<1x8x128xf32>
    tpu.vector_store %arg10[%180, %c0_55, %c0_56], %183 {strides = array<i32>} : memref<8x8x128xf32, #tpu.memory_space<vmem>>, vector<1x8x128xf32>,
    %c5_i32 = arith.constant 5 : i32
    %cst_57 = arith.constant dense<0.000000e+00> : vector<8x512xf32>
    %184 = tpu.matmul %179, %9, %cst_57 {dimension_numbers = #tpu.dot_dimension_numbers<[1], [0], [0], [1], [0, 0, 1, 1], [], []>} : vector<8x128xf32>, vector<128x512xf32>, vector<8x512xf32> -> vector<8x512xf32>
    %185 = arith.index_cast %c5_i32 : i32 to index
    %c0_58 = arith.constant 0 : index
    %c0_59 = arith.constant 0 : index
    %186 = vector.load %arg13[%185, %c0_58, %c0_59] : memref<8x8x512xf32, #tpu.memory_space<vmem>>, vector<1x8x512xf32>
    %187 = vector.shape_cast %186 : vector<1x8x512xf32> to vector<8x512xf32>
    %188 = arith.addf %184, %187 : vector<8x512xf32>
    %189 = vector.extract_strided_slice %188 {offsets = [0, 0], sizes = [8, 128], strides = [1, 1]} : vector<8x512xf32> to vector<8x128xf32>
    %190 = arith.negf %189 : vector<8x128xf32>
    %191 = math.exp %190 : vector<8x128xf32>
    %cst_60 = arith.constant 1.000000e+00 : f32
    %192 = vector.broadcast %cst_60 : f32 to vector<8x128xf32>
    %193 = arith.addf %192, %191 : vector<8x128xf32>
    %194 = arith.divf %192, %193 : vector<8x128xf32>
    %195 = vector.extract_strided_slice %188 {offsets = [0, 128], sizes = [8, 128], strides = [1, 1]} : vector<8x512xf32> to vector<8x128xf32>
    %196 = arith.negf %195 : vector<8x128xf32>
    %197 = math.exp %196 : vector<8x128xf32>
    %cst_61 = arith.constant 1.000000e+00 : f32
    %198 = vector.broadcast %cst_61 : f32 to vector<8x128xf32>
    %199 = arith.addf %198, %197 : vector<8x128xf32>
    %200 = arith.divf %198, %199 : vector<8x128xf32>
    %201 = vector.extract_strided_slice %188 {offsets = [0, 256], sizes = [8, 128], strides = [1, 1]} : vector<8x512xf32> to vector<8x128xf32>
    %202 = math.tanh %201 : vector<8x128xf32>
    %203 = vector.extract_strided_slice %188 {offsets = [0, 384], sizes = [8, 128], strides = [1, 1]} : vector<8x512xf32> to vector<8x128xf32>
    %204 = arith.negf %203 : vector<8x128xf32>
    %205 = math.exp %204 : vector<8x128xf32>
    %cst_62 = arith.constant 1.000000e+00 : f32
    %206 = vector.broadcast %cst_62 : f32 to vector<8x128xf32>
    %207 = arith.addf %206, %205 : vector<8x128xf32>
    %208 = arith.divf %206, %207 : vector<8x128xf32>
    %209 = arith.mulf %200, %177 : vector<8x128xf32>
    %210 = arith.mulf %194, %202 : vector<8x128xf32>
    %211 = arith.addf %209, %210 : vector<8x128xf32>
    %212 = math.tanh %211 : vector<8x128xf32>
    %213 = arith.mulf %208, %212 : vector<8x128xf32>
    %214 = arith.index_cast %c5_i32 : i32 to index
    %c0_63 = arith.constant 0 : index
    %c0_64 = arith.constant 0 : index
    %215 = vector.load %arg10[%214, %c0_63, %c0_64] : memref<8x8x128xf32, #tpu.memory_space<vmem>>, vector<1x8x128xf32>
    %216 = vector.shape_cast %215 : vector<1x8x128xf32> to vector<8x128xf32>
    %217 = vector.shape_cast %213 : vector<8x128xf32> to vector<1x8x128xf32>
    tpu.vector_store %arg10[%214, %c0_63, %c0_64], %217 {strides = array<i32>} : memref<8x8x128xf32, #tpu.memory_space<vmem>>, vector<1x8x128xf32>,
    %c6_i32 = arith.constant 6 : i32
    %cst_65 = arith.constant dense<0.000000e+00> : vector<8x512xf32>
    %218 = tpu.matmul %213, %9, %cst_65 {dimension_numbers = #tpu.dot_dimension_numbers<[1], [0], [0], [1], [0, 0, 1, 1], [], []>} : vector<8x128xf32>, vector<128x512xf32>, vector<8x512xf32> -> vector<8x512xf32>
    %219 = arith.index_cast %c6_i32 : i32 to index
    %c0_66 = arith.constant 0 : index
    %c0_67 = arith.constant 0 : index
    %220 = vector.load %arg13[%219, %c0_66, %c0_67] : memref<8x8x512xf32, #tpu.memory_space<vmem>>, vector<1x8x512xf32>
    %221 = vector.shape_cast %220 : vector<1x8x512xf32> to vector<8x512xf32>
    %222 = arith.addf %218, %221 : vector<8x512xf32>
    %223 = vector.extract_strided_slice %222 {offsets = [0, 0], sizes = [8, 128], strides = [1, 1]} : vector<8x512xf32> to vector<8x128xf32>
    %224 = arith.negf %223 : vector<8x128xf32>
    %225 = math.exp %224 : vector<8x128xf32>
    %cst_68 = arith.constant 1.000000e+00 : f32
    %226 = vector.broadcast %cst_68 : f32 to vector<8x128xf32>
    %227 = arith.addf %226, %225 : vector<8x128xf32>
    %228 = arith.divf %226, %227 : vector<8x128xf32>
    %229 = vector.extract_strided_slice %222 {offsets = [0, 128], sizes = [8, 128], strides = [1, 1]} : vector<8x512xf32> to vector<8x128xf32>
    %230 = arith.negf %229 : vector<8x128xf32>
    %231 = math.exp %230 : vector<8x128xf32>
    %cst_69 = arith.constant 1.000000e+00 : f32
    %232 = vector.broadcast %cst_69 : f32 to vector<8x128xf32>
    %233 = arith.addf %232, %231 : vector<8x128xf32>
    %234 = arith.divf %232, %233 : vector<8x128xf32>
    %235 = vector.extract_strided_slice %222 {offsets = [0, 256], sizes = [8, 128], strides = [1, 1]} : vector<8x512xf32> to vector<8x128xf32>
    %236 = math.tanh %235 : vector<8x128xf32>
    %237 = vector.extract_strided_slice %222 {offsets = [0, 384], sizes = [8, 128], strides = [1, 1]} : vector<8x512xf32> to vector<8x128xf32>
    %238 = arith.negf %237 : vector<8x128xf32>
    %239 = math.exp %238 : vector<8x128xf32>
    %cst_70 = arith.constant 1.000000e+00 : f32
    %240 = vector.broadcast %cst_70 : f32 to vector<8x128xf32>
    %241 = arith.addf %240, %239 : vector<8x128xf32>
    %242 = arith.divf %240, %241 : vector<8x128xf32>
    %243 = arith.mulf %234, %211 : vector<8x128xf32>
    %244 = arith.mulf %228, %236 : vector<8x128xf32>
    %245 = arith.addf %243, %244 : vector<8x128xf32>
    %246 = math.tanh %245 : vector<8x128xf32>
    %247 = arith.mulf %242, %246 : vector<8x128xf32>
    %248 = arith.index_cast %c6_i32 : i32 to index
    %c0_71 = arith.constant 0 : index
    %c0_72 = arith.constant 0 : index
    %249 = vector.load %arg10[%248, %c0_71, %c0_72] : memref<8x8x128xf32, #tpu.memory_space<vmem>>, vector<1x8x128xf32>
    %250 = vector.shape_cast %249 : vector<1x8x128xf32> to vector<8x128xf32>
    %251 = vector.shape_cast %247 : vector<8x128xf32> to vector<1x8x128xf32>
    tpu.vector_store %arg10[%248, %c0_71, %c0_72], %251 {strides = array<i32>} : memref<8x8x128xf32, #tpu.memory_space<vmem>>, vector<1x8x128xf32>,
    %c7_i32 = arith.constant 7 : i32
    %cst_73 = arith.constant dense<0.000000e+00> : vector<8x512xf32>
    %252 = tpu.matmul %247, %9, %cst_73 {dimension_numbers = #tpu.dot_dimension_numbers<[1], [0], [0], [1], [0, 0, 1, 1], [], []>} : vector<8x128xf32>, vector<128x512xf32>, vector<8x512xf32> -> vector<8x512xf32>
    %253 = arith.index_cast %c7_i32 : i32 to index
    %c0_74 = arith.constant 0 : index
    %c0_75 = arith.constant 0 : index
    %254 = vector.load %arg13[%253, %c0_74, %c0_75] : memref<8x8x512xf32, #tpu.memory_space<vmem>>, vector<1x8x512xf32>
    %255 = vector.shape_cast %254 : vector<1x8x512xf32> to vector<8x512xf32>
    %256 = arith.addf %252, %255 : vector<8x512xf32>
    %257 = vector.extract_strided_slice %256 {offsets = [0, 0], sizes = [8, 128], strides = [1, 1]} : vector<8x512xf32> to vector<8x128xf32>
    %258 = arith.negf %257 : vector<8x128xf32>
    %259 = math.exp %258 : vector<8x128xf32>
    %cst_76 = arith.constant 1.000000e+00 : f32
    %260 = vector.broadcast %cst_76 : f32 to vector<8x128xf32>
    %261 = arith.addf %260, %259 : vector<8x128xf32>
    %262 = arith.divf %260, %261 : vector<8x128xf32>
    %263 = vector.extract_strided_slice %256 {offsets = [0, 128], sizes = [8, 128], strides = [1, 1]} : vector<8x512xf32> to vector<8x128xf32>
    %264 = arith.negf %263 : vector<8x128xf32>
    %265 = math.exp %264 : vector<8x128xf32>
    %cst_77 = arith.constant 1.000000e+00 : f32
    %266 = vector.broadcast %cst_77 : f32 to vector<8x128xf32>
    %267 = arith.addf %266, %265 : vector<8x128xf32>
    %268 = arith.divf %266, %267 : vector<8x128xf32>
    %269 = vector.extract_strided_slice %256 {offsets = [0, 256], sizes = [8, 128], strides = [1, 1]} : vector<8x512xf32> to vector<8x128xf32>
    %270 = math.tanh %269 : vector<8x128xf32>
    %271 = vector.extract_strided_slice %256 {offsets = [0, 384], sizes = [8, 128], strides = [1, 1]} : vector<8x512xf32> to vector<8x128xf32>
    %272 = arith.negf %271 : vector<8x128xf32>
    %273 = math.exp %272 : vector<8x128xf32>
    %cst_78 = arith.constant 1.000000e+00 : f32
    %274 = vector.broadcast %cst_78 : f32 to vector<8x128xf32>
    %275 = arith.addf %274, %273 : vector<8x128xf32>
    %276 = arith.divf %274, %275 : vector<8x128xf32>
    %277 = arith.mulf %268, %245 : vector<8x128xf32>
    %278 = arith.mulf %262, %270 : vector<8x128xf32>
    %279 = arith.addf %277, %278 : vector<8x128xf32>
    %280 = math.tanh %279 : vector<8x128xf32>
    %281 = arith.mulf %276, %280 : vector<8x128xf32>
    %282 = arith.index_cast %c7_i32 : i32 to index
    %c0_79 = arith.constant 0 : index
    %c0_80 = arith.constant 0 : index
    %283 = vector.load %arg10[%282, %c0_79, %c0_80] : memref<8x8x128xf32, #tpu.memory_space<vmem>>, vector<1x8x128xf32>
    %284 = vector.shape_cast %283 : vector<1x8x128xf32> to vector<8x128xf32>
    %285 = vector.shape_cast %281 : vector<8x128xf32> to vector<1x8x128xf32>
    tpu.vector_store %arg10[%282, %c0_79, %c0_80], %285 {strides = array<i32>} : memref<8x8x128xf32, #tpu.memory_space<vmem>>, vector<1x8x128xf32>,
    %c8_i32 = arith.constant 8 : i32
    %c0_81 = arith.constant 0 : index
    %c0_82 = arith.constant 0 : index
    %c0_83 = arith.constant 0 : index
    %286 = vector.load %arg11[%c0_81, %c0_82, %c0_83] : memref<2x8x128xf32, #tpu.memory_space<vmem>>, vector<1x8x128xf32>
    %287 = vector.shape_cast %286 : vector<1x8x128xf32> to vector<8x128xf32>
    %288 = vector.shape_cast %281 : vector<8x128xf32> to vector<1x8x128xf32>
    tpu.vector_store %arg11[%c0_81, %c0_82, %c0_83], %288 {strides = array<i32>} : memref<2x8x128xf32, #tpu.memory_space<vmem>>, vector<1x8x128xf32>,
    %c0_84 = arith.constant 0 : index
    %c0_85 = arith.constant 0 : index
    %c0_86 = arith.constant 0 : index
    %289 = vector.load %arg12[%c0_84, %c0_85, %c0_86] : memref<2x8x128xf32, #tpu.memory_space<vmem>>, vector<1x8x128xf32>
    %290 = vector.shape_cast %289 : vector<1x8x128xf32> to vector<8x128xf32>
    %291 = vector.shape_cast %279 : vector<8x128xf32> to vector<1x8x128xf32>
    tpu.vector_store %arg12[%c0_84, %c0_85, %c0_86], %291 {strides = array<i32>} : memref<2x8x128xf32, #tpu.memory_space<vmem>>, vector<1x8x128xf32>,
    %c0_87 = arith.constant 0 : index
    %c0_88 = arith.constant 0 : index
    %c0_89 = arith.constant 0 : index
    %292 = vector.load %arg10[%c0_87, %c0_88, %c0_89] : memref<8x8x128xf32, #tpu.memory_space<vmem>>, vector<8x8x128xf32>
    %293 = vector.shape_cast %292 : vector<8x8x128xf32> to vector<64x128xf32>
    %c0_90 = arith.constant 0 : index
    %c0_91 = arith.constant 0 : index
    %294 = vector.load %arg7[%c0_90, %c0_91] : memref<128x512xf32, #tpu.memory_space<vmem>>, vector<128x512xf32>
    %cst_92 = arith.constant dense<0.000000e+00> : vector<64x512xf32>
    %295 = tpu.matmul %293, %294, %cst_92 {dimension_numbers = #tpu.dot_dimension_numbers<[1], [0], [0], [1], [0, 0, 1, 1], [], []>} : vector<64x128xf32>, vector<128x512xf32>, vector<64x512xf32> -> vector<64x512xf32>
    %c0_93 = arith.constant 0 : index
    %c0_94 = arith.constant 0 : index
    %296 = vector.load %arg9[%c0_93, %c0_94] : memref<1x512xf32, #tpu.memory_space<vmem>>, vector<1x512xf32>
    %297 = vector.broadcast %296 : vector<1x512xf32> to vector<64x512xf32>
    %298 = arith.addf %295, %297 : vector<64x512xf32>
    %299 = vector.shape_cast %298 : vector<64x512xf32> to vector<8x8x512xf32>
    %c0_95 = arith.constant 0 : index
    %c0_96 = arith.constant 0 : index
    %c0_97 = arith.constant 0 : index
    %300 = vector.load %arg13[%c0_95, %c0_96, %c0_97] : memref<8x8x512xf32, #tpu.memory_space<vmem>>, vector<8x8x512xf32>
    tpu.vector_store %arg13[%c0_95, %c0_96, %c0_97], %299 {strides = array<i32>} : memref<8x8x512xf32, #tpu.memory_space<vmem>>, vector<8x8x512xf32>,
    %c0_98 = arith.constant 0 : index
    %c0_99 = arith.constant 0 : index
    %301 = vector.load %arg8[%c0_98, %c0_99] : memref<128x512xf32, #tpu.memory_space<vmem>>, vector<128x512xf32>
    %c1 = arith.constant 1 : index
    %c0_100 = arith.constant 0 : index
    %c0_101 = arith.constant 0 : index
    %302 = vector.load %arg2[%c1, %c0_100, %c0_101] : memref<2x8x128xf32, #tpu.memory_space<vmem>>, vector<1x8x128xf32>
    %303 = vector.shape_cast %302 : vector<1x8x128xf32> to vector<8x128xf32>
    %c1_102 = arith.constant 1 : index
    %c0_103 = arith.constant 0 : index
    %c0_104 = arith.constant 0 : index
    %304 = vector.load %arg3[%c1_102, %c0_103, %c0_104] : memref<2x8x128xf32, #tpu.memory_space<vmem>>, vector<1x8x128xf32>
    %305 = vector.shape_cast %304 : vector<1x8x128xf32> to vector<8x128xf32>
    %c0_i32_105 = arith.constant 0 : i32
    %cst_106 = arith.constant dense<0.000000e+00> : vector<8x512xf32>
    %306 = tpu.matmul %303, %301, %cst_106 {dimension_numbers = #tpu.dot_dimension_numbers<[1], [0], [0], [1], [0, 0, 1, 1], [], []>} : vector<8x128xf32>, vector<128x512xf32>, vector<8x512xf32> -> vector<8x512xf32>
    %307 = arith.index_cast %c0_i32_105 : i32 to index
    %c0_107 = arith.constant 0 : index
    %c0_108 = arith.constant 0 : index
    %308 = vector.load %arg13[%307, %c0_107, %c0_108] : memref<8x8x512xf32, #tpu.memory_space<vmem>>, vector<1x8x512xf32>
    %309 = vector.shape_cast %308 : vector<1x8x512xf32> to vector<8x512xf32>
    %310 = arith.addf %306, %309 : vector<8x512xf32>
    %311 = vector.extract_strided_slice %310 {offsets = [0, 0], sizes = [8, 128], strides = [1, 1]} : vector<8x512xf32> to vector<8x128xf32>
    %312 = arith.negf %311 : vector<8x128xf32>
    %313 = math.exp %312 : vector<8x128xf32>
    %cst_109 = arith.constant 1.000000e+00 : f32
    %314 = vector.broadcast %cst_109 : f32 to vector<8x128xf32>
    %315 = arith.addf %314, %313 : vector<8x128xf32>
    %316 = arith.divf %314, %315 : vector<8x128xf32>
    %317 = vector.extract_strided_slice %310 {offsets = [0, 128], sizes = [8, 128], strides = [1, 1]} : vector<8x512xf32> to vector<8x128xf32>
    %318 = arith.negf %317 : vector<8x128xf32>
    %319 = math.exp %318 : vector<8x128xf32>
    %cst_110 = arith.constant 1.000000e+00 : f32
    %320 = vector.broadcast %cst_110 : f32 to vector<8x128xf32>
    %321 = arith.addf %320, %319 : vector<8x128xf32>
    %322 = arith.divf %320, %321 : vector<8x128xf32>
    %323 = vector.extract_strided_slice %310 {offsets = [0, 256], sizes = [8, 128], strides = [1, 1]} : vector<8x512xf32> to vector<8x128xf32>
    %324 = math.tanh %323 : vector<8x128xf32>
    %325 = vector.extract_strided_slice %310 {offsets = [0, 384], sizes = [8, 128], strides = [1, 1]} : vector<8x512xf32> to vector<8x128xf32>
    %326 = arith.negf %325 : vector<8x128xf32>
    %327 = math.exp %326 : vector<8x128xf32>
    %cst_111 = arith.constant 1.000000e+00 : f32
    %328 = vector.broadcast %cst_111 : f32 to vector<8x128xf32>
    %329 = arith.addf %328, %327 : vector<8x128xf32>
    %330 = arith.divf %328, %329 : vector<8x128xf32>
    %331 = arith.mulf %322, %305 : vector<8x128xf32>
    %332 = arith.mulf %316, %324 : vector<8x128xf32>
    %333 = arith.addf %331, %332 : vector<8x128xf32>
    %334 = math.tanh %333 : vector<8x128xf32>
    %335 = arith.mulf %330, %334 : vector<8x128xf32>
    %336 = arith.index_cast %c0_i32_105 : i32 to index
    %c0_112 = arith.constant 0 : index
    %c0_113 = arith.constant 0 : index
    %337 = vector.load %arg10[%336, %c0_112, %c0_113] : memref<8x8x128xf32, #tpu.memory_space<vmem>>, vector<1x8x128xf32>
    %338 = vector.shape_cast %337 : vector<1x8x128xf32> to vector<8x128xf32>
    %339 = vector.shape_cast %335 : vector<8x128xf32> to vector<1x8x128xf32>
    tpu.vector_store %arg10[%336, %c0_112, %c0_113], %339 {strides = array<i32>} : memref<8x8x128xf32, #tpu.memory_space<vmem>>, vector<1x8x128xf32>,
    %c1_i32_114 = arith.constant 1 : i32
    %cst_115 = arith.constant dense<0.000000e+00> : vector<8x512xf32>
    %340 = tpu.matmul %335, %301, %cst_115 {dimension_numbers = #tpu.dot_dimension_numbers<[1], [0], [0], [1], [0, 0, 1, 1], [], []>} : vector<8x128xf32>, vector<128x512xf32>, vector<8x512xf32> -> vector<8x512xf32>
    %341 = arith.index_cast %c1_i32_114 : i32 to index
    %c0_116 = arith.constant 0 : index
    %c0_117 = arith.constant 0 : index
    %342 = vector.load %arg13[%341, %c0_116, %c0_117] : memref<8x8x512xf32, #tpu.memory_space<vmem>>, vector<1x8x512xf32>
    %343 = vector.shape_cast %342 : vector<1x8x512xf32> to vector<8x512xf32>
    %344 = arith.addf %340, %343 : vector<8x512xf32>
    %345 = vector.extract_strided_slice %344 {offsets = [0, 0], sizes = [8, 128], strides = [1, 1]} : vector<8x512xf32> to vector<8x128xf32>
    %346 = arith.negf %345 : vector<8x128xf32>
    %347 = math.exp %346 : vector<8x128xf32>
    %cst_118 = arith.constant 1.000000e+00 : f32
    %348 = vector.broadcast %cst_118 : f32 to vector<8x128xf32>
    %349 = arith.addf %348, %347 : vector<8x128xf32>
    %350 = arith.divf %348, %349 : vector<8x128xf32>
    %351 = vector.extract_strided_slice %344 {offsets = [0, 128], sizes = [8, 128], strides = [1, 1]} : vector<8x512xf32> to vector<8x128xf32>
    %352 = arith.negf %351 : vector<8x128xf32>
    %353 = math.exp %352 : vector<8x128xf32>
    %cst_119 = arith.constant 1.000000e+00 : f32
    %354 = vector.broadcast %cst_119 : f32 to vector<8x128xf32>
    %355 = arith.addf %354, %353 : vector<8x128xf32>
    %356 = arith.divf %354, %355 : vector<8x128xf32>
    %357 = vector.extract_strided_slice %344 {offsets = [0, 256], sizes = [8, 128], strides = [1, 1]} : vector<8x512xf32> to vector<8x128xf32>
    %358 = math.tanh %357 : vector<8x128xf32>
    %359 = vector.extract_strided_slice %344 {offsets = [0, 384], sizes = [8, 128], strides = [1, 1]} : vector<8x512xf32> to vector<8x128xf32>
    %360 = arith.negf %359 : vector<8x128xf32>
    %361 = math.exp %360 : vector<8x128xf32>
    %cst_120 = arith.constant 1.000000e+00 : f32
    %362 = vector.broadcast %cst_120 : f32 to vector<8x128xf32>
    %363 = arith.addf %362, %361 : vector<8x128xf32>
    %364 = arith.divf %362, %363 : vector<8x128xf32>
    %365 = arith.mulf %356, %333 : vector<8x128xf32>
    %366 = arith.mulf %350, %358 : vector<8x128xf32>
    %367 = arith.addf %365, %366 : vector<8x128xf32>
    %368 = math.tanh %367 : vector<8x128xf32>
    %369 = arith.mulf %364, %368 : vector<8x128xf32>
    %370 = arith.index_cast %c1_i32_114 : i32 to index
    %c0_121 = arith.constant 0 : index
    %c0_122 = arith.constant 0 : index
    %371 = vector.load %arg10[%370, %c0_121, %c0_122] : memref<8x8x128xf32, #tpu.memory_space<vmem>>, vector<1x8x128xf32>
    %372 = vector.shape_cast %371 : vector<1x8x128xf32> to vector<8x128xf32>
    %373 = vector.shape_cast %369 : vector<8x128xf32> to vector<1x8x128xf32>
    tpu.vector_store %arg10[%370, %c0_121, %c0_122], %373 {strides = array<i32>} : memref<8x8x128xf32, #tpu.memory_space<vmem>>, vector<1x8x128xf32>,
    %c2_i32_123 = arith.constant 2 : i32
    %cst_124 = arith.constant dense<0.000000e+00> : vector<8x512xf32>
    %374 = tpu.matmul %369, %301, %cst_124 {dimension_numbers = #tpu.dot_dimension_numbers<[1], [0], [0], [1], [0, 0, 1, 1], [], []>} : vector<8x128xf32>, vector<128x512xf32>, vector<8x512xf32> -> vector<8x512xf32>
    %375 = arith.index_cast %c2_i32_123 : i32 to index
    %c0_125 = arith.constant 0 : index
    %c0_126 = arith.constant 0 : index
    %376 = vector.load %arg13[%375, %c0_125, %c0_126] : memref<8x8x512xf32, #tpu.memory_space<vmem>>, vector<1x8x512xf32>
    %377 = vector.shape_cast %376 : vector<1x8x512xf32> to vector<8x512xf32>
    %378 = arith.addf %374, %377 : vector<8x512xf32>
    %379 = vector.extract_strided_slice %378 {offsets = [0, 0], sizes = [8, 128], strides = [1, 1]} : vector<8x512xf32> to vector<8x128xf32>
    %380 = arith.negf %379 : vector<8x128xf32>
    %381 = math.exp %380 : vector<8x128xf32>
    %cst_127 = arith.constant 1.000000e+00 : f32
    %382 = vector.broadcast %cst_127 : f32 to vector<8x128xf32>
    %383 = arith.addf %382, %381 : vector<8x128xf32>
    %384 = arith.divf %382, %383 : vector<8x128xf32>
    %385 = vector.extract_strided_slice %378 {offsets = [0, 128], sizes = [8, 128], strides = [1, 1]} : vector<8x512xf32> to vector<8x128xf32>
    %386 = arith.negf %385 : vector<8x128xf32>
    %387 = math.exp %386 : vector<8x128xf32>
    %cst_128 = arith.constant 1.000000e+00 : f32
    %388 = vector.broadcast %cst_128 : f32 to vector<8x128xf32>
    %389 = arith.addf %388, %387 : vector<8x128xf32>
    %390 = arith.divf %388, %389 : vector<8x128xf32>
    %391 = vector.extract_strided_slice %378 {offsets = [0, 256], sizes = [8, 128], strides = [1, 1]} : vector<8x512xf32> to vector<8x128xf32>
    %392 = math.tanh %391 : vector<8x128xf32>
    %393 = vector.extract_strided_slice %378 {offsets = [0, 384], sizes = [8, 128], strides = [1, 1]} : vector<8x512xf32> to vector<8x128xf32>
    %394 = arith.negf %393 : vector<8x128xf32>
    %395 = math.exp %394 : vector<8x128xf32>
    %cst_129 = arith.constant 1.000000e+00 : f32
    %396 = vector.broadcast %cst_129 : f32 to vector<8x128xf32>
    %397 = arith.addf %396, %395 : vector<8x128xf32>
    %398 = arith.divf %396, %397 : vector<8x128xf32>
    %399 = arith.mulf %390, %367 : vector<8x128xf32>
    %400 = arith.mulf %384, %392 : vector<8x128xf32>
    %401 = arith.addf %399, %400 : vector<8x128xf32>
    %402 = math.tanh %401 : vector<8x128xf32>
    %403 = arith.mulf %398, %402 : vector<8x128xf32>
    %404 = arith.index_cast %c2_i32_123 : i32 to index
    %c0_130 = arith.constant 0 : index
    %c0_131 = arith.constant 0 : index
    %405 = vector.load %arg10[%404, %c0_130, %c0_131] : memref<8x8x128xf32, #tpu.memory_space<vmem>>, vector<1x8x128xf32>
    %406 = vector.shape_cast %405 : vector<1x8x128xf32> to vector<8x128xf32>
    %407 = vector.shape_cast %403 : vector<8x128xf32> to vector<1x8x128xf32>
    tpu.vector_store %arg10[%404, %c0_130, %c0_131], %407 {strides = array<i32>} : memref<8x8x128xf32, #tpu.memory_space<vmem>>, vector<1x8x128xf32>,
    %c3_i32_132 = arith.constant 3 : i32
    %cst_133 = arith.constant dense<0.000000e+00> : vector<8x512xf32>
    %408 = tpu.matmul %403, %301, %cst_133 {dimension_numbers = #tpu.dot_dimension_numbers<[1], [0], [0], [1], [0, 0, 1, 1], [], []>} : vector<8x128xf32>, vector<128x512xf32>, vector<8x512xf32> -> vector<8x512xf32>
    %409 = arith.index_cast %c3_i32_132 : i32 to index
    %c0_134 = arith.constant 0 : index
    %c0_135 = arith.constant 0 : index
    %410 = vector.load %arg13[%409, %c0_134, %c0_135] : memref<8x8x512xf32, #tpu.memory_space<vmem>>, vector<1x8x512xf32>
    %411 = vector.shape_cast %410 : vector<1x8x512xf32> to vector<8x512xf32>
    %412 = arith.addf %408, %411 : vector<8x512xf32>
    %413 = vector.extract_strided_slice %412 {offsets = [0, 0], sizes = [8, 128], strides = [1, 1]} : vector<8x512xf32> to vector<8x128xf32>
    %414 = arith.negf %413 : vector<8x128xf32>
    %415 = math.exp %414 : vector<8x128xf32>
    %cst_136 = arith.constant 1.000000e+00 : f32
    %416 = vector.broadcast %cst_136 : f32 to vector<8x128xf32>
    %417 = arith.addf %416, %415 : vector<8x128xf32>
    %418 = arith.divf %416, %417 : vector<8x128xf32>
    %419 = vector.extract_strided_slice %412 {offsets = [0, 128], sizes = [8, 128], strides = [1, 1]} : vector<8x512xf32> to vector<8x128xf32>
    %420 = arith.negf %419 : vector<8x128xf32>
    %421 = math.exp %420 : vector<8x128xf32>
    %cst_137 = arith.constant 1.000000e+00 : f32
    %422 = vector.broadcast %cst_137 : f32 to vector<8x128xf32>
    %423 = arith.addf %422, %421 : vector<8x128xf32>
    %424 = arith.divf %422, %423 : vector<8x128xf32>
    %425 = vector.extract_strided_slice %412 {offsets = [0, 256], sizes = [8, 128], strides = [1, 1]} : vector<8x512xf32> to vector<8x128xf32>
    %426 = math.tanh %425 : vector<8x128xf32>
    %427 = vector.extract_strided_slice %412 {offsets = [0, 384], sizes = [8, 128], strides = [1, 1]} : vector<8x512xf32> to vector<8x128xf32>
    %428 = arith.negf %427 : vector<8x128xf32>
    %429 = math.exp %428 : vector<8x128xf32>
    %cst_138 = arith.constant 1.000000e+00 : f32
    %430 = vector.broadcast %cst_138 : f32 to vector<8x128xf32>
    %431 = arith.addf %430, %429 : vector<8x128xf32>
    %432 = arith.divf %430, %431 : vector<8x128xf32>
    %433 = arith.mulf %424, %401 : vector<8x128xf32>
    %434 = arith.mulf %418, %426 : vector<8x128xf32>
    %435 = arith.addf %433, %434 : vector<8x128xf32>
    %436 = math.tanh %435 : vector<8x128xf32>
    %437 = arith.mulf %432, %436 : vector<8x128xf32>
    %438 = arith.index_cast %c3_i32_132 : i32 to index
    %c0_139 = arith.constant 0 : index
    %c0_140 = arith.constant 0 : index
    %439 = vector.load %arg10[%438, %c0_139, %c0_140] : memref<8x8x128xf32, #tpu.memory_space<vmem>>, vector<1x8x128xf32>
    %440 = vector.shape_cast %439 : vector<1x8x128xf32> to vector<8x128xf32>
    %441 = vector.shape_cast %437 : vector<8x128xf32> to vector<1x8x128xf32>
    tpu.vector_store %arg10[%438, %c0_139, %c0_140], %441 {strides = array<i32>} : memref<8x8x128xf32, #tpu.memory_space<vmem>>, vector<1x8x128xf32>,
    %c4_i32_141 = arith.constant 4 : i32
    %cst_142 = arith.constant dense<0.000000e+00> : vector<8x512xf32>
    %442 = tpu.matmul %437, %301, %cst_142 {dimension_numbers = #tpu.dot_dimension_numbers<[1], [0], [0], [1], [0, 0, 1, 1], [], []>} : vector<8x128xf32>, vector<128x512xf32>, vector<8x512xf32> -> vector<8x512xf32>
    %443 = arith.index_cast %c4_i32_141 : i32 to index
    %c0_143 = arith.constant 0 : index
    %c0_144 = arith.constant 0 : index
    %444 = vector.load %arg13[%443, %c0_143, %c0_144] : memref<8x8x512xf32, #tpu.memory_space<vmem>>, vector<1x8x512xf32>
    %445 = vector.shape_cast %444 : vector<1x8x512xf32> to vector<8x512xf32>
    %446 = arith.addf %442, %445 : vector<8x512xf32>
    %447 = vector.extract_strided_slice %446 {offsets = [0, 0], sizes = [8, 128], strides = [1, 1]} : vector<8x512xf32> to vector<8x128xf32>
    %448 = arith.negf %447 : vector<8x128xf32>
    %449 = math.exp %448 : vector<8x128xf32>
    %cst_145 = arith.constant 1.000000e+00 : f32
    %450 = vector.broadcast %cst_145 : f32 to vector<8x128xf32>
    %451 = arith.addf %450, %449 : vector<8x128xf32>
    %452 = arith.divf %450, %451 : vector<8x128xf32>
    %453 = vector.extract_strided_slice %446 {offsets = [0, 128], sizes = [8, 128], strides = [1, 1]} : vector<8x512xf32> to vector<8x128xf32>
    %454 = arith.negf %453 : vector<8x128xf32>
    %455 = math.exp %454 : vector<8x128xf32>
    %cst_146 = arith.constant 1.000000e+00 : f32
    %456 = vector.broadcast %cst_146 : f32 to vector<8x128xf32>
    %457 = arith.addf %456, %455 : vector<8x128xf32>
    %458 = arith.divf %456, %457 : vector<8x128xf32>
    %459 = vector.extract_strided_slice %446 {offsets = [0, 256], sizes = [8, 128], strides = [1, 1]} : vector<8x512xf32> to vector<8x128xf32>
    %460 = math.tanh %459 : vector<8x128xf32>
    %461 = vector.extract_strided_slice %446 {offsets = [0, 384], sizes = [8, 128], strides = [1, 1]} : vector<8x512xf32> to vector<8x128xf32>
    %462 = arith.negf %461 : vector<8x128xf32>
    %463 = math.exp %462 : vector<8x128xf32>
    %cst_147 = arith.constant 1.000000e+00 : f32
    %464 = vector.broadcast %cst_147 : f32 to vector<8x128xf32>
    %465 = arith.addf %464, %463 : vector<8x128xf32>
    %466 = arith.divf %464, %465 : vector<8x128xf32>
    %467 = arith.mulf %458, %435 : vector<8x128xf32>
    %468 = arith.mulf %452, %460 : vector<8x128xf32>
    %469 = arith.addf %467, %468 : vector<8x128xf32>
    %470 = math.tanh %469 : vector<8x128xf32>
    %471 = arith.mulf %466, %470 : vector<8x128xf32>
    %472 = arith.index_cast %c4_i32_141 : i32 to index
    %c0_148 = arith.constant 0 : index
    %c0_149 = arith.constant 0 : index
    %473 = vector.load %arg10[%472, %c0_148, %c0_149] : memref<8x8x128xf32, #tpu.memory_space<vmem>>, vector<1x8x128xf32>
    %474 = vector.shape_cast %473 : vector<1x8x128xf32> to vector<8x128xf32>
    %475 = vector.shape_cast %471 : vector<8x128xf32> to vector<1x8x128xf32>
    tpu.vector_store %arg10[%472, %c0_148, %c0_149], %475 {strides = array<i32>} : memref<8x8x128xf32, #tpu.memory_space<vmem>>, vector<1x8x128xf32>,
    %c5_i32_150 = arith.constant 5 : i32
    %cst_151 = arith.constant dense<0.000000e+00> : vector<8x512xf32>
    %476 = tpu.matmul %471, %301, %cst_151 {dimension_numbers = #tpu.dot_dimension_numbers<[1], [0], [0], [1], [0, 0, 1, 1], [], []>} : vector<8x128xf32>, vector<128x512xf32>, vector<8x512xf32> -> vector<8x512xf32>
    %477 = arith.index_cast %c5_i32_150 : i32 to index
    %c0_152 = arith.constant 0 : index
    %c0_153 = arith.constant 0 : index
    %478 = vector.load %arg13[%477, %c0_152, %c0_153] : memref<8x8x512xf32, #tpu.memory_space<vmem>>, vector<1x8x512xf32>
    %479 = vector.shape_cast %478 : vector<1x8x512xf32> to vector<8x512xf32>
    %480 = arith.addf %476, %479 : vector<8x512xf32>
    %481 = vector.extract_strided_slice %480 {offsets = [0, 0], sizes = [8, 128], strides = [1, 1]} : vector<8x512xf32> to vector<8x128xf32>
    %482 = arith.negf %481 : vector<8x128xf32>
    %483 = math.exp %482 : vector<8x128xf32>
    %cst_154 = arith.constant 1.000000e+00 : f32
    %484 = vector.broadcast %cst_154 : f32 to vector<8x128xf32>
    %485 = arith.addf %484, %483 : vector<8x128xf32>
    %486 = arith.divf %484, %485 : vector<8x128xf32>
    %487 = vector.extract_strided_slice %480 {offsets = [0, 128], sizes = [8, 128], strides = [1, 1]} : vector<8x512xf32> to vector<8x128xf32>
    %488 = arith.negf %487 : vector<8x128xf32>
    %489 = math.exp %488 : vector<8x128xf32>
    %cst_155 = arith.constant 1.000000e+00 : f32
    %490 = vector.broadcast %cst_155 : f32 to vector<8x128xf32>
    %491 = arith.addf %490, %489 : vector<8x128xf32>
    %492 = arith.divf %490, %491 : vector<8x128xf32>
    %493 = vector.extract_strided_slice %480 {offsets = [0, 256], sizes = [8, 128], strides = [1, 1]} : vector<8x512xf32> to vector<8x128xf32>
    %494 = math.tanh %493 : vector<8x128xf32>
    %495 = vector.extract_strided_slice %480 {offsets = [0, 384], sizes = [8, 128], strides = [1, 1]} : vector<8x512xf32> to vector<8x128xf32>
    %496 = arith.negf %495 : vector<8x128xf32>
    %497 = math.exp %496 : vector<8x128xf32>
    %cst_156 = arith.constant 1.000000e+00 : f32
    %498 = vector.broadcast %cst_156 : f32 to vector<8x128xf32>
    %499 = arith.addf %498, %497 : vector<8x128xf32>
    %500 = arith.divf %498, %499 : vector<8x128xf32>
    %501 = arith.mulf %492, %469 : vector<8x128xf32>
    %502 = arith.mulf %486, %494 : vector<8x128xf32>
    %503 = arith.addf %501, %502 : vector<8x128xf32>
    %504 = math.tanh %503 : vector<8x128xf32>
    %505 = arith.mulf %500, %504 : vector<8x128xf32>
    %506 = arith.index_cast %c5_i32_150 : i32 to index
    %c0_157 = arith.constant 0 : index
    %c0_158 = arith.constant 0 : index
    %507 = vector.load %arg10[%506, %c0_157, %c0_158] : memref<8x8x128xf32, #tpu.memory_space<vmem>>, vector<1x8x128xf32>
    %508 = vector.shape_cast %507 : vector<1x8x128xf32> to vector<8x128xf32>
    %509 = vector.shape_cast %505 : vector<8x128xf32> to vector<1x8x128xf32>
    tpu.vector_store %arg10[%506, %c0_157, %c0_158], %509 {strides = array<i32>} : memref<8x8x128xf32, #tpu.memory_space<vmem>>, vector<1x8x128xf32>,
    %c6_i32_159 = arith.constant 6 : i32
    %cst_160 = arith.constant dense<0.000000e+00> : vector<8x512xf32>
    %510 = tpu.matmul %505, %301, %cst_160 {dimension_numbers = #tpu.dot_dimension_numbers<[1], [0], [0], [1], [0, 0, 1, 1], [], []>} : vector<8x128xf32>, vector<128x512xf32>, vector<8x512xf32> -> vector<8x512xf32>
    %511 = arith.index_cast %c6_i32_159 : i32 to index
    %c0_161 = arith.constant 0 : index
    %c0_162 = arith.constant 0 : index
    %512 = vector.load %arg13[%511, %c0_161, %c0_162] : memref<8x8x512xf32, #tpu.memory_space<vmem>>, vector<1x8x512xf32>
    %513 = vector.shape_cast %512 : vector<1x8x512xf32> to vector<8x512xf32>
    %514 = arith.addf %510, %513 : vector<8x512xf32>
    %515 = vector.extract_strided_slice %514 {offsets = [0, 0], sizes = [8, 128], strides = [1, 1]} : vector<8x512xf32> to vector<8x128xf32>
    %516 = arith.negf %515 : vector<8x128xf32>
    %517 = math.exp %516 : vector<8x128xf32>
    %cst_163 = arith.constant 1.000000e+00 : f32
    %518 = vector.broadcast %cst_163 : f32 to vector<8x128xf32>
    %519 = arith.addf %518, %517 : vector<8x128xf32>
    %520 = arith.divf %518, %519 : vector<8x128xf32>
    %521 = vector.extract_strided_slice %514 {offsets = [0, 128], sizes = [8, 128], strides = [1, 1]} : vector<8x512xf32> to vector<8x128xf32>
    %522 = arith.negf %521 : vector<8x128xf32>
    %523 = math.exp %522 : vector<8x128xf32>
    %cst_164 = arith.constant 1.000000e+00 : f32
    %524 = vector.broadcast %cst_164 : f32 to vector<8x128xf32>
    %525 = arith.addf %524, %523 : vector<8x128xf32>
    %526 = arith.divf %524, %525 : vector<8x128xf32>
    %527 = vector.extract_strided_slice %514 {offsets = [0, 256], sizes = [8, 128], strides = [1, 1]} : vector<8x512xf32> to vector<8x128xf32>
    %528 = math.tanh %527 : vector<8x128xf32>
    %529 = vector.extract_strided_slice %514 {offsets = [0, 384], sizes = [8, 128], strides = [1, 1]} : vector<8x512xf32> to vector<8x128xf32>
    %530 = arith.negf %529 : vector<8x128xf32>
    %531 = math.exp %530 : vector<8x128xf32>
    %cst_165 = arith.constant 1.000000e+00 : f32
    %532 = vector.broadcast %cst_165 : f32 to vector<8x128xf32>
    %533 = arith.addf %532, %531 : vector<8x128xf32>
    %534 = arith.divf %532, %533 : vector<8x128xf32>
    %535 = arith.mulf %526, %503 : vector<8x128xf32>
    %536 = arith.mulf %520, %528 : vector<8x128xf32>
    %537 = arith.addf %535, %536 : vector<8x128xf32>
    %538 = math.tanh %537 : vector<8x128xf32>
    %539 = arith.mulf %534, %538 : vector<8x128xf32>
    %540 = arith.index_cast %c6_i32_159 : i32 to index
    %c0_166 = arith.constant 0 : index
    %c0_167 = arith.constant 0 : index
    %541 = vector.load %arg10[%540, %c0_166, %c0_167] : memref<8x8x128xf32, #tpu.memory_space<vmem>>, vector<1x8x128xf32>
    %542 = vector.shape_cast %541 : vector<1x8x128xf32> to vector<8x128xf32>
    %543 = vector.shape_cast %539 : vector<8x128xf32> to vector<1x8x128xf32>
    tpu.vector_store %arg10[%540, %c0_166, %c0_167], %543 {strides = array<i32>} : memref<8x8x128xf32, #tpu.memory_space<vmem>>, vector<1x8x128xf32>,
    %c7_i32_168 = arith.constant 7 : i32
    %cst_169 = arith.constant dense<0.000000e+00> : vector<8x512xf32>
    %544 = tpu.matmul %539, %301, %cst_169 {dimension_numbers = #tpu.dot_dimension_numbers<[1], [0], [0], [1], [0, 0, 1, 1], [], []>} : vector<8x128xf32>, vector<128x512xf32>, vector<8x512xf32> -> vector<8x512xf32>
    %545 = arith.index_cast %c7_i32_168 : i32 to index
    %c0_170 = arith.constant 0 : index
    %c0_171 = arith.constant 0 : index
    %546 = vector.load %arg13[%545, %c0_170, %c0_171] : memref<8x8x512xf32, #tpu.memory_space<vmem>>, vector<1x8x512xf32>
    %547 = vector.shape_cast %546 : vector<1x8x512xf32> to vector<8x512xf32>
    %548 = arith.addf %544, %547 : vector<8x512xf32>
    %549 = vector.extract_strided_slice %548 {offsets = [0, 0], sizes = [8, 128], strides = [1, 1]} : vector<8x512xf32> to vector<8x128xf32>
    %550 = arith.negf %549 : vector<8x128xf32>
    %551 = math.exp %550 : vector<8x128xf32>
    %cst_172 = arith.constant 1.000000e+00 : f32
    %552 = vector.broadcast %cst_172 : f32 to vector<8x128xf32>
    %553 = arith.addf %552, %551 : vector<8x128xf32>
    %554 = arith.divf %552, %553 : vector<8x128xf32>
    %555 = vector.extract_strided_slice %548 {offsets = [0, 128], sizes = [8, 128], strides = [1, 1]} : vector<8x512xf32> to vector<8x128xf32>
    %556 = arith.negf %555 : vector<8x128xf32>
    %557 = math.exp %556 : vector<8x128xf32>
    %cst_173 = arith.constant 1.000000e+00 : f32
    %558 = vector.broadcast %cst_173 : f32 to vector<8x128xf32>
    %559 = arith.addf %558, %557 : vector<8x128xf32>
    %560 = arith.divf %558, %559 : vector<8x128xf32>
    %561 = vector.extract_strided_slice %548 {offsets = [0, 256], sizes = [8, 128], strides = [1, 1]} : vector<8x512xf32> to vector<8x128xf32>
    %562 = math.tanh %561 : vector<8x128xf32>
    %563 = vector.extract_strided_slice %548 {offsets = [0, 384], sizes = [8, 128], strides = [1, 1]} : vector<8x512xf32> to vector<8x128xf32>
    %564 = arith.negf %563 : vector<8x128xf32>
    %565 = math.exp %564 : vector<8x128xf32>
    %cst_174 = arith.constant 1.000000e+00 : f32
    %566 = vector.broadcast %cst_174 : f32 to vector<8x128xf32>
    %567 = arith.addf %566, %565 : vector<8x128xf32>
    %568 = arith.divf %566, %567 : vector<8x128xf32>
    %569 = arith.mulf %560, %537 : vector<8x128xf32>
    %570 = arith.mulf %554, %562 : vector<8x128xf32>
    %571 = arith.addf %569, %570 : vector<8x128xf32>
    %572 = math.tanh %571 : vector<8x128xf32>
    %573 = arith.mulf %568, %572 : vector<8x128xf32>
    %574 = arith.index_cast %c7_i32_168 : i32 to index
    %c0_175 = arith.constant 0 : index
    %c0_176 = arith.constant 0 : index
    %575 = vector.load %arg10[%574, %c0_175, %c0_176] : memref<8x8x128xf32, #tpu.memory_space<vmem>>, vector<1x8x128xf32>
    %576 = vector.shape_cast %575 : vector<1x8x128xf32> to vector<8x128xf32>
    %577 = vector.shape_cast %573 : vector<8x128xf32> to vector<1x8x128xf32>
    tpu.vector_store %arg10[%574, %c0_175, %c0_176], %577 {strides = array<i32>} : memref<8x8x128xf32, #tpu.memory_space<vmem>>, vector<1x8x128xf32>,
    %c8_i32_177 = arith.constant 8 : i32
    %c1_178 = arith.constant 1 : index
    %c0_179 = arith.constant 0 : index
    %c0_180 = arith.constant 0 : index
    %578 = vector.load %arg11[%c1_178, %c0_179, %c0_180] : memref<2x8x128xf32, #tpu.memory_space<vmem>>, vector<1x8x128xf32>
    %579 = vector.shape_cast %578 : vector<1x8x128xf32> to vector<8x128xf32>
    %580 = vector.shape_cast %573 : vector<8x128xf32> to vector<1x8x128xf32>
    tpu.vector_store %arg11[%c1_178, %c0_179, %c0_180], %580 {strides = array<i32>} : memref<2x8x128xf32, #tpu.memory_space<vmem>>, vector<1x8x128xf32>,
    %c1_181 = arith.constant 1 : index
    %c0_182 = arith.constant 0 : index
    %c0_183 = arith.constant 0 : index
    %581 = vector.load %arg12[%c1_181, %c0_182, %c0_183] : memref<2x8x128xf32, #tpu.memory_space<vmem>>, vector<1x8x128xf32>
    %582 = vector.shape_cast %581 : vector<1x8x128xf32> to vector<8x128xf32>
    %583 = vector.shape_cast %571 : vector<8x128xf32> to vector<1x8x128xf32>
    tpu.vector_store %arg12[%c1_181, %c0_182, %c0_183], %583 {strides = array<i32>} : memref<2x8x128xf32, #tpu.memory_space<vmem>>, vector<1x8x128xf32>,
    return
  }
  func.func @transform_0(%arg0: i32) -> (i32, i32, i32) {
    %c0_i32 = arith.constant 0 : i32
    %c0_i32_0 = arith.constant 0 : i32
    %c0_i32_1 = arith.constant 0 : i32
    return %c0_i32, %arg0, %c0_i32_0 : i32, i32, i32
  }
  func.func @transform_1(%arg0: i32) -> (i32, i32, i32) {
    %c0_i32 = arith.constant 0 : i32
    %c0_i32_0 = arith.constant 0 : i32
    %c0_i32_1 = arith.constant 0 : i32
    return %c0_i32, %arg0, %c0_i32_0 : i32, i32, i32
  }
  func.func @transform_2(%arg0: i32) -> (i32, i32, i32) {
    %c0_i32 = arith.constant 0 : i32
    %c0_i32_0 = arith.constant 0 : i32
    %c0_i32_1 = arith.constant 0 : i32
    return %c0_i32, %arg0, %c0_i32_0 : i32, i32, i32
  }
  func.func @transform_3(%arg0: i32) -> (i32, i32) {
    %c0_i32 = arith.constant 0 : i32
    %c0_i32_0 = arith.constant 0 : i32
    %c0_i32_1 = arith.constant 0 : i32
    return %c0_i32, %c0_i32_0 : i32, i32
  }
  func.func @transform_4(%arg0: i32) -> (i32, i32) {
    %c0_i32 = arith.constant 0 : i32
    %c0_i32_0 = arith.constant 0 : i32
    %c0_i32_1 = arith.constant 0 : i32
    return %c0_i32, %c0_i32_0 : i32, i32
  }
  func.func @transform_5(%arg0: i32) -> (i32, i32) {
    %c0_i32 = arith.constant 0 : i32
    %c0_i32_0 = arith.constant 0 : i32
    %c0_i32_1 = arith.constant 0 : i32
    return %c0_i32, %c0_i32_0 : i32, i32
  }
  func.func @transform_6(%arg0: i32) -> (i32, i32) {
    %c0_i32 = arith.constant 0 : i32
    %c0_i32_0 = arith.constant 0 : i32
    %c0_i32_1 = arith.constant 0 : i32
    return %c0_i32, %c0_i32_0 : i32, i32
  }
  func.func @transform_7(%arg0: i32) -> (i32, i32) {
    %c0_i32 = arith.constant 0 : i32
    %c0_i32_0 = arith.constant 0 : i32
    %c0_i32_1 = arith.constant 0 : i32
    return %c0_i32, %c0_i32_0 : i32, i32
  }
  func.func @transform_8(%arg0: i32) -> (i32, i32) {
    %c0_i32 = arith.constant 0 : i32
    %c0_i32_0 = arith.constant 0 : i32
    %c0_i32_1 = arith.constant 0 : i32
    return %c0_i32, %c0_i32_0 : i32, i32
  }
  func.func @transform_9(%arg0: i32) -> (i32, i32, i32) {
    %c0_i32 = arith.constant 0 : i32
    %c0_i32_0 = arith.constant 0 : i32
    %c0_i32_1 = arith.constant 0 : i32
    return %c0_i32, %arg0, %c0_i32_0 : i32, i32, i32
  }
  func.func @transform_10(%arg0: i32) -> (i32, i32, i32) {
    %c0_i32 = arith.constant 0 : i32
    %c0_i32_0 = arith.constant 0 : i32
    %c0_i32_1 = arith.constant 0 : i32
    return %c0_i32, %arg0, %c0_i32_0 : i32, i32, i32
  }
  func.func @transform_11(%arg0: i32) -> (i32, i32, i32) {
    %c0_i32 = arith.constant 0 : i32
    %c0_i32_0 = arith.constant 0 : i32
    %c0_i32_1 = arith.constant 0 : i32
    return %c0_i32, %arg0, %c0_i32_0 : i32, i32, i32
  }
}

</mosaic_0001>

<llo_original>
// kernel: encoder_rnn_forward.1
$region0: #{encoder_rnn_forward.1}
  #allocation0 [shape = 'u32[]', space=smem, size = 0x4, offset = 0x4, fixed_abs, tag = 'smem constant byte address 0x4 - core index']
  #allocation1 [shape = 'u32[144,128]{1,0:T(1,128)}', space=vmem, size = 0x12000, scoped, tag = 'internal scratch']
  #allocation2 [shape = 'f32[8,8,512]{2,1,0:T(8,128)}', space=vmem, size = 0x20000, scoped, tag = 'scratch operand']
  %s0 = inlined_call_operand.vmem [shape: f32[8,8,128], index: 0, kind: input, shape index: {}]
  %s1 = inlined_call_operand.vmem [shape: f32[2,8,128], index: 1, kind: input, shape index: {}]
  %s2 = inlined_call_operand.vmem [shape: f32[2,8,128], index: 2, kind: input, shape index: {}]
  %s3 = inlined_call_operand.vmem [shape: f32[128,512], index: 3, kind: input, shape index: {}]
  %s4 = inlined_call_operand.vmem [shape: f32[128,512], index: 4, kind: input, shape index: {}]
  %s5 = inlined_call_operand.vmem [shape: f32[1,512], index: 5, kind: input, shape index: {}]
  %s6 = inlined_call_operand.vmem [shape: f32[128,512], index: 6, kind: input, shape index: {}]
  %s7 = inlined_call_operand.vmem [shape: f32[128,512], index: 7, kind: input, shape index: {}]
  %s8 = inlined_call_operand.vmem [shape: f32[1,512], index: 8, kind: input, shape index: {}]
  %s9 = inlined_call_operand.vmem [shape: f32[8,8,128], index: 9, kind: output, shape index: {0}]
  %s10 = inlined_call_operand.vmem [shape: f32[2,8,128], index: 10, kind: output, shape index: {1}]
  %s11 = inlined_call_operand.vmem [shape: f32[2,8,128], index: 11, kind: output, shape index: {2}]
  %12 = xla_tuple %s9, %s10, %s11
  %s13 = sld [smem:[#allocation0]]
  $region62: #{encoder_rnn_forward.1} parent=0
    _
  %s15 = ssub.s32 1, %s13
  %s16 = scalar_select 0, %s15, %s13
  // Predicated region
  $region2: #{encoder_rnn_forward.1} parent=0 // pred_check
    _
  $region3: #{encoder_rnn_forward.1} parent=0 // pred_check_branch
    %18 = sbr.rel (0) target = $region5
  $region4: #{encoder_rnn_forward.1} parent=0 // pred_region
    _
  $region5: #{encoder_rnn_forward.1} parent=0 // pred_fallthru
    _
  // Predicated region
  $region6: #{encoder_rnn_forward.1} parent=0 // pred_check
    _
  $region7: #{encoder_rnn_forward.1} parent=0 // pred_check_branch
    %20 = sbr.rel (0) target = $region9
  $region8: #{encoder_rnn_forward.1} parent=0 // pred_region
    _
  $region9: #{encoder_rnn_forward.1} parent=0 // pred_fallthru
    _
  // Predicated region
  $region10: #{encoder_rnn_forward.1} parent=0 // pred_check
    _
  $region11: #{encoder_rnn_forward.1} parent=0 // pred_check_branch
    %22 = sbr.rel (0) target = $region13
  $region12: #{encoder_rnn_forward.1} parent=0 // pred_region
    _
  $region13: #{encoder_rnn_forward.1} parent=0 // pred_fallthru
    _
  // Predicated region
  $region14: #{encoder_rnn_forward.1} parent=0 // pred_check
    _
  $region15: #{encoder_rnn_forward.1} parent=0 // pred_check_branch
    %24 = sbr.rel (0) target = $region17
  $region16: #{encoder_rnn_forward.1} parent=0 // pred_region
    _
  $region17: #{encoder_rnn_forward.1} parent=0 // pred_fallthru
    _
  // Predicated region
  $region18: #{encoder_rnn_forward.1} parent=0 // pred_check
    _
  $region19: #{encoder_rnn_forward.1} parent=0 // pred_check_branch
    %26 = sbr.rel (0) target = $region21
  $region20: #{encoder_rnn_forward.1} parent=0 // pred_region
    _
  $region21: #{encoder_rnn_forward.1} parent=0 // pred_fallthru
    _
  // Predicated region
  $region22: #{encoder_rnn_forward.1} parent=0 // pred_check
    _
  $region23: #{encoder_rnn_forward.1} parent=0 // pred_check_branch
    %28 = sbr.rel (0) target = $region25
  $region24: #{encoder_rnn_forward.1} parent=0 // pred_region
    _
  $region25: #{encoder_rnn_forward.1} parent=0 // pred_fallthru
    _
  // Predicated region
  $region26: #{encoder_rnn_forward.1} parent=0 // pred_check
    _
  $region27: #{encoder_rnn_forward.1} parent=0 // pred_check_branch
    %30 = sbr.rel (0) target = $region29
  $region28: #{encoder_rnn_forward.1} parent=0 // pred_region
    _
  $region29: #{encoder_rnn_forward.1} parent=0 // pred_fallthru
    _
  // Predicated region
  $region30: #{encoder_rnn_forward.1} parent=0 // pred_check
    _
  $region31: #{encoder_rnn_forward.1} parent=0 // pred_check_branch
    %32 = sbr.rel (0) target = $region33
  $region32: #{encoder_rnn_forward.1} parent=0 // pred_region
    _
  $region33: #{encoder_rnn_forward.1} parent=0 // pred_fallthru
    _
  // Predicated region
  $region34: #{encoder_rnn_forward.1} parent=0 // pred_check
    _
  $region35: #{encoder_rnn_forward.1} parent=0 // pred_check_branch
    %34 = sbr.rel (0) target = $region37
  $region36: #{encoder_rnn_forward.1} parent=0 // pred_region
    _
  $region37: #{encoder_rnn_forward.1} parent=0 // pred_fallthru
    _
  %v35 = vld [vmem:[%s0] sm:$0xff]
  %v36 = vld [vmem:[%s0 + $0x8] sm:$0xff]
  %v37 = vld [vmem:[%s0 + $0x10] sm:$0xff]
  %v38 = vld [vmem:[%s0 + $0x18] sm:$0xff]
  %v39 = vld [vmem:[%s0 + $0x20] sm:$0xff]
  %v40 = vld [vmem:[%s0 + $0x28] sm:$0xff]
  %v41 = vld [vmem:[%s0 + $0x30] sm:$0xff]
  %v42 = vld [vmem:[%s0 + $0x38] sm:$0xff]
  %v43 = vld [vmem:[%s3] sm:$0xff]
  %v44 = vld [vmem:[%s3 + $0x8] sm:$0xff]
  %v45 = vld [vmem:[%s3 + $0x10] sm:$0xff]
  %v46 = vld [vmem:[%s3 + $0x18] sm:$0xff]
  %v47 = vld [vmem:[%s3 + $0x20] sm:$0xff]
  %v48 = vld [vmem:[%s3 + $0x28] sm:$0xff]
  %v49 = vld [vmem:[%s3 + $0x30] sm:$0xff]
  %v50 = vld [vmem:[%s3 + $0x38] sm:$0xff]
  %v51 = vld [vmem:[%s3 + $0x40] sm:$0xff]
  %v52 = vld [vmem:[%s3 + $0x48] sm:$0xff]
  %v53 = vld [vmem:[%s3 + $0x50] sm:$0xff]
  %v54 = vld [vmem:[%s3 + $0x58] sm:$0xff]
  %v55 = vld [vmem:[%s3 + $0x60] sm:$0xff]
  %v56 = vld [vmem:[%s3 + $0x68] sm:$0xff]
  %v57 = vld [vmem:[%s3 + $0x70] sm:$0xff]
  %v58 = vld [vmem:[%s3 + $0x78] sm:$0xff]
  %v59 = vld [vmem:[%s3 + $0x80] sm:$0xff]
  %v60 = vld [vmem:[%s3 + $0x88] sm:$0xff]
  %v61 = vld [vmem:[%s3 + $0x90] sm:$0xff]
  %v62 = vld [vmem:[%s3 + $0x98] sm:$0xff]
  %v63 = vld [vmem:[%s3 + $0xa0] sm:$0xff]
  %v64 = vld [vmem:[%s3 + $0xa8] sm:$0xff]
  %v65 = vld [vmem:[%s3 + $0xb0] sm:$0xff]
  %v66 = vld [vmem:[%s3 + $0xb8] sm:$0xff]
  %v67 = vld [vmem:[%s3 + $0xc0] sm:$0xff]
  %v68 = vld [vmem:[%s3 + $0xc8] sm:$0xff]
  %v69 = vld [vmem:[%s3 + $0xd0] sm:$0xff]
  %v70 = vld [vmem:[%s3 + $0xd8] sm:$0xff]
  %v71 = vld [vmem:[%s3 + $0xe0] sm:$0xff]
  %v72 = vld [vmem:[%s3 + $0xe8] sm:$0xff]
  %v73 = vld [vmem:[%s3 + $0xf0] sm:$0xff]
  %v74 = vld [vmem:[%s3 + $0xf8] sm:$0xff]
  %v75 = vld [vmem:[%s3 + $0x100] sm:$0xff]
  %v76 = vld [vmem:[%s3 + $0x108] sm:$0xff]
  %v77 = vld [vmem:[%s3 + $0x110] sm:$0xff]
  %v78 = vld [vmem:[%s3 + $0x118] sm:$0xff]
  %v79 = vld [vmem:[%s3 + $0x120] sm:$0xff]
  %v80 = vld [vmem:[%s3 + $0x128] sm:$0xff]
  %v81 = vld [vmem:[%s3 + $0x130] sm:$0xff]
  %v82 = vld [vmem:[%s3 + $0x138] sm:$0xff]
  %v83 = vld [vmem:[%s3 + $0x140] sm:$0xff]
  %v84 = vld [vmem:[%s3 + $0x148] sm:$0xff]
  %v85 = vld [vmem:[%s3 + $0x150] sm:$0xff]
  %v86 = vld [vmem:[%s3 + $0x158] sm:$0xff]
  %v87 = vld [vmem:[%s3 + $0x160] sm:$0xff]
  %v88 = vld [vmem:[%s3 + $0x168] sm:$0xff]
  %v89 = vld [vmem:[%s3 + $0x170] sm:$0xff]
  %v90 = vld [vmem:[%s3 + $0x178] sm:$0xff]
  %v91 = vld [vmem:[%s3 + $0x180] sm:$0xff]
  %v92 = vld [vmem:[%s3 + $0x188] sm:$0xff]
  %v93 = vld [vmem:[%s3 + $0x190] sm:$0xff]
  %v94 = vld [vmem:[%s3 + $0x198] sm:$0xff]
  %v95 = vld [vmem:[%s3 + $0x1a0] sm:$0xff]
  %v96 = vld [vmem:[%s3 + $0x1a8] sm:$0xff]
  %v97 = vld [vmem:[%s3 + $0x1b0] sm:$0xff]
  %v98 = vld [vmem:[%s3 + $0x1b8] sm:$0xff]
  %v99 = vld [vmem:[%s3 + $0x1c0] sm:$0xff]
  %v100 = vld [vmem:[%s3 + $0x1c8] sm:$0xff]
  %v101 = vld [vmem:[%s3 + $0x1d0] sm:$0xff]
  %v102 = vld [vmem:[%s3 + $0x1d8] sm:$0xff]
  %v103 = vld [vmem:[%s3 + $0x1e0] sm:$0xff]
  %v104 = vld [vmem:[%s3 + $0x1e8] sm:$0xff]
  %v105 = vld [vmem:[%s3 + $0x1f0] sm:$0xff]
  %v106 = vld [vmem:[%s3 + $0x1f8] sm:$0xff]
  %v107 = vld [vmem:[%s5] sm:$0xf]
  %v109 = vlaneseq
  %v110 = vshrl.u32 %v109, 7
  %v111 = vsub.s32 0, %v110
  %v112 = vrot.slane %v107, %v111
  %v113 = vlaneseq
  %v114 = vshrl.u32 %v113, 7
  %v115 = vsub.s32 1, %v114
  %v116 = vrot.slane %v107, %v115
  %v117 = vlaneseq
  %v118 = vshrl.u32 %v117, 7
  %v119 = vsub.s32 2, %v118
  %v120 = vrot.slane %v107, %v119
  %v121 = vlaneseq
  %v122 = vshrl.u32 %v121, 7
  %v123 = vsub.s32 3, %v122
  %v124 = vrot.slane %v107, %v123
  %129 = vmatprep.subr.mxu0 %v104
  %130 = vmatpush1.msra.mxu0 %v103
  %131 = vmatprep.subr.mxu0 %v100
  %132 = vmatpush1.msra.mxu0 %v99
  %133 = vmatprep.subr.mxu0 %v96
  %134 = vmatpush1.msra.mxu0 %v95
  %135 = vmatprep.subr.mxu0 %v92
  %136 = vmatpush1.msra.mxu0 %v91
  %137 = vmatprep.subr.mxu0 %v88
  %138 = vmatpush1.msra.mxu0 %v87
  %139 = vmatprep.subr.mxu0 %v84
  %140 = vmatpush1.msra.mxu0 %v83
  %141 = vmatprep.subr.mxu0 %v80
  %142 = vmatpush1.msra.mxu0 %v79
  %143 = vmatprep.subr.mxu0 %v76
  %144 = vmatpush1.msra.mxu0 %v75
  %145 = vmatprep.subr.mxu0 %v72
  %146 = vmatpush1.msra.mxu0 %v71
  %147 = vmatprep.subr.mxu0 %v68
  %148 = vmatpush1.msra.mxu0 %v67
  %149 = vmatprep.subr.mxu0 %v64
  %150 = vmatpush1.msra.mxu0 %v63
  %151 = vmatprep.subr.mxu0 %v60
  %152 = vmatpush1.msra.mxu0 %v59
  %153 = vmatprep.subr.mxu0 %v56
  %154 = vmatpush1.msra.mxu0 %v55
  %155 = vmatprep.subr.mxu0 %v52
  %156 = vmatpush1.msra.mxu0 %v51
  %157 = vmatprep.subr.mxu0 %v48
  %158 = vmatpush1.msra.mxu0 %v47
  %159 = vmatprep.subr.mxu0 %v44
  %160 = vmatpush1.msra.mxu0 %v43
  %161 = vmatprep.subr.mxu0 0.0
  %162 = vmatpush2.msra.mxu0 0.0
  %163 = vmatprep.subr.mxu0 0.0
  %164 = vmatpush2.msra.mxu0 0.0
  %165 = vmatprep.subr.mxu0 0.0
  %166 = vmatpush2.msra.mxu0 0.0
  %167 = vmatprep.subr.mxu0 0.0
  %168 = vmatpush2.msra.mxu0 0.0
  %169 = vmatprep.subr.mxu0 0.0
  %170 = vmatpush2.msra.mxu0 0.0
  %171 = vmatprep.subr.mxu0 0.0
  %172 = vmatpush2.msra.mxu0 0.0
  %173 = vmatprep.subr.mxu0 0.0
  %174 = vmatpush2.msra.mxu0 0.0
  %175 = vmatprep.subr.mxu0 0.0
  %176 = vmatpush2.msra.mxu0 0.0
  %177 = vmatprep.subr.mxu0 0.0
  %178 = vmatpush2.msra.mxu0 0.0
  %179 = vmatprep.subr.mxu0 0.0
  %180 = vmatpush2.msra.mxu0 0.0
  %181 = vmatprep.subr.mxu0 0.0
  %182 = vmatpush2.msra.mxu0 0.0
  %183 = vmatprep.subr.mxu0 0.0
  %184 = vmatpush2.msra.mxu0 0.0
  %185 = vmatprep.subr.mxu0 0.0
  %186 = vmatpush2.msra.mxu0 0.0
  %187 = vmatprep.subr.mxu0 0.0
  %188 = vmatpush2.msra.mxu0 0.0
  %189 = vmatprep.subr.mxu0 0.0
  %190 = vmatpush2.msra.mxu0 0.0
  %191 = vmatprep.subr.mxu0 0.0
  %192 = vmatpush2.msra.mxu0 0.0
  %193 = vmatprep.mubr.f32.mxu0 0.0
  %194 = vmatmul.mubr.f32.gmra.mxu0 %v35
  %v195 = vpop.f32.mrf.mxu0
  %v196 = vadd.f32 %v112, %v195
  %v197 = vpop.f32.mrf.mxu0
  %v198 = vadd.f32 %v116, %v197
  %199 = vmatprep.mubr.f32.mxu0 0.0
  %200 = vmatmul.mubr.f32.gmra.mxu0 %v36
  %v201 = vpop.f32.mrf.mxu0
  %v202 = vadd.f32 %v112, %v201
  %v203 = vpop.f32.mrf.mxu0
  %v204 = vadd.f32 %v116, %v203
  %205 = vmatprep.mubr.f32.mxu0 0.0
  %206 = vmatmul.mubr.f32.gmra.mxu0 %v37
  %v207 = vpop.f32.mrf.mxu0
  %v208 = vadd.f32 %v112, %v207
  %v209 = vpop.f32.mrf.mxu0
  %v210 = vadd.f32 %v116, %v209
  %211 = vmatprep.mubr.f32.mxu0 0.0
  %212 = vmatmul.mubr.f32.gmra.mxu0 %v38
  %v213 = vpop.f32.mrf.mxu0
  %v214 = vadd.f32 %v112, %v213
  %v215 = vpop.f32.mrf.mxu0
  %v216 = vadd.f32 %v116, %v215
  %217 = vmatprep.mubr.f32.mxu0 0.0
  %218 = vmatmul.mubr.f32.gmra.mxu0 %v39
  %v219 = vpop.f32.mrf.mxu0
  %v220 = vadd.f32 %v112, %v219
  %v221 = vpop.f32.mrf.mxu0
  %v222 = vadd.f32 %v116, %v221
  %223 = vmatprep.mubr.f32.mxu0 0.0
  %224 = vmatmul.mubr.f32.gmra.mxu0 %v40
  %v225 = vpop.f32.mrf.mxu0
  %v226 = vadd.f32 %v112, %v225
  %v227 = vpop.f32.mrf.mxu0
  %v228 = vadd.f32 %v116, %v227
  %229 = vmatprep.mubr.f32.mxu0 0.0
  %230 = vmatmul.mubr.f32.gmra.mxu0 %v41
  %v231 = vpop.f32.mrf.mxu0
  %v232 = vadd.f32 %v112, %v231
  %v233 = vpop.f32.mrf.mxu0
  %v234 = vadd.f32 %v116, %v233
  %235 = vmatprep.mubr.f32.mxu0 0.0
  %236 = vmatmul.mubr.f32.gmra.mxu0 %v42
  %v237 = vpop.f32.mrf.mxu0
  %v238 = vadd.f32 %v112, %v237
  %v239 = vpop.f32.mrf.mxu0
  %v240 = vadd.f32 %v116, %v239
  %241 = vdwg.mxu0
  %242 = vmatprep.subr.mxu0 %v106
  %243 = vmatpush1.msra.mxu0 %v105
  %244 = vmatprep.subr.mxu0 %v102
  %245 = vmatpush1.msra.mxu0 %v101
  %246 = vmatprep.subr.mxu0 %v98
  %247 = vmatpush1.msra.mxu0 %v97
  %248 = vmatprep.subr.mxu0 %v94
  %249 = vmatpush1.msra.mxu0 %v93
  %250 = vmatprep.subr.mxu0 %v90
  %251 = vmatpush1.msra.mxu0 %v89
  %252 = vmatprep.subr.mxu0 %v86
  %253 = vmatpush1.msra.mxu0 %v85
  %254 = vmatprep.subr.mxu0 %v82
  %255 = vmatpush1.msra.mxu0 %v81
  %256 = vmatprep.subr.mxu0 %v78
  %257 = vmatpush1.msra.mxu0 %v77
  %258 = vmatprep.subr.mxu0 %v74
  %259 = vmatpush1.msra.mxu0 %v73
  %260 = vmatprep.subr.mxu0 %v70
  %261 = vmatpush1.msra.mxu0 %v69
  %262 = vmatprep.subr.mxu0 %v66
  %263 = vmatpush1.msra.mxu0 %v65
  %264 = vmatprep.subr.mxu0 %v62
  %265 = vmatpush1.msra.mxu0 %v61
  %266 = vmatprep.subr.mxu0 %v58
  %267 = vmatpush1.msra.mxu0 %v57
  %268 = vmatprep.subr.mxu0 %v54
  %269 = vmatpush1.msra.mxu0 %v53
  %270 = vmatprep.subr.mxu0 %v50
  %271 = vmatpush1.msra.mxu0 %v49
  %272 = vmatprep.subr.mxu0 %v46
  %273 = vmatpush1.msra.mxu0 %v45
  %274 = vmatprep.subr.mxu0 0.0
  %275 = vmatpush2.msra.mxu0 0.0
  %276 = vmatprep.subr.mxu0 0.0
  %277 = vmatpush2.msra.mxu0 0.0
  %278 = vmatprep.subr.mxu0 0.0
  %279 = vmatpush2.msra.mxu0 0.0
  %280 = vmatprep.subr.mxu0 0.0
  %281 = vmatpush2.msra.mxu0 0.0
  %282 = vmatprep.subr.mxu0 0.0
  %283 = vmatpush2.msra.mxu0 0.0
  %284 = vmatprep.subr.mxu0 0.0
  %285 = vmatpush2.msra.mxu0 0.0
  %286 = vmatprep.subr.mxu0 0.0
  %287 = vmatpush2.msra.mxu0 0.0
  %288 = vmatprep.subr.mxu0 0.0
  %289 = vmatpush2.msra.mxu0 0.0
  %290 = vmatprep.subr.mxu0 0.0
  %291 = vmatpush2.msra.mxu0 0.0
  %292 = vmatprep.subr.mxu0 0.0
  %293 = vmatpush2.msra.mxu0 0.0
  %294 = vmatprep.subr.mxu0 0.0
  %295 = vmatpush2.msra.mxu0 0.0
  %296 = vmatprep.subr.mxu0 0.0
  %297 = vmatpush2.msra.mxu0 0.0
  %298 = vmatprep.subr.mxu0 0.0
  %299 = vmatpush2.msra.mxu0 0.0
  %300 = vmatprep.subr.mxu0 0.0
  %301 = vmatpush2.msra.mxu0 0.0
  %302 = vmatprep.subr.mxu0 0.0
  %303 = vmatpush2.msra.mxu0 0.0
  %304 = vmatprep.subr.mxu0 0.0
  %305 = vmatpush2.msra.mxu0 0.0
  %306 = vmatprep.mubr.f32.mxu0 0.0
  %307 = vmatmul.mubr.f32.gmra.mxu0 %v35
  %v308 = vpop.f32.mrf.mxu0
  %v309 = vadd.f32 %v120, %v308
  %v310 = vpop.f32.mrf.mxu0
  %v311 = vadd.f32 %v124, %v310
  %312 = vmatprep.mubr.f32.mxu0 0.0
  %313 = vmatmul.mubr.f32.gmra.mxu0 %v36
  %v314 = vpop.f32.mrf.mxu0
  %v315 = vadd.f32 %v120, %v314
  %v316 = vpop.f32.mrf.mxu0
  %v317 = vadd.f32 %v124, %v316
  %318 = vmatprep.mubr.f32.mxu0 0.0
  %319 = vmatmul.mubr.f32.gmra.mxu0 %v37
  %v320 = vpop.f32.mrf.mxu0
  %v321 = vadd.f32 %v120, %v320
  %v322 = vpop.f32.mrf.mxu0
  %v323 = vadd.f32 %v124, %v322
  %324 = vmatprep.mubr.f32.mxu0 0.0
  %325 = vmatmul.mubr.f32.gmra.mxu0 %v38
  %v326 = vpop.f32.mrf.mxu0
  %v327 = vadd.f32 %v120, %v326
  %v328 = vpop.f32.mrf.mxu0
  %v329 = vadd.f32 %v124, %v328
  %330 = vmatprep.mubr.f32.mxu0 0.0
  %331 = vmatmul.mubr.f32.gmra.mxu0 %v39
  %v332 = vpop.f32.mrf.mxu0
  %v333 = vadd.f32 %v120, %v332
  %v334 = vpop.f32.mrf.mxu0
  %v335 = vadd.f32 %v124, %v334
  %336 = vmatprep.mubr.f32.mxu0 0.0
  %337 = vmatmul.mubr.f32.gmra.mxu0 %v40
  %v338 = vpop.f32.mrf.mxu0
  %v339 = vadd.f32 %v120, %v338
  %v340 = vpop.f32.mrf.mxu0
  %v341 = vadd.f32 %v124, %v340
  %342 = vmatprep.mubr.f32.mxu0 0.0
  %343 = vmatmul.mubr.f32.gmra.mxu0 %v41
  %v344 = vpop.f32.mrf.mxu0
  %v345 = vadd.f32 %v120, %v344
  %v346 = vpop.f32.mrf.mxu0
  %v347 = vadd.f32 %v124, %v346
  %348 = vmatprep.mubr.f32.mxu0 0.0
  %349 = vmatmul.mubr.f32.gmra.mxu0 %v42
  %v350 = vpop.f32.mrf.mxu0
  %v351 = vadd.f32 %v120, %v350
  %v352 = vpop.f32.mrf.mxu0
  %v353 = vadd.f32 %v124, %v352
  %354 = vdwg.mxu0
  %355 = vst [vmem:[#allocation2] sm:$0xff] %v196
  %356 = vst [vmem:[#allocation2 + $0x8] sm:$0xff] %v198
  %357 = vst [vmem:[#allocation2 + $0x10] sm:$0xff] %v309
  %358 = vst [vmem:[#allocation2 + $0x18] sm:$0xff] %v311
  %359 = vst [vmem:[#allocation2 + $0x20] sm:$0xff] %v202
  %360 = vst [vmem:[#allocation2 + $0x28] sm:$0xff] %v204
  %361 = vst [vmem:[#allocation2 + $0x30] sm:$0xff] %v315
  %362 = vst [vmem:[#allocation2 + $0x38] sm:$0xff] %v317
  %363 = vst [vmem:[#allocation2 + $0x40] sm:$0xff] %v208
  %364 = vst [vmem:[#allocation2 + $0x48] sm:$0xff] %v210
  %365 = vst [vmem:[#allocation2 + $0x50] sm:$0xff] %v321
  %366 = vst [vmem:[#allocation2 + $0x58] sm:$0xff] %v323
  %367 = vst [vmem:[#allocation2 + $0x60] sm:$0xff] %v214
  %368 = vst [vmem:[#allocation2 + $0x68] sm:$0xff] %v216
  %369 = vst [vmem:[#allocation2 + $0x70] sm:$0xff] %v327
  %370 = vst [vmem:[#allocation2 + $0x78] sm:$0xff] %v329
  %371 = vst [vmem:[#allocation2 + $0x80] sm:$0xff] %v220
  %372 = vst [vmem:[#allocation2 + $0x88] sm:$0xff] %v222
  %373 = vst [vmem:[#allocation2 + $0x90] sm:$0xff] %v333
  %374 = vst [vmem:[#allocation2 + $0x98] sm:$0xff] %v335
  %375 = vst [vmem:[#allocation2 + $0xa0] sm:$0xff] %v226
  %376 = vst [vmem:[#allocation2 + $0xa8] sm:$0xff] %v228
  %377 = vst [vmem:[#allocation2 + $0xb0] sm:$0xff] %v339
  %378 = vst [vmem:[#allocation2 + $0xb8] sm:$0xff] %v341
  %379 = vst [vmem:[#allocation2 + $0xc0] sm:$0xff] %v232
  %380 = vst [vmem:[#allocation2 + $0xc8] sm:$0xff] %v234
  %381 = vst [vmem:[#allocation2 + $0xd0] sm:$0xff] %v345
  %382 = vst [vmem:[#allocation2 + $0xd8] sm:$0xff] %v347
  %383 = vst [vmem:[#allocation2 + $0xe0] sm:$0xff] %v238
  %384 = vst [vmem:[#allocation2 + $0xe8] sm:$0xff] %v240
  %385 = vst [vmem:[#allocation2 + $0xf0] sm:$0xff] %v351
  %386 = vst [vmem:[#allocation2 + $0xf8] sm:$0xff] %v353
  %v387 = vld [vmem:[%s4] sm:$0xff]
  %v388 = vld [vmem:[%s4 + $0x8] sm:$0xff]
  %v389 = vld [vmem:[%s4 + $0x10] sm:$0xff]
  %v390 = vld [vmem:[%s4 + $0x18] sm:$0xff]
  %v391 = vld [vmem:[%s4 + $0x20] sm:$0xff]
  %v392 = vld [vmem:[%s4 + $0x28] sm:$0xff]
  %v393 = vld [vmem:[%s4 + $0x30] sm:$0xff]
  %v394 = vld [vmem:[%s4 + $0x38] sm:$0xff]
  %v395 = vld [vmem:[%s4 + $0x40] sm:$0xff]
  %v396 = vld [vmem:[%s4 + $0x48] sm:$0xff]
  %v397 = vld [vmem:[%s4 + $0x50] sm:$0xff]
  %v398 = vld [vmem:[%s4 + $0x58] sm:$0xff]
  %v399 = vld [vmem:[%s4 + $0x60] sm:$0xff]
  %v400 = vld [vmem:[%s4 + $0x68] sm:$0xff]
  %v401 = vld [vmem:[%s4 + $0x70] sm:$0xff]
  %v402 = vld [vmem:[%s4 + $0x78] sm:$0xff]
  %v403 = vld [vmem:[%s4 + $0x80] sm:$0xff]
  %v404 = vld [vmem:[%s4 + $0x88] sm:$0xff]
  %v405 = vld [vmem:[%s4 + $0x90] sm:$0xff]
  %v406 = vld [vmem:[%s4 + $0x98] sm:$0xff]
  %v407 = vld [vmem:[%s4 + $0xa0] sm:$0xff]
  %v408 = vld [vmem:[%s4 + $0xa8] sm:$0xff]
  %v409 = vld [vmem:[%s4 + $0xb0] sm:$0xff]
  %v410 = vld [vmem:[%s4 + $0xb8] sm:$0xff]
  %v411 = vld [vmem:[%s4 + $0xc0] sm:$0xff]
  %v412 = vld [vmem:[%s4 + $0xc8] sm:$0xff]
  %v413 = vld [vmem:[%s4 + $0xd0] sm:$0xff]
  %v414 = vld [vmem:[%s4 + $0xd8] sm:$0xff]
  %v415 = vld [vmem:[%s4 + $0xe0] sm:$0xff]
  %v416 = vld [vmem:[%s4 + $0xe8] sm:$0xff]
  %v417 = vld [vmem:[%s4 + $0xf0] sm:$0xff]
  %v418 = vld [vmem:[%s4 + $0xf8] sm:$0xff]
  %v419 = vld [vmem:[%s4 + $0x100] sm:$0xff]
  %v420 = vld [vmem:[%s4 + $0x108] sm:$0xff]
  %v421 = vld [vmem:[%s4 + $0x110] sm:$0xff]
  %v422 = vld [vmem:[%s4 + $0x118] sm:$0xff]
  %v423 = vld [vmem:[%s4 + $0x120] sm:$0xff]
  %v424 = vld [vmem:[%s4 + $0x128] sm:$0xff]
  %v425 = vld [vmem:[%s4 + $0x130] sm:$0xff]
  %v426 = vld [vmem:[%s4 + $0x138] sm:$0xff]
  %v427 = vld [vmem:[%s4 + $0x140] sm:$0xff]
  %v428 = vld [vmem:[%s4 + $0x148] sm:$0xff]
  %v429 = vld [vmem:[%s4 + $0x150] sm:$0xff]
  %v430 = vld [vmem:[%s4 + $0x158] sm:$0xff]
  %v431 = vld [vmem:[%s4 + $0x160] sm:$0xff]
  %v432 = vld [vmem:[%s4 + $0x168] sm:$0xff]
  %v433 = vld [vmem:[%s4 + $0x170] sm:$0xff]
  %v434 = vld [vmem:[%s4 + $0x178] sm:$0xff]
  %v435 = vld [vmem:[%s4 + $0x180] sm:$0xff]
  %v436 = vld [vmem:[%s4 + $0x188] sm:$0xff]
  %v437 = vld [vmem:[%s4 + $0x190] sm:$0xff]
  %v438 = vld [vmem:[%s4 + $0x198] sm:$0xff]
  %v439 = vld [vmem:[%s4 + $0x1a0] sm:$0xff]
  %v440 = vld [vmem:[%s4 + $0x1a8] sm:$0xff]
  %v441 = vld [vmem:[%s4 + $0x1b0] sm:$0xff]
  %v442 = vld [vmem:[%s4 + $0x1b8] sm:$0xff]
  %v443 = vld [vmem:[%s4 + $0x1c0] sm:$0xff]
  %v444 = vld [vmem:[%s4 + $0x1c8] sm:$0xff]
  %v445 = vld [vmem:[%s4 + $0x1d0] sm:$0xff]
  %v446 = vld [vmem:[%s4 + $0x1d8] sm:$0xff]
  %v447 = vld [vmem:[%s4 + $0x1e0] sm:$0xff]
  %v448 = vld [vmem:[%s4 + $0x1e8] sm:$0xff]
  %v449 = vld [vmem:[%s4 + $0x1f0] sm:$0xff]
  %v450 = vld [vmem:[%s4 + $0x1f8] sm:$0xff]
  %v451 = vld [vmem:[%s1] sm:$0xff]
  %v452 = vld [vmem:[%s2] sm:$0xff]
  %v453 = vld [vmem:[#allocation2] sm:$0xff]
  %v454 = vld [vmem:[#allocation2 + $0x8] sm:$0xff]
  %v455 = vld [vmem:[#allocation2 + $0x10] sm:$0xff]
  %v456 = vld [vmem:[#allocation2 + $0x18] sm:$0xff]
  %457 = vmatprep.subr.mxu0 %v448
  %458 = vmatpush1.msra.mxu0 %v447
  %459 = vmatprep.subr.mxu0 %v444
  %460 = vmatpush1.msra.mxu0 %v443
  %461 = vmatprep.subr.mxu0 %v440
  %462 = vmatpush1.msra.mxu0 %v439
  %463 = vmatprep.subr.mxu0 %v436
  %464 = vmatpush1.msra.mxu0 %v435
  %465 = vmatprep.subr.mxu0 %v432
  %466 = vmatpush1.msra.mxu0 %v431
  %467 = vmatprep.subr.mxu0 %v428
  %468 = vmatpush1.msra.mxu0 %v427
  %469 = vmatprep.subr.mxu0 %v424
  %470 = vmatpush1.msra.mxu0 %v423
  %471 = vmatprep.subr.mxu0 %v420
  %472 = vmatpush1.msra.mxu0 %v419
  %473 = vmatprep.subr.mxu0 %v416
  %474 = vmatpush1.msra.mxu0 %v415
  %475 = vmatprep.subr.mxu0 %v412
  %476 = vmatpush1.msra.mxu0 %v411
  %477 = vmatprep.subr.mxu0 %v408
  %478 = vmatpush1.msra.mxu0 %v407
  %479 = vmatprep.subr.mxu0 %v404
  %480 = vmatpush1.msra.mxu0 %v403
  %481 = vmatprep.subr.mxu0 %v400
  %482 = vmatpush1.msra.mxu0 %v399
  %483 = vmatprep.subr.mxu0 %v396
  %484 = vmatpush1.msra.mxu0 %v395
  %485 = vmatprep.subr.mxu0 %v392
  %486 = vmatpush1.msra.mxu0 %v391
  %487 = vmatprep.subr.mxu0 %v388
  %488 = vmatpush1.msra.mxu0 %v387
  %489 = vmatprep.subr.mxu0 0.0
  %490 = vmatpush2.msra.mxu0 0.0
  %491 = vmatprep.subr.mxu0 0.0
  %492 = vmatpush2.msra.mxu0 0.0
  %493 = vmatprep.subr.mxu0 0.0
  %494 = vmatpush2.msra.mxu0 0.0
  %495 = vmatprep.subr.mxu0 0.0
  %496 = vmatpush2.msra.mxu0 0.0
  %497 = vmatprep.subr.mxu0 0.0
  %498 = vmatpush2.msra.mxu0 0.0
  %499 = vmatprep.subr.mxu0 0.0
  %500 = vmatpush2.msra.mxu0 0.0
  %501 = vmatprep.subr.mxu0 0.0
  %502 = vmatpush2.msra.mxu0 0.0
  %503 = vmatprep.subr.mxu0 0.0
  %504 = vmatpush2.msra.mxu0 0.0
  %505 = vmatprep.subr.mxu0 0.0
  %506 = vmatpush2.msra.mxu0 0.0
  %507 = vmatprep.subr.mxu0 0.0
  %508 = vmatpush2.msra.mxu0 0.0
  %509 = vmatprep.subr.mxu0 0.0
  %510 = vmatpush2.msra.mxu0 0.0
  %511 = vmatprep.subr.mxu0 0.0
  %512 = vmatpush2.msra.mxu0 0.0
  %513 = vmatprep.subr.mxu0 0.0
  %514 = vmatpush2.msra.mxu0 0.0
  %515 = vmatprep.subr.mxu0 0.0
  %516 = vmatpush2.msra.mxu0 0.0
  %517 = vmatprep.subr.mxu0 0.0
  %518 = vmatpush2.msra.mxu0 0.0
  %519 = vmatprep.subr.mxu0 0.0
  %520 = vmatpush2.msra.mxu0 0.0
  %521 = vmatprep.mubr.f32.mxu0 0.0
  %522 = vmatmul.mubr.f32.gmra.mxu0 %v451
  %v523 = vpop.f32.mrf.mxu0
  %v524 = vadd.f32 %v453, %v523
  %v525 = vpop.f32.mrf.mxu0
  %v526 = vadd.f32 %v454, %v525
  %527 = vdwg.mxu0
  %528 = vmatprep.subr.mxu0 %v450
  %529 = vmatpush1.msra.mxu0 %v449
  %530 = vmatprep.subr.mxu0 %v446
  %531 = vmatpush1.msra.mxu0 %v445
  %532 = vmatprep.subr.mxu0 %v442
  %533 = vmatpush1.msra.mxu0 %v441
  %534 = vmatprep.subr.mxu0 %v438
  %535 = vmatpush1.msra.mxu0 %v437
  %536 = vmatprep.subr.mxu0 %v434
  %537 = vmatpush1.msra.mxu0 %v433
  %538 = vmatprep.subr.mxu0 %v430
  %539 = vmatpush1.msra.mxu0 %v429
  %540 = vmatprep.subr.mxu0 %v426
  %541 = vmatpush1.msra.mxu0 %v425
  %542 = vmatprep.subr.mxu0 %v422
  %543 = vmatpush1.msra.mxu0 %v421
  %544 = vmatprep.subr.mxu0 %v418
  %545 = vmatpush1.msra.mxu0 %v417
  %546 = vmatprep.subr.mxu0 %v414
  %547 = vmatpush1.msra.mxu0 %v413
  %548 = vmatprep.subr.mxu0 %v410
  %549 = vmatpush1.msra.mxu0 %v409
  %550 = vmatprep.subr.mxu0 %v406
  %551 = vmatpush1.msra.mxu0 %v405
  %552 = vmatprep.subr.mxu0 %v402
  %553 = vmatpush1.msra.mxu0 %v401
  %554 = vmatprep.subr.mxu0 %v398
  %555 = vmatpush1.msra.mxu0 %v397
  %556 = vmatprep.subr.mxu0 %v394
  %557 = vmatpush1.msra.mxu0 %v393
  %558 = vmatprep.subr.mxu0 %v390
  %559 = vmatpush1.msra.mxu0 %v389
  %560 = vmatprep.subr.mxu0 0.0
  %561 = vmatpush2.msra.mxu0 0.0
  %562 = vmatprep.subr.mxu0 0.0
  %563 = vmatpush2.msra.mxu0 0.0
  %564 = vmatprep.subr.mxu0 0.0
  %565 = vmatpush2.msra.mxu0 0.0
  %566 = vmatprep.subr.mxu0 0.0
  %567 = vmatpush2.msra.mxu0 0.0
  %568 = vmatprep.subr.mxu0 0.0
  %569 = vmatpush2.msra.mxu0 0.0
  %570 = vmatprep.subr.mxu0 0.0
  %571 = vmatpush2.msra.mxu0 0.0
  %572 = vmatprep.subr.mxu0 0.0
  %573 = vmatpush2.msra.mxu0 0.0
  %574 = vmatprep.subr.mxu0 0.0
  %575 = vmatpush2.msra.mxu0 0.0
  %576 = vmatprep.subr.mxu0 0.0
  %577 = vmatpush2.msra.mxu0 0.0
  %578 = vmatprep.subr.mxu0 0.0
  %579 = vmatpush2.msra.mxu0 0.0
  %580 = vmatprep.subr.mxu0 0.0
  %581 = vmatpush2.msra.mxu0 0.0
  %582 = vmatprep.subr.mxu0 0.0
  %583 = vmatpush2.msra.mxu0 0.0
  %584 = vmatprep.subr.mxu0 0.0
  %585 = vmatpush2.msra.mxu0 0.0
  %586 = vmatprep.subr.mxu0 0.0
  %587 = vmatpush2.msra.mxu0 0.0
  %588 = vmatprep.subr.mxu0 0.0
  %589 = vmatpush2.msra.mxu0 0.0
  %590 = vmatprep.subr.mxu0 0.0
  %591 = vmatpush2.msra.mxu0 0.0
  %592 = vmatprep.mubr.f32.mxu0 0.0
  %593 = vmatmul.mubr.f32.gmra.mxu0 %v451
  %v594 = vpop.f32.mrf.mxu0
  %v595 = vadd.f32 %v455, %v594
  %v596 = vpop.f32.mrf.mxu0
  %v597 = vadd.f32 %v456, %v596
  %598 = vdwg.mxu0
  %v599 = vxor.u32 %v524, 2147483648
  %v600 = vmul.f32 %v599, 1.442695
  %v601 = vpow.pop %v600
  %v602 = vadd.f32 %v601, 1.0
  %v603 = vrcp.pop %v602
  %v604 = vmul.f32 1.0, %v603
  %v605 = vxor.u32 %v526, 2147483648
  %v606 = vmul.f32 %v605, 1.442695
  %v607 = vpow.pop %v606
  %v608 = vadd.f32 %v607, 1.0
  %v609 = vrcp.pop %v608
  %v610 = vmul.f32 1.0, %v609
  %v611 = vtanh.pop %v595
  %v612 = vxor.u32 %v597, 2147483648
  %v613 = vmul.f32 %v612, 1.442695
  %v614 = vpow.pop %v613
  %v615 = vadd.f32 %v614, 1.0
  %v616 = vrcp.pop %v615
  %v617 = vmul.f32 1.0, %v616
  %v618 = vmul.f32 %v610, %v452
  %v619 = vmul.f32 %v604, %v611
  %v620 = vadd.f32 %v618, %v619
  %v621 = vtanh.pop %v620
  %v622 = vmul.f32 %v617, %v621
  %623 = vst [vmem:[%s9] sm:$0xff] %v622
  %s624 = scalar_lea.vmem [#allocation2], 32
  %v625 = vld [vmem:[%s624] sm:$0xff]
  %v626 = vld [vmem:[%s624 + $0x8] sm:$0xff]
  %v627 = vld [vmem:[%s624 + $0x10] sm:$0xff]
  %v628 = vld [vmem:[%s624 + $0x18] sm:$0xff]
  %629 = vmatprep.subr.mxu0 %v448
  %630 = vmatpush1.msra.mxu0 %v447
  %631 = vmatprep.subr.mxu0 %v444
  %632 = vmatpush1.msra.mxu0 %v443
  %633 = vmatprep.subr.mxu0 %v440
  %634 = vmatpush1.msra.mxu0 %v439
  %635 = vmatprep.subr.mxu0 %v436
  %636 = vmatpush1.msra.mxu0 %v435
  %637 = vmatprep.subr.mxu0 %v432
  %638 = vmatpush1.msra.mxu0 %v431
  %639 = vmatprep.subr.mxu0 %v428
  %640 = vmatpush1.msra.mxu0 %v427
  %641 = vmatprep.subr.mxu0 %v424
  %642 = vmatpush1.msra.mxu0 %v423
  %643 = vmatprep.subr.mxu0 %v420
  %644 = vmatpush1.msra.mxu0 %v419
  %645 = vmatprep.subr.mxu0 %v416
  %646 = vmatpush1.msra.mxu0 %v415
  %647 = vmatprep.subr.mxu0 %v412
  %648 = vmatpush1.msra.mxu0 %v411
  %649 = vmatprep.subr.mxu0 %v408
  %650 = vmatpush1.msra.mxu0 %v407
  %651 = vmatprep.subr.mxu0 %v404
  %652 = vmatpush1.msra.mxu0 %v403
  %653 = vmatprep.subr.mxu0 %v400
  %654 = vmatpush1.msra.mxu0 %v399
  %655 = vmatprep.subr.mxu0 %v396
  %656 = vmatpush1.msra.mxu0 %v395
  %657 = vmatprep.subr.mxu0 %v392
  %658 = vmatpush1.msra.mxu0 %v391
  %659 = vmatprep.subr.mxu0 %v388
  %660 = vmatpush1.msra.mxu0 %v387
  %661 = vmatprep.subr.mxu0 0.0
  %662 = vmatpush2.msra.mxu0 0.0
  %663 = vmatprep.subr.mxu0 0.0
  %664 = vmatpush2.msra.mxu0 0.0
  %665 = vmatprep.subr.mxu0 0.0
  %666 = vmatpush2.msra.mxu0 0.0
  %667 = vmatprep.subr.mxu0 0.0
  %668 = vmatpush2.msra.mxu0 0.0
  %669 = vmatprep.subr.mxu0 0.0
  %670 = vmatpush2.msra.mxu0 0.0
  %671 = vmatprep.subr.mxu0 0.0
  %672 = vmatpush2.msra.mxu0 0.0
  %673 = vmatprep.subr.mxu0 0.0
  %674 = vmatpush2.msra.mxu0 0.0
  %675 = vmatprep.subr.mxu0 0.0
  %676 = vmatpush2.msra.mxu0 0.0
  %677 = vmatprep.subr.mxu0 0.0
  %678 = vmatpush2.msra.mxu0 0.0
  %679 = vmatprep.subr.mxu0 0.0
  %680 = vmatpush2.msra.mxu0 0.0
  %681 = vmatprep.subr.mxu0 0.0
  %682 = vmatpush2.msra.mxu0 0.0
  %683 = vmatprep.subr.mxu0 0.0
  %684 = vmatpush2.msra.mxu0 0.0
  %685 = vmatprep.subr.mxu0 0.0
  %686 = vmatpush2.msra.mxu0 0.0
  %687 = vmatprep.subr.mxu0 0.0
  %688 = vmatpush2.msra.mxu0 0.0
  %689 = vmatprep.subr.mxu0 0.0
  %690 = vmatpush2.msra.mxu0 0.0
  %691 = vmatprep.subr.mxu0 0.0
  %692 = vmatpush2.msra.mxu0 0.0
  %693 = vmatprep.mubr.f32.mxu0 0.0
  %694 = vmatmul.mubr.f32.gmra.mxu0 %v622
  %v695 = vpop.f32.mrf.mxu0
  %v696 = vadd.f32 %v625, %v695
  %v697 = vpop.f32.mrf.mxu0
  %v698 = vadd.f32 %v626, %v697
  %699 = vdwg.mxu0
  %700 = vmatprep.subr.mxu0 %v450
  %701 = vmatpush1.msra.mxu0 %v449
  %702 = vmatprep.subr.mxu0 %v446
  %703 = vmatpush1.msra.mxu0 %v445
  %704 = vmatprep.subr.mxu0 %v442
  %705 = vmatpush1.msra.mxu0 %v441
  %706 = vmatprep.subr.mxu0 %v438
  %707 = vmatpush1.msra.mxu0 %v437
  %708 = vmatprep.subr.mxu0 %v434
  %709 = vmatpush1.msra.mxu0 %v433
  %710 = vmatprep.subr.mxu0 %v430
  %711 = vmatpush1.msra.mxu0 %v429
  %712 = vmatprep.subr.mxu0 %v426
  %713 = vmatpush1.msra.mxu0 %v425
  %714 = vmatprep.subr.mxu0 %v422
  %715 = vmatpush1.msra.mxu0 %v421
  %716 = vmatprep.subr.mxu0 %v418
  %717 = vmatpush1.msra.mxu0 %v417
  %718 = vmatprep.subr.mxu0 %v414
  %719 = vmatpush1.msra.mxu0 %v413
  %720 = vmatprep.subr.mxu0 %v410
  %721 = vmatpush1.msra.mxu0 %v409
  %722 = vmatprep.subr.mxu0 %v406
  %723 = vmatpush1.msra.mxu0 %v405
  %724 = vmatprep.subr.mxu0 %v402
  %725 = vmatpush1.msra.mxu0 %v401
  %726 = vmatprep.subr.mxu0 %v398
  %727 = vmatpush1.msra.mxu0 %v397
  %728 = vmatprep.subr.mxu0 %v394
  %729 = vmatpush1.msra.mxu0 %v393
  %730 = vmatprep.subr.mxu0 %v390
  %731 = vmatpush1.msra.mxu0 %v389
  %732 = vmatprep.subr.mxu0 0.0
  %733 = vmatpush2.msra.mxu0 0.0
  %734 = vmatprep.subr.mxu0 0.0
  %735 = vmatpush2.msra.mxu0 0.0
  %736 = vmatprep.subr.mxu0 0.0
  %737 = vmatpush2.msra.mxu0 0.0
  %738 = vmatprep.subr.mxu0 0.0
  %739 = vmatpush2.msra.mxu0 0.0
  %740 = vmatprep.subr.mxu0 0.0
  %741 = vmatpush2.msra.mxu0 0.0
  %742 = vmatprep.subr.mxu0 0.0
  %743 = vmatpush2.msra.mxu0 0.0
  %744 = vmatprep.subr.mxu0 0.0
  %745 = vmatpush2.msra.mxu0 0.0
  %746 = vmatprep.subr.mxu0 0.0
  %747 = vmatpush2.msra.mxu0 0.0
  %748 = vmatprep.subr.mxu0 0.0
  %749 = vmatpush2.msra.mxu0 0.0
  %750 = vmatprep.subr.mxu0 0.0
  %751 = vmatpush2.msra.mxu0 0.0
  %752 = vmatprep.subr.mxu0 0.0
  %753 = vmatpush2.msra.mxu0 0.0
  %754 = vmatprep.subr.mxu0 0.0
  %755 = vmatpush2.msra.mxu0 0.0
  %756 = vmatprep.subr.mxu0 0.0
  %757 = vmatpush2.msra.mxu0 0.0
  %758 = vmatprep.subr.mxu0 0.0
  %759 = vmatpush2.msra.mxu0 0.0
  %760 = vmatprep.subr.mxu0 0.0
  %761 = vmatpush2.msra.mxu0 0.0
  %762 = vmatprep.subr.mxu0 0.0
  %763 = vmatpush2.msra.mxu0 0.0
  %764 = vmatprep.mubr.f32.mxu0 0.0
  %765 = vmatmul.mubr.f32.gmra.mxu0 %v622
  %v766 = vpop.f32.mrf.mxu0
  %v767 = vadd.f32 %v627, %v766
  %v768 = vpop.f32.mrf.mxu0
  %v769 = vadd.f32 %v628, %v768
  %770 = vdwg.mxu0
  %v771 = vxor.u32 %v696, 2147483648
  %v772 = vmul.f32 %v771, 1.442695
  %v773 = vpow.pop %v772
  %v774 = vadd.f32 %v773, 1.0
  %v775 = vrcp.pop %v774
  %v776 = vmul.f32 1.0, %v775
  %v777 = vxor.u32 %v698, 2147483648
  %v778 = vmul.f32 %v777, 1.442695
  %v779 = vpow.pop %v778
  %v780 = vadd.f32 %v779, 1.0
  %v781 = vrcp.pop %v780
  %v782 = vmul.f32 1.0, %v781
  %v783 = vtanh.pop %v767
  %v784 = vxor.u32 %v769, 2147483648
  %v785 = vmul.f32 %v784, 1.442695
  %v786 = vpow.pop %v785
  %v787 = vadd.f32 %v786, 1.0
  %v788 = vrcp.pop %v787
  %v789 = vmul.f32 1.0, %v788
  %v790 = vmul.f32 %v782, %v620
  %v791 = vmul.f32 %v776, %v783
  %v792 = vadd.f32 %v790, %v791
  %v793 = vtanh.pop %v792
  %v794 = vmul.f32 %v789, %v793
  %s795 = scalar_lea.vmem %s9, 8
  %796 = vst [vmem:[%s795] sm:$0xff] %v794
  %s797 = scalar_lea.vmem [#allocation2], 64
  %v798 = vld [vmem:[%s797] sm:$0xff]
  %v799 = vld [vmem:[%s797 + $0x8] sm:$0xff]
  %v800 = vld [vmem:[%s797 + $0x10] sm:$0xff]
  %v801 = vld [vmem:[%s797 + $0x18] sm:$0xff]
  %802 = vmatprep.subr.mxu0 %v448
  %803 = vmatpush1.msra.mxu0 %v447
  %804 = vmatprep.subr.mxu0 %v444
  %805 = vmatpush1.msra.mxu0 %v443
  %806 = vmatprep.subr.mxu0 %v440
  %807 = vmatpush1.msra.mxu0 %v439
  %808 = vmatprep.subr.mxu0 %v436
  %809 = vmatpush1.msra.mxu0 %v435
  %810 = vmatprep.subr.mxu0 %v432
  %811 = vmatpush1.msra.mxu0 %v431
  %812 = vmatprep.subr.mxu0 %v428
  %813 = vmatpush1.msra.mxu0 %v427
  %814 = vmatprep.subr.mxu0 %v424
  %815 = vmatpush1.msra.mxu0 %v423
  %816 = vmatprep.subr.mxu0 %v420
  %817 = vmatpush1.msra.mxu0 %v419
  %818 = vmatprep.subr.mxu0 %v416
  %819 = vmatpush1.msra.mxu0 %v415
  %820 = vmatprep.subr.mxu0 %v412
  %821 = vmatpush1.msra.mxu0 %v411
  %822 = vmatprep.subr.mxu0 %v408
  %823 = vmatpush1.msra.mxu0 %v407
  %824 = vmatprep.subr.mxu0 %v404
  %825 = vmatpush1.msra.mxu0 %v403
  %826 = vmatprep.subr.mxu0 %v400
  %827 = vmatpush1.msra.mxu0 %v399
  %828 = vmatprep.subr.mxu0 %v396
  %829 = vmatpush1.msra.mxu0 %v395
  %830 = vmatprep.subr.mxu0 %v392
  %831 = vmatpush1.msra.mxu0 %v391
  %832 = vmatprep.subr.mxu0 %v388
  %833 = vmatpush1.msra.mxu0 %v387
  %834 = vmatprep.subr.mxu0 0.0
  %835 = vmatpush2.msra.mxu0 0.0
  %836 = vmatprep.subr.mxu0 0.0
  %837 = vmatpush2.msra.mxu0 0.0
  %838 = vmatprep.subr.mxu0 0.0
  %839 = vmatpush2.msra.mxu0 0.0
  %840 = vmatprep.subr.mxu0 0.0
  %841 = vmatpush2.msra.mxu0 0.0
  %842 = vmatprep.subr.mxu0 0.0
  %843 = vmatpush2.msra.mxu0 0.0
  %844 = vmatprep.subr.mxu0 0.0
  %845 = vmatpush2.msra.mxu0 0.0
  %846 = vmatprep.subr.mxu0 0.0
  %847 = vmatpush2.msra.mxu0 0.0
  %848 = vmatprep.subr.mxu0 0.0
  %849 = vmatpush2.msra.mxu0 0.0
  %850 = vmatprep.subr.mxu0 0.0
  %851 = vmatpush2.msra.mxu0 0.0
  %852 = vmatprep.subr.mxu0 0.0
  %853 = vmatpush2.msra.mxu0 0.0
  %854 = vmatprep.subr.mxu0 0.0
  %855 = vmatpush2.msra.mxu0 0.0
  %856 = vmatprep.subr.mxu0 0.0
  %857 = vmatpush2.msra.mxu0 0.0
  %858 = vmatprep.subr.mxu0 0.0
  %859 = vmatpush2.msra.mxu0 0.0
  %860 = vmatprep.subr.mxu0 0.0
  %861 = vmatpush2.msra.mxu0 0.0
  %862 = vmatprep.subr.mxu0 0.0
  %863 = vmatpush2.msra.mxu0 0.0
  %864 = vmatprep.subr.mxu0 0.0
  %865 = vmatpush2.msra.mxu0 0.0
  %866 = vmatprep.mubr.f32.mxu0 0.0
  %867 = vmatmul.mubr.f32.gmra.mxu0 %v794
  %v868 = vpop.f32.mrf.mxu0
  %v869 = vadd.f32 %v798, %v868
  %v870 = vpop.f32.mrf.mxu0
  %v871 = vadd.f32 %v799, %v870
  %872 = vdwg.mxu0
  %873 = vmatprep.subr.mxu0 %v450
  %874 = vmatpush1.msra.mxu0 %v449
  %875 = vmatprep.subr.mxu0 %v446
  %876 = vmatpush1.msra.mxu0 %v445
  %877 = vmatprep.subr.mxu0 %v442
  %878 = vmatpush1.msra.mxu0 %v441
  %879 = vmatprep.subr.mxu0 %v438
  %880 = vmatpush1.msra.mxu0 %v437
  %881 = vmatprep.subr.mxu0 %v434
  %882 = vmatpush1.msra.mxu0 %v433
  %883 = vmatprep.subr.mxu0 %v430
  %884 = vmatpush1.msra.mxu0 %v429
  %885 = vmatprep.subr.mxu0 %v426
  %886 = vmatpush1.msra.mxu0 %v425
  %887 = vmatprep.subr.mxu0 %v422
  %888 = vmatpush1.msra.mxu0 %v421
  %889 = vmatprep.subr.mxu0 %v418
  %890 = vmatpush1.msra.mxu0 %v417
  %891 = vmatprep.subr.mxu0 %v414
  %892 = vmatpush1.msra.mxu0 %v413
  %893 = vmatprep.subr.mxu0 %v410
  %894 = vmatpush1.msra.mxu0 %v409
  %895 = vmatprep.subr.mxu0 %v406
  %896 = vmatpush1.msra.mxu0 %v405
  %897 = vmatprep.subr.mxu0 %v402
  %898 = vmatpush1.msra.mxu0 %v401
  %899 = vmatprep.subr.mxu0 %v398
  %900 = vmatpush1.msra.mxu0 %v397
  %901 = vmatprep.subr.mxu0 %v394
  %902 = vmatpush1.msra.mxu0 %v393
  %903 = vmatprep.subr.mxu0 %v390
  %904 = vmatpush1.msra.mxu0 %v389
  %905 = vmatprep.subr.mxu0 0.0
  %906 = vmatpush2.msra.mxu0 0.0
  %907 = vmatprep.subr.mxu0 0.0
  %908 = vmatpush2.msra.mxu0 0.0
  %909 = vmatprep.subr.mxu0 0.0
  %910 = vmatpush2.msra.mxu0 0.0
  %911 = vmatprep.subr.mxu0 0.0
  %912 = vmatpush2.msra.mxu0 0.0
  %913 = vmatprep.subr.mxu0 0.0
  %914 = vmatpush2.msra.mxu0 0.0
  %915 = vmatprep.subr.mxu0 0.0
  %916 = vmatpush2.msra.mxu0 0.0
  %917 = vmatprep.subr.mxu0 0.0
  %918 = vmatpush2.msra.mxu0 0.0
  %919 = vmatprep.subr.mxu0 0.0
  %920 = vmatpush2.msra.mxu0 0.0
  %921 = vmatprep.subr.mxu0 0.0
  %922 = vmatpush2.msra.mxu0 0.0
  %923 = vmatprep.subr.mxu0 0.0
  %924 = vmatpush2.msra.mxu0 0.0
  %925 = vmatprep.subr.mxu0 0.0
  %926 = vmatpush2.msra.mxu0 0.0
  %927 = vmatprep.subr.mxu0 0.0
  %928 = vmatpush2.msra.mxu0 0.0
  %929 = vmatprep.subr.mxu0 0.0
  %930 = vmatpush2.msra.mxu0 0.0
  %931 = vmatprep.subr.mxu0 0.0
  %932 = vmatpush2.msra.mxu0 0.0
  %933 = vmatprep.subr.mxu0 0.0
  %934 = vmatpush2.msra.mxu0 0.0
  %935 = vmatprep.subr.mxu0 0.0
  %936 = vmatpush2.msra.mxu0 0.0
  %937 = vmatprep.mubr.f32.mxu0 0.0
  %938 = vmatmul.mubr.f32.gmra.mxu0 %v794
  %v939 = vpop.f32.mrf.mxu0
  %v940 = vadd.f32 %v800, %v939
  %v941 = vpop.f32.mrf.mxu0
  %v942 = vadd.f32 %v801, %v941
  %943 = vdwg.mxu0
  %v944 = vxor.u32 %v869, 2147483648
  %v945 = vmul.f32 %v944, 1.442695
  %v946 = vpow.pop %v945
  %v947 = vadd.f32 %v946, 1.0
  %v948 = vrcp.pop %v947
  %v949 = vmul.f32 1.0, %v948
  %v950 = vxor.u32 %v871, 2147483648
  %v951 = vmul.f32 %v950, 1.442695
  %v952 = vpow.pop %v951
  %v953 = vadd.f32 %v952, 1.0
  %v954 = vrcp.pop %v953
  %v955 = vmul.f32 1.0, %v954
  %v956 = vtanh.pop %v940
  %v957 = vxor.u32 %v942, 2147483648
  %v958 = vmul.f32 %v957, 1.442695
  %v959 = vpow.pop %v958
  %v960 = vadd.f32 %v959, 1.0
  %v961 = vrcp.pop %v960
  %v962 = vmul.f32 1.0, %v961
  %v963 = vmul.f32 %v955, %v792
  %v964 = vmul.f32 %v949, %v956
  %v965 = vadd.f32 %v963, %v964
  %v966 = vtanh.pop %v965
  %v967 = vmul.f32 %v962, %v966
  %s968 = scalar_lea.vmem %s9, 16
  %969 = vst [vmem:[%s968] sm:$0xff] %v967
  %s970 = scalar_lea.vmem [#allocation2], 96
  %v971 = vld [vmem:[%s970] sm:$0xff]
  %v972 = vld [vmem:[%s970 + $0x8] sm:$0xff]
  %v973 = vld [vmem:[%s970 + $0x10] sm:$0xff]
  %v974 = vld [vmem:[%s970 + $0x18] sm:$0xff]
  %975 = vmatprep.subr.mxu0 %v448
  %976 = vmatpush1.msra.mxu0 %v447
  %977 = vmatprep.subr.mxu0 %v444
  %978 = vmatpush1.msra.mxu0 %v443
  %979 = vmatprep.subr.mxu0 %v440
  %980 = vmatpush1.msra.mxu0 %v439
  %981 = vmatprep.subr.mxu0 %v436
  %982 = vmatpush1.msra.mxu0 %v435
  %983 = vmatprep.subr.mxu0 %v432
  %984 = vmatpush1.msra.mxu0 %v431
  %985 = vmatprep.subr.mxu0 %v428
  %986 = vmatpush1.msra.mxu0 %v427
  %987 = vmatprep.subr.mxu0 %v424
  %988 = vmatpush1.msra.mxu0 %v423
  %989 = vmatprep.subr.mxu0 %v420
  %990 = vmatpush1.msra.mxu0 %v419
  %991 = vmatprep.subr.mxu0 %v416
  %992 = vmatpush1.msra.mxu0 %v415
  %993 = vmatprep.subr.mxu0 %v412
  %994 = vmatpush1.msra.mxu0 %v411
  %995 = vmatprep.subr.mxu0 %v408
  %996 = vmatpush1.msra.mxu0 %v407
  %997 = vmatprep.subr.mxu0 %v404
  %998 = vmatpush1.msra.mxu0 %v403
  %999 = vmatprep.subr.mxu0 %v400
  %1000 = vmatpush1.msra.mxu0 %v399
  %1001 = vmatprep.subr.mxu0 %v396
  %1002 = vmatpush1.msra.mxu0 %v395
  %1003 = vmatprep.subr.mxu0 %v392
  %1004 = vmatpush1.msra.mxu0 %v391
  %1005 = vmatprep.subr.mxu0 %v388
  %1006 = vmatpush1.msra.mxu0 %v387
  %1007 = vmatprep.subr.mxu0 0.0
  %1008 = vmatpush2.msra.mxu0 0.0
  %1009 = vmatprep.subr.mxu0 0.0
  %1010 = vmatpush2.msra.mxu0 0.0
  %1011 = vmatprep.subr.mxu0 0.0
  %1012 = vmatpush2.msra.mxu0 0.0
  %1013 = vmatprep.subr.mxu0 0.0
  %1014 = vmatpush2.msra.mxu0 0.0
  %1015 = vmatprep.subr.mxu0 0.0
  %1016 = vmatpush2.msra.mxu0 0.0
  %1017 = vmatprep.subr.mxu0 0.0
  %1018 = vmatpush2.msra.mxu0 0.0
  %1019 = vmatprep.subr.mxu0 0.0
  %1020 = vmatpush2.msra.mxu0 0.0
  %1021 = vmatprep.subr.mxu0 0.0
  %1022 = vmatpush2.msra.mxu0 0.0
  %1023 = vmatprep.subr.mxu0 0.0
  %1024 = vmatpush2.msra.mxu0 0.0
  %1025 = vmatprep.subr.mxu0 0.0
  %1026 = vmatpush2.msra.mxu0 0.0
  %1027 = vmatprep.subr.mxu0 0.0
  %1028 = vmatpush2.msra.mxu0 0.0
  %1029 = vmatprep.subr.mxu0 0.0
  %1030 = vmatpush2.msra.mxu0 0.0
  %1031 = vmatprep.subr.mxu0 0.0
  %1032 = vmatpush2.msra.mxu0 0.0
  %1033 = vmatprep.subr.mxu0 0.0
  %1034 = vmatpush2.msra.mxu0 0.0
  %1035 = vmatprep.subr.mxu0 0.0
  %1036 = vmatpush2.msra.mxu0 0.0
  %1037 = vmatprep.subr.mxu0 0.0
  %1038 = vmatpush2.msra.mxu0 0.0
  %1039 = vmatprep.mubr.f32.mxu0 0.0
  %1040 = vmatmul.mubr.f32.gmra.mxu0 %v967
  %v1041 = vpop.f32.mrf.mxu0
  %v1042 = vadd.f32 %v971, %v1041
  %v1043 = vpop.f32.mrf.mxu0
  %v1044 = vadd.f32 %v972, %v1043
  %1045 = vdwg.mxu0
  %1046 = vmatprep.subr.mxu0 %v450
  %1047 = vmatpush1.msra.mxu0 %v449
  %1048 = vmatprep.subr.mxu0 %v446
  %1049 = vmatpush1.msra.mxu0 %v445
  %1050 = vmatprep.subr.mxu0 %v442
  %1051 = vmatpush1.msra.mxu0 %v441
  %1052 = vmatprep.subr.mxu0 %v438
  %1053 = vmatpush1.msra.mxu0 %v437
  %1054 = vmatprep.subr.mxu0 %v434
  %1055 = vmatpush1.msra.mxu0 %v433
  %1056 = vmatprep.subr.mxu0 %v430
  %1057 = vmatpush1.msra.mxu0 %v429
  %1058 = vmatprep.subr.mxu0 %v426
  %1059 = vmatpush1.msra.mxu0 %v425
  %1060 = vmatprep.subr.mxu0 %v422
  %1061 = vmatpush1.msra.mxu0 %v421
  %1062 = vmatprep.subr.mxu0 %v418
  %1063 = vmatpush1.msra.mxu0 %v417
  %1064 = vmatprep.subr.mxu0 %v414
  %1065 = vmatpush1.msra.mxu0 %v413
  %1066 = vmatprep.subr.mxu0 %v410
  %1067 = vmatpush1.msra.mxu0 %v409
  %1068 = vmatprep.subr.mxu0 %v406
  %1069 = vmatpush1.msra.mxu0 %v405
  %1070 = vmatprep.subr.mxu0 %v402
  %1071 = vmatpush1.msra.mxu0 %v401
  %1072 = vmatprep.subr.mxu0 %v398
  %1073 = vmatpush1.msra.mxu0 %v397
  %1074 = vmatprep.subr.mxu0 %v394
  %1075 = vmatpush1.msra.mxu0 %v393
  %1076 = vmatprep.subr.mxu0 %v390
  %1077 = vmatpush1.msra.mxu0 %v389
  %1078 = vmatprep.subr.mxu0 0.0
  %1079 = vmatpush2.msra.mxu0 0.0
  %1080 = vmatprep.subr.mxu0 0.0
  %1081 = vmatpush2.msra.mxu0 0.0
  %1082 = vmatprep.subr.mxu0 0.0
  %1083 = vmatpush2.msra.mxu0 0.0
  %1084 = vmatprep.subr.mxu0 0.0
  %1085 = vmatpush2.msra.mxu0 0.0
  %1086 = vmatprep.subr.mxu0 0.0
  %1087 = vmatpush2.msra.mxu0 0.0
  %1088 = vmatprep.subr.mxu0 0.0
  %1089 = vmatpush2.msra.mxu0 0.0
  %1090 = vmatprep.subr.mxu0 0.0
  %1091 = vmatpush2.msra.mxu0 0.0
  %1092 = vmatprep.subr.mxu0 0.0
  %1093 = vmatpush2.msra.mxu0 0.0
  %1094 = vmatprep.subr.mxu0 0.0
  %1095 = vmatpush2.msra.mxu0 0.0
  %1096 = vmatprep.subr.mxu0 0.0
  %1097 = vmatpush2.msra.mxu0 0.0
  %1098 = vmatprep.subr.mxu0 0.0
  %1099 = vmatpush2.msra.mxu0 0.0
  %1100 = vmatprep.subr.mxu0 0.0
  %1101 = vmatpush2.msra.mxu0 0.0
  %1102 = vmatprep.subr.mxu0 0.0
  %1103 = vmatpush2.msra.mxu0 0.0
  %1104 = vmatprep.subr.mxu0 0.0
  %1105 = vmatpush2.msra.mxu0 0.0
  %1106 = vmatprep.subr.mxu0 0.0
  %1107 = vmatpush2.msra.mxu0 0.0
  %1108 = vmatprep.subr.mxu0 0.0
  %1109 = vmatpush2.msra.mxu0 0.0
  %1110 = vmatprep.mubr.f32.mxu0 0.0
  %1111 = vmatmul.mubr.f32.gmra.mxu0 %v967
  %v1112 = vpop.f32.mrf.mxu0
  %v1113 = vadd.f32 %v973, %v1112
  %v1114 = vpop.f32.mrf.mxu0
  %v1115 = vadd.f32 %v974, %v1114
  %1116 = vdwg.mxu0
  %v1117 = vxor.u32 %v1042, 2147483648
  %v1118 = vmul.f32 %v1117, 1.442695
  %v1119 = vpow.pop %v1118
  %v1120 = vadd.f32 %v1119, 1.0
  %v1121 = vrcp.pop %v1120
  %v1122 = vmul.f32 1.0, %v1121
  %v1123 = vxor.u32 %v1044, 2147483648
  %v1124 = vmul.f32 %v1123, 1.442695
  %v1125 = vpow.pop %v1124
  %v1126 = vadd.f32 %v1125, 1.0
  %v1127 = vrcp.pop %v1126
  %v1128 = vmul.f32 1.0, %v1127
  %v1129 = vtanh.pop %v1113
  %v1130 = vxor.u32 %v1115, 2147483648
  %v1131 = vmul.f32 %v1130, 1.442695
  %v1132 = vpow.pop %v1131
  %v1133 = vadd.f32 %v1132, 1.0
  %v1134 = vrcp.pop %v1133
  %v1135 = vmul.f32 1.0, %v1134
  %v1136 = vmul.f32 %v1128, %v965
  %v1137 = vmul.f32 %v1122, %v1129
  %v1138 = vadd.f32 %v1136, %v1137
  %v1139 = vtanh.pop %v1138
  %v1140 = vmul.f32 %v1135, %v1139
  %s1141 = scalar_lea.vmem %s9, 24
  %1142 = vst [vmem:[%s1141] sm:$0xff] %v1140
  %s1143 = scalar_lea.vmem [#allocation2], 128
  %v1144 = vld [vmem:[%s1143] sm:$0xff]
  %v1145 = vld [vmem:[%s1143 + $0x8] sm:$0xff]
  %v1146 = vld [vmem:[%s1143 + $0x10] sm:$0xff]
  %v1147 = vld [vmem:[%s1143 + $0x18] sm:$0xff]
  %1148 = vmatprep.subr.mxu0 %v448
  %1149 = vmatpush1.msra.mxu0 %v447
  %1150 = vmatprep.subr.mxu0 %v444
  %1151 = vmatpush1.msra.mxu0 %v443
  %1152 = vmatprep.subr.mxu0 %v440
  %1153 = vmatpush1.msra.mxu0 %v439
  %1154 = vmatprep.subr.mxu0 %v436
  %1155 = vmatpush1.msra.mxu0 %v435
  %1156 = vmatprep.subr.mxu0 %v432
  %1157 = vmatpush1.msra.mxu0 %v431
  %1158 = vmatprep.subr.mxu0 %v428
  %1159 = vmatpush1.msra.mxu0 %v427
  %1160 = vmatprep.subr.mxu0 %v424
  %1161 = vmatpush1.msra.mxu0 %v423
  %1162 = vmatprep.subr.mxu0 %v420
  %1163 = vmatpush1.msra.mxu0 %v419
  %1164 = vmatprep.subr.mxu0 %v416
  %1165 = vmatpush1.msra.mxu0 %v415
  %1166 = vmatprep.subr.mxu0 %v412
  %1167 = vmatpush1.msra.mxu0 %v411
  %1168 = vmatprep.subr.mxu0 %v408
  %1169 = vmatpush1.msra.mxu0 %v407
  %1170 = vmatprep.subr.mxu0 %v404
  %1171 = vmatpush1.msra.mxu0 %v403
  %1172 = vmatprep.subr.mxu0 %v400
  %1173 = vmatpush1.msra.mxu0 %v399
  %1174 = vmatprep.subr.mxu0 %v396
  %1175 = vmatpush1.msra.mxu0 %v395
  %1176 = vmatprep.subr.mxu0 %v392
  %1177 = vmatpush1.msra.mxu0 %v391
  %1178 = vmatprep.subr.mxu0 %v388
  %1179 = vmatpush1.msra.mxu0 %v387
  %1180 = vmatprep.subr.mxu0 0.0
  %1181 = vmatpush2.msra.mxu0 0.0
  %1182 = vmatprep.subr.mxu0 0.0
  %1183 = vmatpush2.msra.mxu0 0.0
  %1184 = vmatprep.subr.mxu0 0.0
  %1185 = vmatpush2.msra.mxu0 0.0
  %1186 = vmatprep.subr.mxu0 0.0
  %1187 = vmatpush2.msra.mxu0 0.0
  %1188 = vmatprep.subr.mxu0 0.0
  %1189 = vmatpush2.msra.mxu0 0.0
  %1190 = vmatprep.subr.mxu0 0.0
  %1191 = vmatpush2.msra.mxu0 0.0
  %1192 = vmatprep.subr.mxu0 0.0
  %1193 = vmatpush2.msra.mxu0 0.0
  %1194 = vmatprep.subr.mxu0 0.0
  %1195 = vmatpush2.msra.mxu0 0.0
  %1196 = vmatprep.subr.mxu0 0.0
  %1197 = vmatpush2.msra.mxu0 0.0
  %1198 = vmatprep.subr.mxu0 0.0
  %1199 = vmatpush2.msra.mxu0 0.0
  %1200 = vmatprep.subr.mxu0 0.0
  %1201 = vmatpush2.msra.mxu0 0.0
  %1202 = vmatprep.subr.mxu0 0.0
  %1203 = vmatpush2.msra.mxu0 0.0
  %1204 = vmatprep.subr.mxu0 0.0
  %1205 = vmatpush2.msra.mxu0 0.0
  %1206 = vmatprep.subr.mxu0 0.0
  %1207 = vmatpush2.msra.mxu0 0.0
  %1208 = vmatprep.subr.mxu0 0.0
  %1209 = vmatpush2.msra.mxu0 0.0
  %1210 = vmatprep.subr.mxu0 0.0
  %1211 = vmatpush2.msra.mxu0 0.0
  %1212 = vmatprep.mubr.f32.mxu0 0.0
  %1213 = vmatmul.mubr.f32.gmra.mxu0 %v1140
  %v1214 = vpop.f32.mrf.mxu0
  %v1215 = vadd.f32 %v1144, %v1214
  %v1216 = vpop.f32.mrf.mxu0
  %v1217 = vadd.f32 %v1145, %v1216
  %1218 = vdwg.mxu0
  %1219 = vmatprep.subr.mxu0 %v450
  %1220 = vmatpush1.msra.mxu0 %v449
  %1221 = vmatprep.subr.mxu0 %v446
  %1222 = vmatpush1.msra.mxu0 %v445
  %1223 = vmatprep.subr.mxu0 %v442
  %1224 = vmatpush1.msra.mxu0 %v441
  %1225 = vmatprep.subr.mxu0 %v438
  %1226 = vmatpush1.msra.mxu0 %v437
  %1227 = vmatprep.subr.mxu0 %v434
  %1228 = vmatpush1.msra.mxu0 %v433
  %1229 = vmatprep.subr.mxu0 %v430
  %1230 = vmatpush1.msra.mxu0 %v429
  %1231 = vmatprep.subr.mxu0 %v426
  %1232 = vmatpush1.msra.mxu0 %v425
  %1233 = vmatprep.subr.mxu0 %v422
  %1234 = vmatpush1.msra.mxu0 %v421
  %1235 = vmatprep.subr.mxu0 %v418
  %1236 = vmatpush1.msra.mxu0 %v417
  %1237 = vmatprep.subr.mxu0 %v414
  %1238 = vmatpush1.msra.mxu0 %v413
  %1239 = vmatprep.subr.mxu0 %v410
  %1240 = vmatpush1.msra.mxu0 %v409
  %1241 = vmatprep.subr.mxu0 %v406
  %1242 = vmatpush1.msra.mxu0 %v405
  %1243 = vmatprep.subr.mxu0 %v402
  %1244 = vmatpush1.msra.mxu0 %v401
  %1245 = vmatprep.subr.mxu0 %v398
  %1246 = vmatpush1.msra.mxu0 %v397
  %1247 = vmatprep.subr.mxu0 %v394
  %1248 = vmatpush1.msra.mxu0 %v393
  %1249 = vmatprep.subr.mxu0 %v390
  %1250 = vmatpush1.msra.mxu0 %v389
  %1251 = vmatprep.subr.mxu0 0.0
  %1252 = vmatpush2.msra.mxu0 0.0
  %1253 = vmatprep.subr.mxu0 0.0
  %1254 = vmatpush2.msra.mxu0 0.0
  %1255 = vmatprep.subr.mxu0 0.0
  %1256 = vmatpush2.msra.mxu0 0.0
  %1257 = vmatprep.subr.mxu0 0.0
  %1258 = vmatpush2.msra.mxu0 0.0
  %1259 = vmatprep.subr.mxu0 0.0
  %1260 = vmatpush2.msra.mxu0 0.0
  %1261 = vmatprep.subr.mxu0 0.0
  %1262 = vmatpush2.msra.mxu0 0.0
  %1263 = vmatprep.subr.mxu0 0.0
  %1264 = vmatpush2.msra.mxu0 0.0
  %1265 = vmatprep.subr.mxu0 0.0
  %1266 = vmatpush2.msra.mxu0 0.0
  %1267 = vmatprep.subr.mxu0 0.0
  %1268 = vmatpush2.msra.mxu0 0.0
  %1269 = vmatprep.subr.mxu0 0.0
  %1270 = vmatpush2.msra.mxu0 0.0
  %1271 = vmatprep.subr.mxu0 0.0
  %1272 = vmatpush2.msra.mxu0 0.0
  %1273 = vmatprep.subr.mxu0 0.0
  %1274 = vmatpush2.msra.mxu0 0.0
  %1275 = vmatprep.subr.mxu0 0.0
  %1276 = vmatpush2.msra.mxu0 0.0
  %1277 = vmatprep.subr.mxu0 0.0
  %1278 = vmatpush2.msra.mxu0 0.0
  %1279 = vmatprep.subr.mxu0 0.0
  %1280 = vmatpush2.msra.mxu0 0.0
  %1281 = vmatprep.subr.mxu0 0.0
  %1282 = vmatpush2.msra.mxu0 0.0
  %1283 = vmatprep.mubr.f32.mxu0 0.0
  %1284 = vmatmul.mubr.f32.gmra.mxu0 %v1140
  %v1285 = vpop.f32.mrf.mxu0
  %v1286 = vadd.f32 %v1146, %v1285
  %v1287 = vpop.f32.mrf.mxu0
  %v1288 = vadd.f32 %v1147, %v1287
  %1289 = vdwg.mxu0
  %v1290 = vxor.u32 %v1215, 2147483648
  %v1291 = vmul.f32 %v1290, 1.442695
  %v1292 = vpow.pop %v1291
  %v1293 = vadd.f32 %v1292, 1.0
  %v1294 = vrcp.pop %v1293
  %v1295 = vmul.f32 1.0, %v1294
  %v1296 = vxor.u32 %v1217, 2147483648
  %v1297 = vmul.f32 %v1296, 1.442695
  %v1298 = vpow.pop %v1297
  %v1299 = vadd.f32 %v1298, 1.0
  %v1300 = vrcp.pop %v1299
  %v1301 = vmul.f32 1.0, %v1300
  %v1302 = vtanh.pop %v1286
  %v1303 = vxor.u32 %v1288, 2147483648
  %v1304 = vmul.f32 %v1303, 1.442695
  %v1305 = vpow.pop %v1304
  %v1306 = vadd.f32 %v1305, 1.0
  %v1307 = vrcp.pop %v1306
  %v1308 = vmul.f32 1.0, %v1307
  %v1309 = vmul.f32 %v1301, %v1138
  %v1310 = vmul.f32 %v1295, %v1302
  %v1311 = vadd.f32 %v1309, %v1310
  %v1312 = vtanh.pop %v1311
  %v1313 = vmul.f32 %v1308, %v1312
  %s1314 = scalar_lea.vmem %s9, 32
  %1315 = vst [vmem:[%s1314] sm:$0xff] %v1313
  %s1316 = scalar_lea.vmem [#allocation2], 160
  %v1317 = vld [vmem:[%s1316] sm:$0xff]
  %v1318 = vld [vmem:[%s1316 + $0x8] sm:$0xff]
  %v1319 = vld [vmem:[%s1316 + $0x10] sm:$0xff]
  %v1320 = vld [vmem:[%s1316 + $0x18] sm:$0xff]
  %1321 = vmatprep.subr.mxu0 %v448
  %1322 = vmatpush1.msra.mxu0 %v447
  %1323 = vmatprep.subr.mxu0 %v444
  %1324 = vmatpush1.msra.mxu0 %v443
  %1325 = vmatprep.subr.mxu0 %v440
  %1326 = vmatpush1.msra.mxu0 %v439
  %1327 = vmatprep.subr.mxu0 %v436
  %1328 = vmatpush1.msra.mxu0 %v435
  %1329 = vmatprep.subr.mxu0 %v432
  %1330 = vmatpush1.msra.mxu0 %v431
  %1331 = vmatprep.subr.mxu0 %v428
  %1332 = vmatpush1.msra.mxu0 %v427
  %1333 = vmatprep.subr.mxu0 %v424
  %1334 = vmatpush1.msra.mxu0 %v423
  %1335 = vmatprep.subr.mxu0 %v420
  %1336 = vmatpush1.msra.mxu0 %v419
  %1337 = vmatprep.subr.mxu0 %v416
  %1338 = vmatpush1.msra.mxu0 %v415
  %1339 = vmatprep.subr.mxu0 %v412
  %1340 = vmatpush1.msra.mxu0 %v411
  %1341 = vmatprep.subr.mxu0 %v408
  %1342 = vmatpush1.msra.mxu0 %v407
  %1343 = vmatprep.subr.mxu0 %v404
  %1344 = vmatpush1.msra.mxu0 %v403
  %1345 = vmatprep.subr.mxu0 %v400
  %1346 = vmatpush1.msra.mxu0 %v399
  %1347 = vmatprep.subr.mxu0 %v396
  %1348 = vmatpush1.msra.mxu0 %v395
  %1349 = vmatprep.subr.mxu0 %v392
  %1350 = vmatpush1.msra.mxu0 %v391
  %1351 = vmatprep.subr.mxu0 %v388
  %1352 = vmatpush1.msra.mxu0 %v387
  %1353 = vmatprep.subr.mxu0 0.0
  %1354 = vmatpush2.msra.mxu0 0.0
  %1355 = vmatprep.subr.mxu0 0.0
  %1356 = vmatpush2.msra.mxu0 0.0
  %1357 = vmatprep.subr.mxu0 0.0
  %1358 = vmatpush2.msra.mxu0 0.0
  %1359 = vmatprep.subr.mxu0 0.0
  %1360 = vmatpush2.msra.mxu0 0.0
  %1361 = vmatprep.subr.mxu0 0.0
  %1362 = vmatpush2.msra.mxu0 0.0
  %1363 = vmatprep.subr.mxu0 0.0
  %1364 = vmatpush2.msra.mxu0 0.0
  %1365 = vmatprep.subr.mxu0 0.0
  %1366 = vmatpush2.msra.mxu0 0.0
  %1367 = vmatprep.subr.mxu0 0.0
  %1368 = vmatpush2.msra.mxu0 0.0
  %1369 = vmatprep.subr.mxu0 0.0
  %1370 = vmatpush2.msra.mxu0 0.0
  %1371 = vmatprep.subr.mxu0 0.0
  %1372 = vmatpush2.msra.mxu0 0.0
  %1373 = vmatprep.subr.mxu0 0.0
  %1374 = vmatpush2.msra.mxu0 0.0
  %1375 = vmatprep.subr.mxu0 0.0
  %1376 = vmatpush2.msra.mxu0 0.0
  %1377 = vmatprep.subr.mxu0 0.0
  %1378 = vmatpush2.msra.mxu0 0.0
  %1379 = vmatprep.subr.mxu0 0.0
  %1380 = vmatpush2.msra.mxu0 0.0
  %1381 = vmatprep.subr.mxu0 0.0
  %1382 = vmatpush2.msra.mxu0 0.0
  %1383 = vmatprep.subr.mxu0 0.0
  %1384 = vmatpush2.msra.mxu0 0.0
  %1385 = vmatprep.mubr.f32.mxu0 0.0
  %1386 = vmatmul.mubr.f32.gmra.mxu0 %v1313
  %v1387 = vpop.f32.mrf.mxu0
  %v1388 = vadd.f32 %v1317, %v1387
  %v1389 = vpop.f32.mrf.mxu0
  %v1390 = vadd.f32 %v1318, %v1389
  %1391 = vdwg.mxu0
  %1392 = vmatprep.subr.mxu0 %v450
  %1393 = vmatpush1.msra.mxu0 %v449
  %1394 = vmatprep.subr.mxu0 %v446
  %1395 = vmatpush1.msra.mxu0 %v445
  %1396 = vmatprep.subr.mxu0 %v442
  %1397 = vmatpush1.msra.mxu0 %v441
  %1398 = vmatprep.subr.mxu0 %v438
  %1399 = vmatpush1.msra.mxu0 %v437
  %1400 = vmatprep.subr.mxu0 %v434
  %1401 = vmatpush1.msra.mxu0 %v433
  %1402 = vmatprep.subr.mxu0 %v430
  %1403 = vmatpush1.msra.mxu0 %v429
  %1404 = vmatprep.subr.mxu0 %v426
  %1405 = vmatpush1.msra.mxu0 %v425
  %1406 = vmatprep.subr.mxu0 %v422
  %1407 = vmatpush1.msra.mxu0 %v421
  %1408 = vmatprep.subr.mxu0 %v418
  %1409 = vmatpush1.msra.mxu0 %v417
  %1410 = vmatprep.subr.mxu0 %v414
  %1411 = vmatpush1.msra.mxu0 %v413
  %1412 = vmatprep.subr.mxu0 %v410
  %1413 = vmatpush1.msra.mxu0 %v409
  %1414 = vmatprep.subr.mxu0 %v406
  %1415 = vmatpush1.msra.mxu0 %v405
  %1416 = vmatprep.subr.mxu0 %v402
  %1417 = vmatpush1.msra.mxu0 %v401
  %1418 = vmatprep.subr.mxu0 %v398
  %1419 = vmatpush1.msra.mxu0 %v397
  %1420 = vmatprep.subr.mxu0 %v394
  %1421 = vmatpush1.msra.mxu0 %v393
  %1422 = vmatprep.subr.mxu0 %v390
  %1423 = vmatpush1.msra.mxu0 %v389
  %1424 = vmatprep.subr.mxu0 0.0
  %1425 = vmatpush2.msra.mxu0 0.0
  %1426 = vmatprep.subr.mxu0 0.0
  %1427 = vmatpush2.msra.mxu0 0.0
  %1428 = vmatprep.subr.mxu0 0.0
  %1429 = vmatpush2.msra.mxu0 0.0
  %1430 = vmatprep.subr.mxu0 0.0
  %1431 = vmatpush2.msra.mxu0 0.0
  %1432 = vmatprep.subr.mxu0 0.0
  %1433 = vmatpush2.msra.mxu0 0.0
  %1434 = vmatprep.subr.mxu0 0.0
  %1435 = vmatpush2.msra.mxu0 0.0
  %1436 = vmatprep.subr.mxu0 0.0
  %1437 = vmatpush2.msra.mxu0 0.0
  %1438 = vmatprep.subr.mxu0 0.0
  %1439 = vmatpush2.msra.mxu0 0.0
  %1440 = vmatprep.subr.mxu0 0.0
  %1441 = vmatpush2.msra.mxu0 0.0
  %1442 = vmatprep.subr.mxu0 0.0
  %1443 = vmatpush2.msra.mxu0 0.0
  %1444 = vmatprep.subr.mxu0 0.0
  %1445 = vmatpush2.msra.mxu0 0.0
  %1446 = vmatprep.subr.mxu0 0.0
  %1447 = vmatpush2.msra.mxu0 0.0
  %1448 = vmatprep.subr.mxu0 0.0
  %1449 = vmatpush2.msra.mxu0 0.0
  %1450 = vmatprep.subr.mxu0 0.0
  %1451 = vmatpush2.msra.mxu0 0.0
  %1452 = vmatprep.subr.mxu0 0.0
  %1453 = vmatpush2.msra.mxu0 0.0
  %1454 = vmatprep.subr.mxu0 0.0
  %1455 = vmatpush2.msra.mxu0 0.0
  %1456 = vmatprep.mubr.f32.mxu0 0.0
  %1457 = vmatmul.mubr.f32.gmra.mxu0 %v1313
  %v1458 = vpop.f32.mrf.mxu0
  %v1459 = vadd.f32 %v1319, %v1458
  %v1460 = vpop.f32.mrf.mxu0
  %v1461 = vadd.f32 %v1320, %v1460
  %1462 = vdwg.mxu0
  %v1463 = vxor.u32 %v1388, 2147483648
  %v1464 = vmul.f32 %v1463, 1.442695
  %v1465 = vpow.pop %v1464
  %v1466 = vadd.f32 %v1465, 1.0
  %v1467 = vrcp.pop %v1466
  %v1468 = vmul.f32 1.0, %v1467
  %v1469 = vxor.u32 %v1390, 2147483648
  %v1470 = vmul.f32 %v1469, 1.442695
  %v1471 = vpow.pop %v1470
  %v1472 = vadd.f32 %v1471, 1.0
  %v1473 = vrcp.pop %v1472
  %v1474 = vmul.f32 1.0, %v1473
  %v1475 = vtanh.pop %v1459
  %v1476 = vxor.u32 %v1461, 2147483648
  %v1477 = vmul.f32 %v1476, 1.442695
  %v1478 = vpow.pop %v1477
  %v1479 = vadd.f32 %v1478, 1.0
  %v1480 = vrcp.pop %v1479
  %v1481 = vmul.f32 1.0, %v1480
  %v1482 = vmul.f32 %v1474, %v1311
  %v1483 = vmul.f32 %v1468, %v1475
  %v1484 = vadd.f32 %v1482, %v1483
  %v1485 = vtanh.pop %v1484
  %v1486 = vmul.f32 %v1481, %v1485
  %s1487 = scalar_lea.vmem %s9, 40
  %1488 = vst [vmem:[%s1487] sm:$0xff] %v1486
  %s1489 = scalar_lea.vmem [#allocation2], 192
  %v1490 = vld [vmem:[%s1489] sm:$0xff]
  %v1491 = vld [vmem:[%s1489 + $0x8] sm:$0xff]
  %v1492 = vld [vmem:[%s1489 + $0x10] sm:$0xff]
  %v1493 = vld [vmem:[%s1489 + $0x18] sm:$0xff]
  %1494 = vmatprep.subr.mxu0 %v448
  %1495 = vmatpush1.msra.mxu0 %v447
  %1496 = vmatprep.subr.mxu0 %v444
  %1497 = vmatpush1.msra.mxu0 %v443
  %1498 = vmatprep.subr.mxu0 %v440
  %1499 = vmatpush1.msra.mxu0 %v439
  %1500 = vmatprep.subr.mxu0 %v436
  %1501 = vmatpush1.msra.mxu0 %v435
  %1502 = vmatprep.subr.mxu0 %v432
  %1503 = vmatpush1.msra.mxu0 %v431
  %1504 = vmatprep.subr.mxu0 %v428
  %1505 = vmatpush1.msra.mxu0 %v427
  %1506 = vmatprep.subr.mxu0 %v424
  %1507 = vmatpush1.msra.mxu0 %v423
  %1508 = vmatprep.subr.mxu0 %v420
  %1509 = vmatpush1.msra.mxu0 %v419
  %1510 = vmatprep.subr.mxu0 %v416
  %1511 = vmatpush1.msra.mxu0 %v415
  %1512 = vmatprep.subr.mxu0 %v412
  %1513 = vmatpush1.msra.mxu0 %v411
  %1514 = vmatprep.subr.mxu0 %v408
  %1515 = vmatpush1.msra.mxu0 %v407
  %1516 = vmatprep.subr.mxu0 %v404
  %1517 = vmatpush1.msra.mxu0 %v403
  %1518 = vmatprep.subr.mxu0 %v400
  %1519 = vmatpush1.msra.mxu0 %v399
  %1520 = vmatprep.subr.mxu0 %v396
  %1521 = vmatpush1.msra.mxu0 %v395
  %1522 = vmatprep.subr.mxu0 %v392
  %1523 = vmatpush1.msra.mxu0 %v391
  %1524 = vmatprep.subr.mxu0 %v388
  %1525 = vmatpush1.msra.mxu0 %v387
  %1526 = vmatprep.subr.mxu0 0.0
  %1527 = vmatpush2.msra.mxu0 0.0
  %1528 = vmatprep.subr.mxu0 0.0
  %1529 = vmatpush2.msra.mxu0 0.0
  %1530 = vmatprep.subr.mxu0 0.0
  %1531 = vmatpush2.msra.mxu0 0.0
  %1532 = vmatprep.subr.mxu0 0.0
  %1533 = vmatpush2.msra.mxu0 0.0
  %1534 = vmatprep.subr.mxu0 0.0
  %1535 = vmatpush2.msra.mxu0 0.0
  %1536 = vmatprep.subr.mxu0 0.0
  %1537 = vmatpush2.msra.mxu0 0.0
  %1538 = vmatprep.subr.mxu0 0.0
  %1539 = vmatpush2.msra.mxu0 0.0
  %1540 = vmatprep.subr.mxu0 0.0
  %1541 = vmatpush2.msra.mxu0 0.0
  %1542 = vmatprep.subr.mxu0 0.0
  %1543 = vmatpush2.msra.mxu0 0.0
  %1544 = vmatprep.subr.mxu0 0.0
  %1545 = vmatpush2.msra.mxu0 0.0
  %1546 = vmatprep.subr.mxu0 0.0
  %1547 = vmatpush2.msra.mxu0 0.0
  %1548 = vmatprep.subr.mxu0 0.0
  %1549 = vmatpush2.msra.mxu0 0.0
  %1550 = vmatprep.subr.mxu0 0.0
  %1551 = vmatpush2.msra.mxu0 0.0
  %1552 = vmatprep.subr.mxu0 0.0
  %1553 = vmatpush2.msra.mxu0 0.0
  %1554 = vmatprep.subr.mxu0 0.0
  %1555 = vmatpush2.msra.mxu0 0.0
  %1556 = vmatprep.subr.mxu0 0.0
  %1557 = vmatpush2.msra.mxu0 0.0
  %1558 = vmatprep.mubr.f32.mxu0 0.0
  %1559 = vmatmul.mubr.f32.gmra.mxu0 %v1486
  %v1560 = vpop.f32.mrf.mxu0
  %v1561 = vadd.f32 %v1490, %v1560
  %v1562 = vpop.f32.mrf.mxu0
  %v1563 = vadd.f32 %v1491, %v1562
  %1564 = vdwg.mxu0
  %1565 = vmatprep.subr.mxu0 %v450
  %1566 = vmatpush1.msra.mxu0 %v449
  %1567 = vmatprep.subr.mxu0 %v446
  %1568 = vmatpush1.msra.mxu0 %v445
  %1569 = vmatprep.subr.mxu0 %v442
  %1570 = vmatpush1.msra.mxu0 %v441
  %1571 = vmatprep.subr.mxu0 %v438
  %1572 = vmatpush1.msra.mxu0 %v437
  %1573 = vmatprep.subr.mxu0 %v434
  %1574 = vmatpush1.msra.mxu0 %v433
  %1575 = vmatprep.subr.mxu0 %v430
  %1576 = vmatpush1.msra.mxu0 %v429
  %1577 = vmatprep.subr.mxu0 %v426
  %1578 = vmatpush1.msra.mxu0 %v425
  %1579 = vmatprep.subr.mxu0 %v422
  %1580 = vmatpush1.msra.mxu0 %v421
  %1581 = vmatprep.subr.mxu0 %v418
  %1582 = vmatpush1.msra.mxu0 %v417
  %1583 = vmatprep.subr.mxu0 %v414
  %1584 = vmatpush1.msra.mxu0 %v413
  %1585 = vmatprep.subr.mxu0 %v410
  %1586 = vmatpush1.msra.mxu0 %v409
  %1587 = vmatprep.subr.mxu0 %v406
  %1588 = vmatpush1.msra.mxu0 %v405
  %1589 = vmatprep.subr.mxu0 %v402
  %1590 = vmatpush1.msra.mxu0 %v401
  %1591 = vmatprep.subr.mxu0 %v398
  %1592 = vmatpush1.msra.mxu0 %v397
  %1593 = vmatprep.subr.mxu0 %v394
  %1594 = vmatpush1.msra.mxu0 %v393
  %1595 = vmatprep.subr.mxu0 %v390
  %1596 = vmatpush1.msra.mxu0 %v389
  %1597 = vmatprep.subr.mxu0 0.0
  %1598 = vmatpush2.msra.mxu0 0.0
  %1599 = vmatprep.subr.mxu0 0.0
  %1600 = vmatpush2.msra.mxu0 0.0
  %1601 = vmatprep.subr.mxu0 0.0
  %1602 = vmatpush2.msra.mxu0 0.0
  %1603 = vmatprep.subr.mxu0 0.0
  %1604 = vmatpush2.msra.mxu0 0.0
  %1605 = vmatprep.subr.mxu0 0.0
  %1606 = vmatpush2.msra.mxu0 0.0
  %1607 = vmatprep.subr.mxu0 0.0
  %1608 = vmatpush2.msra.mxu0 0.0
  %1609 = vmatprep.subr.mxu0 0.0
  %1610 = vmatpush2.msra.mxu0 0.0
  %1611 = vmatprep.subr.mxu0 0.0
  %1612 = vmatpush2.msra.mxu0 0.0
  %1613 = vmatprep.subr.mxu0 0.0
  %1614 = vmatpush2.msra.mxu0 0.0
  %1615 = vmatprep.subr.mxu0 0.0
  %1616 = vmatpush2.msra.mxu0 0.0
  %1617 = vmatprep.subr.mxu0 0.0
  %1618 = vmatpush2.msra.mxu0 0.0
  %1619 = vmatprep.subr.mxu0 0.0
  %1620 = vmatpush2.msra.mxu0 0.0
  %1621 = vmatprep.subr.mxu0 0.0
  %1622 = vmatpush2.msra.mxu0 0.0
  %1623 = vmatprep.subr.mxu0 0.0
  %1624 = vmatpush2.msra.mxu0 0.0
  %1625 = vmatprep.subr.mxu0 0.0
  %1626 = vmatpush2.msra.mxu0 0.0
  %1627 = vmatprep.subr.mxu0 0.0
  %1628 = vmatpush2.msra.mxu0 0.0
  %1629 = vmatprep.mubr.f32.mxu0 0.0
  %1630 = vmatmul.mubr.f32.gmra.mxu0 %v1486
  %v1631 = vpop.f32.mrf.mxu0
  %v1632 = vadd.f32 %v1492, %v1631
  %v1633 = vpop.f32.mrf.mxu0
  %v1634 = vadd.f32 %v1493, %v1633
  %1635 = vdwg.mxu0
  %v1636 = vxor.u32 %v1561, 2147483648
  %v1637 = vmul.f32 %v1636, 1.442695
  %v1638 = vpow.pop %v1637
  %v1639 = vadd.f32 %v1638, 1.0
  %v1640 = vrcp.pop %v1639
  %v1641 = vmul.f32 1.0, %v1640
  %v1642 = vxor.u32 %v1563, 2147483648
  %v1643 = vmul.f32 %v1642, 1.442695
  %v1644 = vpow.pop %v1643
  %v1645 = vadd.f32 %v1644, 1.0
  %v1646 = vrcp.pop %v1645
  %v1647 = vmul.f32 1.0, %v1646
  %v1648 = vtanh.pop %v1632
  %v1649 = vxor.u32 %v1634, 2147483648
  %v1650 = vmul.f32 %v1649, 1.442695
  %v1651 = vpow.pop %v1650
  %v1652 = vadd.f32 %v1651, 1.0
  %v1653 = vrcp.pop %v1652
  %v1654 = vmul.f32 1.0, %v1653
  %v1655 = vmul.f32 %v1647, %v1484
  %v1656 = vmul.f32 %v1641, %v1648
  %v1657 = vadd.f32 %v1655, %v1656
  %v1658 = vtanh.pop %v1657
  %v1659 = vmul.f32 %v1654, %v1658
  %s1660 = scalar_lea.vmem %s9, 48
  %1661 = vst [vmem:[%s1660] sm:$0xff] %v1659
  %s1662 = scalar_lea.vmem [#allocation2], 224
  %v1663 = vld [vmem:[%s1662] sm:$0xff]
  %v1664 = vld [vmem:[%s1662 + $0x8] sm:$0xff]
  %v1665 = vld [vmem:[%s1662 + $0x10] sm:$0xff]
  %v1666 = vld [vmem:[%s1662 + $0x18] sm:$0xff]
  %1667 = vmatprep.subr.mxu0 %v448
  %1668 = vmatpush1.msra.mxu0 %v447
  %1669 = vmatprep.subr.mxu0 %v444
  %1670 = vmatpush1.msra.mxu0 %v443
  %1671 = vmatprep.subr.mxu0 %v440
  %1672 = vmatpush1.msra.mxu0 %v439
  %1673 = vmatprep.subr.mxu0 %v436
  %1674 = vmatpush1.msra.mxu0 %v435
  %1675 = vmatprep.subr.mxu0 %v432
  %1676 = vmatpush1.msra.mxu0 %v431
  %1677 = vmatprep.subr.mxu0 %v428
  %1678 = vmatpush1.msra.mxu0 %v427
  %1679 = vmatprep.subr.mxu0 %v424
  %1680 = vmatpush1.msra.mxu0 %v423
  %1681 = vmatprep.subr.mxu0 %v420
  %1682 = vmatpush1.msra.mxu0 %v419
  %1683 = vmatprep.subr.mxu0 %v416
  %1684 = vmatpush1.msra.mxu0 %v415
  %1685 = vmatprep.subr.mxu0 %v412
  %1686 = vmatpush1.msra.mxu0 %v411
  %1687 = vmatprep.subr.mxu0 %v408
  %1688 = vmatpush1.msra.mxu0 %v407
  %1689 = vmatprep.subr.mxu0 %v404
  %1690 = vmatpush1.msra.mxu0 %v403
  %1691 = vmatprep.subr.mxu0 %v400
  %1692 = vmatpush1.msra.mxu0 %v399
  %1693 = vmatprep.subr.mxu0 %v396
  %1694 = vmatpush1.msra.mxu0 %v395
  %1695 = vmatprep.subr.mxu0 %v392
  %1696 = vmatpush1.msra.mxu0 %v391
  %1697 = vmatprep.subr.mxu0 %v388
  %1698 = vmatpush1.msra.mxu0 %v387
  %1699 = vmatprep.subr.mxu0 0.0
  %1700 = vmatpush2.msra.mxu0 0.0
  %1701 = vmatprep.subr.mxu0 0.0
  %1702 = vmatpush2.msra.mxu0 0.0
  %1703 = vmatprep.subr.mxu0 0.0
  %1704 = vmatpush2.msra.mxu0 0.0
  %1705 = vmatprep.subr.mxu0 0.0
  %1706 = vmatpush2.msra.mxu0 0.0
  %1707 = vmatprep.subr.mxu0 0.0
  %1708 = vmatpush2.msra.mxu0 0.0
  %1709 = vmatprep.subr.mxu0 0.0
  %1710 = vmatpush2.msra.mxu0 0.0
  %1711 = vmatprep.subr.mxu0 0.0
  %1712 = vmatpush2.msra.mxu0 0.0
  %1713 = vmatprep.subr.mxu0 0.0
  %1714 = vmatpush2.msra.mxu0 0.0
  %1715 = vmatprep.subr.mxu0 0.0
  %1716 = vmatpush2.msra.mxu0 0.0
  %1717 = vmatprep.subr.mxu0 0.0
  %1718 = vmatpush2.msra.mxu0 0.0
  %1719 = vmatprep.subr.mxu0 0.0
  %1720 = vmatpush2.msra.mxu0 0.0
  %1721 = vmatprep.subr.mxu0 0.0
  %1722 = vmatpush2.msra.mxu0 0.0
  %1723 = vmatprep.subr.mxu0 0.0
  %1724 = vmatpush2.msra.mxu0 0.0
  %1725 = vmatprep.subr.mxu0 0.0
  %1726 = vmatpush2.msra.mxu0 0.0
  %1727 = vmatprep.subr.mxu0 0.0
  %1728 = vmatpush2.msra.mxu0 0.0
  %1729 = vmatprep.subr.mxu0 0.0
  %1730 = vmatpush2.msra.mxu0 0.0
  %1731 = vmatprep.mubr.f32.mxu0 0.0
  %1732 = vmatmul.mubr.f32.gmra.mxu0 %v1659
  %v1733 = vpop.f32.mrf.mxu0
  %v1734 = vadd.f32 %v1663, %v1733
  %v1735 = vpop.f32.mrf.mxu0
  %v1736 = vadd.f32 %v1664, %v1735
  %1737 = vdwg.mxu0
  %1738 = vmatprep.subr.mxu0 %v450
  %1739 = vmatpush1.msra.mxu0 %v449
  %1740 = vmatprep.subr.mxu0 %v446
  %1741 = vmatpush1.msra.mxu0 %v445
  %1742 = vmatprep.subr.mxu0 %v442
  %1743 = vmatpush1.msra.mxu0 %v441
  %1744 = vmatprep.subr.mxu0 %v438
  %1745 = vmatpush1.msra.mxu0 %v437
  %1746 = vmatprep.subr.mxu0 %v434
  %1747 = vmatpush1.msra.mxu0 %v433
  %1748 = vmatprep.subr.mxu0 %v430
  %1749 = vmatpush1.msra.mxu0 %v429
  %1750 = vmatprep.subr.mxu0 %v426
  %1751 = vmatpush1.msra.mxu0 %v425
  %1752 = vmatprep.subr.mxu0 %v422
  %1753 = vmatpush1.msra.mxu0 %v421
  %1754 = vmatprep.subr.mxu0 %v418
  %1755 = vmatpush1.msra.mxu0 %v417
  %1756 = vmatprep.subr.mxu0 %v414
  %1757 = vmatpush1.msra.mxu0 %v413
  %1758 = vmatprep.subr.mxu0 %v410
  %1759 = vmatpush1.msra.mxu0 %v409
  %1760 = vmatprep.subr.mxu0 %v406
  %1761 = vmatpush1.msra.mxu0 %v405
  %1762 = vmatprep.subr.mxu0 %v402
  %1763 = vmatpush1.msra.mxu0 %v401
  %1764 = vmatprep.subr.mxu0 %v398
  %1765 = vmatpush1.msra.mxu0 %v397
  %1766 = vmatprep.subr.mxu0 %v394
  %1767 = vmatpush1.msra.mxu0 %v393
  %1768 = vmatprep.subr.mxu0 %v390
  %1769 = vmatpush1.msra.mxu0 %v389
  %1770 = vmatprep.subr.mxu0 0.0
  %1771 = vmatpush2.msra.mxu0 0.0
  %1772 = vmatprep.subr.mxu0 0.0
  %1773 = vmatpush2.msra.mxu0 0.0
  %1774 = vmatprep.subr.mxu0 0.0
  %1775 = vmatpush2.msra.mxu0 0.0
  %1776 = vmatprep.subr.mxu0 0.0
  %1777 = vmatpush2.msra.mxu0 0.0
  %1778 = vmatprep.subr.mxu0 0.0
  %1779 = vmatpush2.msra.mxu0 0.0
  %1780 = vmatprep.subr.mxu0 0.0
  %1781 = vmatpush2.msra.mxu0 0.0
  %1782 = vmatprep.subr.mxu0 0.0
  %1783 = vmatpush2.msra.mxu0 0.0
  %1784 = vmatprep.subr.mxu0 0.0
  %1785 = vmatpush2.msra.mxu0 0.0
  %1786 = vmatprep.subr.mxu0 0.0
  %1787 = vmatpush2.msra.mxu0 0.0
  %1788 = vmatprep.subr.mxu0 0.0
  %1789 = vmatpush2.msra.mxu0 0.0
  %1790 = vmatprep.subr.mxu0 0.0
  %1791 = vmatpush2.msra.mxu0 0.0
  %1792 = vmatprep.subr.mxu0 0.0
  %1793 = vmatpush2.msra.mxu0 0.0
  %1794 = vmatprep.subr.mxu0 0.0
  %1795 = vmatpush2.msra.mxu0 0.0
  %1796 = vmatprep.subr.mxu0 0.0
  %1797 = vmatpush2.msra.mxu0 0.0
  %1798 = vmatprep.subr.mxu0 0.0
  %1799 = vmatpush2.msra.mxu0 0.0
  %1800 = vmatprep.subr.mxu0 0.0
  %1801 = vmatpush2.msra.mxu0 0.0
  %1802 = vmatprep.mubr.f32.mxu0 0.0
  %1803 = vmatmul.mubr.f32.gmra.mxu0 %v1659
  %v1804 = vpop.f32.mrf.mxu0
  %v1805 = vadd.f32 %v1665, %v1804
  %v1806 = vpop.f32.mrf.mxu0
  %v1807 = vadd.f32 %v1666, %v1806
  %1808 = vdwg.mxu0
  %v1809 = vxor.u32 %v1734, 2147483648
  %v1810 = vmul.f32 %v1809, 1.442695
  %v1811 = vpow.pop %v1810
  %v1812 = vadd.f32 %v1811, 1.0
  %v1813 = vrcp.pop %v1812
  %v1814 = vmul.f32 1.0, %v1813
  %v1815 = vxor.u32 %v1736, 2147483648
  %v1816 = vmul.f32 %v1815, 1.442695
  %v1817 = vpow.pop %v1816
  %v1818 = vadd.f32 %v1817, 1.0
  %v1819 = vrcp.pop %v1818
  %v1820 = vmul.f32 1.0, %v1819
  %v1821 = vtanh.pop %v1805
  %v1822 = vxor.u32 %v1807, 2147483648
  %v1823 = vmul.f32 %v1822, 1.442695
  %v1824 = vpow.pop %v1823
  %v1825 = vadd.f32 %v1824, 1.0
  %v1826 = vrcp.pop %v1825
  %v1827 = vmul.f32 1.0, %v1826
  %v1828 = vmul.f32 %v1820, %v1657
  %v1829 = vmul.f32 %v1814, %v1821
  %v1830 = vadd.f32 %v1828, %v1829
  %v1831 = vtanh.pop %v1830
  %v1832 = vmul.f32 %v1827, %v1831
  %s1833 = scalar_lea.vmem %s9, 56
  %1834 = vst [vmem:[%s1833] sm:$0xff] %v1832
  %1835 = vst [vmem:[%s10] sm:$0xff] %v1832
  %1836 = vst [vmem:[%s11] sm:$0xff] %v1830
  %v1837 = vld [vmem:[%s9] sm:$0xff]
  %v1838 = vld [vmem:[%s9 + $0x8] sm:$0xff]
  %v1839 = vld [vmem:[%s9 + $0x10] sm:$0xff]
  %v1840 = vld [vmem:[%s9 + $0x18] sm:$0xff]
  %v1841 = vld [vmem:[%s9 + $0x20] sm:$0xff]
  %v1842 = vld [vmem:[%s9 + $0x28] sm:$0xff]
  %v1843 = vld [vmem:[%s9 + $0x30] sm:$0xff]
  %v1844 = vld [vmem:[%s9 + $0x38] sm:$0xff]
  %v1845 = vld [vmem:[%s6] sm:$0xff]
  %v1846 = vld [vmem:[%s6 + $0x8] sm:$0xff]
  %v1847 = vld [vmem:[%s6 + $0x10] sm:$0xff]
  %v1848 = vld [vmem:[%s6 + $0x18] sm:$0xff]
  %v1849 = vld [vmem:[%s6 + $0x20] sm:$0xff]
  %v1850 = vld [vmem:[%s6 + $0x28] sm:$0xff]
  %v1851 = vld [vmem:[%s6 + $0x30] sm:$0xff]
  %v1852 = vld [vmem:[%s6 + $0x38] sm:$0xff]
  %v1853 = vld [vmem:[%s6 + $0x40] sm:$0xff]
  %v1854 = vld [vmem:[%s6 + $0x48] sm:$0xff]
  %v1855 = vld [vmem:[%s6 + $0x50] sm:$0xff]
  %v1856 = vld [vmem:[%s6 + $0x58] sm:$0xff]
  %v1857 = vld [vmem:[%s6 + $0x60] sm:$0xff]
  %v1858 = vld [vmem:[%s6 + $0x68] sm:$0xff]
  %v1859 = vld [vmem:[%s6 + $0x70] sm:$0xff]
  %v1860 = vld [vmem:[%s6 + $0x78] sm:$0xff]
  %v1861 = vld [vmem:[%s6 + $0x80] sm:$0xff]
  %v1862 = vld [vmem:[%s6 + $0x88] sm:$0xff]
  %v1863 = vld [vmem:[%s6 + $0x90] sm:$0xff]
  %v1864 = vld [vmem:[%s6 + $0x98] sm:$0xff]
  %v1865 = vld [vmem:[%s6 + $0xa0] sm:$0xff]
  %v1866 = vld [vmem:[%s6 + $0xa8] sm:$0xff]
  %v1867 = vld [vmem:[%s6 + $0xb0] sm:$0xff]
  %v1868 = vld [vmem:[%s6 + $0xb8] sm:$0xff]
  %v1869 = vld [vmem:[%s6 + $0xc0] sm:$0xff]
  %v1870 = vld [vmem:[%s6 + $0xc8] sm:$0xff]
  %v1871 = vld [vmem:[%s6 + $0xd0] sm:$0xff]
  %v1872 = vld [vmem:[%s6 + $0xd8] sm:$0xff]
  %v1873 = vld [vmem:[%s6 + $0xe0] sm:$0xff]
  %v1874 = vld [vmem:[%s6 + $0xe8] sm:$0xff]
  %v1875 = vld [vmem:[%s6 + $0xf0] sm:$0xff]
  %v1876 = vld [vmem:[%s6 + $0xf8] sm:$0xff]
  %v1877 = vld [vmem:[%s6 + $0x100] sm:$0xff]
  %v1878 = vld [vmem:[%s6 + $0x108] sm:$0xff]
  %v1879 = vld [vmem:[%s6 + $0x110] sm:$0xff]
  %v1880 = vld [vmem:[%s6 + $0x118] sm:$0xff]
  %v1881 = vld [vmem:[%s6 + $0x120] sm:$0xff]
  %v1882 = vld [vmem:[%s6 + $0x128] sm:$0xff]
  %v1883 = vld [vmem:[%s6 + $0x130] sm:$0xff]
  %v1884 = vld [vmem:[%s6 + $0x138] sm:$0xff]
  %v1885 = vld [vmem:[%s6 + $0x140] sm:$0xff]
  %v1886 = vld [vmem:[%s6 + $0x148] sm:$0xff]
  %v1887 = vld [vmem:[%s6 + $0x150] sm:$0xff]
  %v1888 = vld [vmem:[%s6 + $0x158] sm:$0xff]
  %v1889 = vld [vmem:[%s6 + $0x160] sm:$0xff]
  %v1890 = vld [vmem:[%s6 + $0x168] sm:$0xff]
  %v1891 = vld [vmem:[%s6 + $0x170] sm:$0xff]
  %v1892 = vld [vmem:[%s6 + $0x178] sm:$0xff]
  %v1893 = vld [vmem:[%s6 + $0x180] sm:$0xff]
  %v1894 = vld [vmem:[%s6 + $0x188] sm:$0xff]
  %v1895 = vld [vmem:[%s6 + $0x190] sm:$0xff]
  %v1896 = vld [vmem:[%s6 + $0x198] sm:$0xff]
  %v1897 = vld [vmem:[%s6 + $0x1a0] sm:$0xff]
  %v1898 = vld [vmem:[%s6 + $0x1a8] sm:$0xff]
  %v1899 = vld [vmem:[%s6 + $0x1b0] sm:$0xff]
  %v1900 = vld [vmem:[%s6 + $0x1b8] sm:$0xff]
  %v1901 = vld [vmem:[%s6 + $0x1c0] sm:$0xff]
  %v1902 = vld [vmem:[%s6 + $0x1c8] sm:$0xff]
  %v1903 = vld [vmem:[%s6 + $0x1d0] sm:$0xff]
  %v1904 = vld [vmem:[%s6 + $0x1d8] sm:$0xff]
  %v1905 = vld [vmem:[%s6 + $0x1e0] sm:$0xff]
  %v1906 = vld [vmem:[%s6 + $0x1e8] sm:$0xff]
  %v1907 = vld [vmem:[%s6 + $0x1f0] sm:$0xff]
  %v1908 = vld [vmem:[%s6 + $0x1f8] sm:$0xff]
  %v1909 = vld [vmem:[%s8] sm:$0xf]
  %v1911 = vlaneseq
  %v1912 = vshrl.u32 %v1911, 7
  %v1913 = vsub.s32 0, %v1912
  %v1914 = vrot.slane %v1909, %v1913
  %v1915 = vlaneseq
  %v1916 = vshrl.u32 %v1915, 7
  %v1917 = vsub.s32 1, %v1916
  %v1918 = vrot.slane %v1909, %v1917
  %v1919 = vlaneseq
  %v1920 = vshrl.u32 %v1919, 7
  %v1921 = vsub.s32 2, %v1920
  %v1922 = vrot.slane %v1909, %v1921
  %v1923 = vlaneseq
  %v1924 = vshrl.u32 %v1923, 7
  %v1925 = vsub.s32 3, %v1924
  %v1926 = vrot.slane %v1909, %v1925
  %1931 = vmatprep.subr.mxu0 %v1906
  %1932 = vmatpush1.msra.mxu0 %v1905
  %1933 = vmatprep.subr.mxu0 %v1902
  %1934 = vmatpush1.msra.mxu0 %v1901
  %1935 = vmatprep.subr.mxu0 %v1898
  %1936 = vmatpush1.msra.mxu0 %v1897
  %1937 = vmatprep.subr.mxu0 %v1894
  %1938 = vmatpush1.msra.mxu0 %v1893
  %1939 = vmatprep.subr.mxu0 %v1890
  %1940 = vmatpush1.msra.mxu0 %v1889
  %1941 = vmatprep.subr.mxu0 %v1886
  %1942 = vmatpush1.msra.mxu0 %v1885
  %1943 = vmatprep.subr.mxu0 %v1882
  %1944 = vmatpush1.msra.mxu0 %v1881
  %1945 = vmatprep.subr.mxu0 %v1878
  %1946 = vmatpush1.msra.mxu0 %v1877
  %1947 = vmatprep.subr.mxu0 %v1874
  %1948 = vmatpush1.msra.mxu0 %v1873
  %1949 = vmatprep.subr.mxu0 %v1870
  %1950 = vmatpush1.msra.mxu0 %v1869
  %1951 = vmatprep.subr.mxu0 %v1866
  %1952 = vmatpush1.msra.mxu0 %v1865
  %1953 = vmatprep.subr.mxu0 %v1862
  %1954 = vmatpush1.msra.mxu0 %v1861
  %1955 = vmatprep.subr.mxu0 %v1858
  %1956 = vmatpush1.msra.mxu0 %v1857
  %1957 = vmatprep.subr.mxu0 %v1854
  %1958 = vmatpush1.msra.mxu0 %v1853
  %1959 = vmatprep.subr.mxu0 %v1850
  %1960 = vmatpush1.msra.mxu0 %v1849
  %1961 = vmatprep.subr.mxu0 %v1846
  %1962 = vmatpush1.msra.mxu0 %v1845
  %1963 = vmatprep.subr.mxu0 0.0
  %1964 = vmatpush2.msra.mxu0 0.0
  %1965 = vmatprep.subr.mxu0 0.0
  %1966 = vmatpush2.msra.mxu0 0.0
  %1967 = vmatprep.subr.mxu0 0.0
  %1968 = vmatpush2.msra.mxu0 0.0
  %1969 = vmatprep.subr.mxu0 0.0
  %1970 = vmatpush2.msra.mxu0 0.0
  %1971 = vmatprep.subr.mxu0 0.0
  %1972 = vmatpush2.msra.mxu0 0.0
  %1973 = vmatprep.subr.mxu0 0.0
  %1974 = vmatpush2.msra.mxu0 0.0
  %1975 = vmatprep.subr.mxu0 0.0
  %1976 = vmatpush2.msra.mxu0 0.0
  %1977 = vmatprep.subr.mxu0 0.0
  %1978 = vmatpush2.msra.mxu0 0.0
  %1979 = vmatprep.subr.mxu0 0.0
  %1980 = vmatpush2.msra.mxu0 0.0
  %1981 = vmatprep.subr.mxu0 0.0
  %1982 = vmatpush2.msra.mxu0 0.0
  %1983 = vmatprep.subr.mxu0 0.0
  %1984 = vmatpush2.msra.mxu0 0.0
  %1985 = vmatprep.subr.mxu0 0.0
  %1986 = vmatpush2.msra.mxu0 0.0
  %1987 = vmatprep.subr.mxu0 0.0
  %1988 = vmatpush2.msra.mxu0 0.0
  %1989 = vmatprep.subr.mxu0 0.0
  %1990 = vmatpush2.msra.mxu0 0.0
  %1991 = vmatprep.subr.mxu0 0.0
  %1992 = vmatpush2.msra.mxu0 0.0
  %1993 = vmatprep.subr.mxu0 0.0
  %1994 = vmatpush2.msra.mxu0 0.0
  %1995 = vmatprep.mubr.f32.mxu0 0.0
  %1996 = vmatmul.mubr.f32.gmra.mxu0 %v1837
  %v1997 = vpop.f32.mrf.mxu0
  %v1998 = vadd.f32 %v1914, %v1997
  %v1999 = vpop.f32.mrf.mxu0
  %v2000 = vadd.f32 %v1918, %v1999
  %2001 = vmatprep.mubr.f32.mxu0 0.0
  %2002 = vmatmul.mubr.f32.gmra.mxu0 %v1838
  %v2003 = vpop.f32.mrf.mxu0
  %v2004 = vadd.f32 %v1914, %v2003
  %v2005 = vpop.f32.mrf.mxu0
  %v2006 = vadd.f32 %v1918, %v2005
  %2007 = vmatprep.mubr.f32.mxu0 0.0
  %2008 = vmatmul.mubr.f32.gmra.mxu0 %v1839
  %v2009 = vpop.f32.mrf.mxu0
  %v2010 = vadd.f32 %v1914, %v2009
  %v2011 = vpop.f32.mrf.mxu0
  %v2012 = vadd.f32 %v1918, %v2011
  %2013 = vmatprep.mubr.f32.mxu0 0.0
  %2014 = vmatmul.mubr.f32.gmra.mxu0 %v1840
  %v2015 = vpop.f32.mrf.mxu0
  %v2016 = vadd.f32 %v1914, %v2015
  %v2017 = vpop.f32.mrf.mxu0
  %v2018 = vadd.f32 %v1918, %v2017
  %2019 = vmatprep.mubr.f32.mxu0 0.0
  %2020 = vmatmul.mubr.f32.gmra.mxu0 %v1841
  %v2021 = vpop.f32.mrf.mxu0
  %v2022 = vadd.f32 %v1914, %v2021
  %v2023 = vpop.f32.mrf.mxu0
  %v2024 = vadd.f32 %v1918, %v2023
  %2025 = vmatprep.mubr.f32.mxu0 0.0
  %2026 = vmatmul.mubr.f32.gmra.mxu0 %v1842
  %v2027 = vpop.f32.mrf.mxu0
  %v2028 = vadd.f32 %v1914, %v2027
  %v2029 = vpop.f32.mrf.mxu0
  %v2030 = vadd.f32 %v1918, %v2029
  %2031 = vmatprep.mubr.f32.mxu0 0.0
  %2032 = vmatmul.mubr.f32.gmra.mxu0 %v1843
  %v2033 = vpop.f32.mrf.mxu0
  %v2034 = vadd.f32 %v1914, %v2033
  %v2035 = vpop.f32.mrf.mxu0
  %v2036 = vadd.f32 %v1918, %v2035
  %2037 = vmatprep.mubr.f32.mxu0 0.0
  %2038 = vmatmul.mubr.f32.gmra.mxu0 %v1844
  %v2039 = vpop.f32.mrf.mxu0
  %v2040 = vadd.f32 %v1914, %v2039
  %v2041 = vpop.f32.mrf.mxu0
  %v2042 = vadd.f32 %v1918, %v2041
  %2043 = vdwg.mxu0
  %2044 = vmatprep.subr.mxu0 %v1908
  %2045 = vmatpush1.msra.mxu0 %v1907
  %2046 = vmatprep.subr.mxu0 %v1904
  %2047 = vmatpush1.msra.mxu0 %v1903
  %2048 = vmatprep.subr.mxu0 %v1900
  %2049 = vmatpush1.msra.mxu0 %v1899
  %2050 = vmatprep.subr.mxu0 %v1896
  %2051 = vmatpush1.msra.mxu0 %v1895
  %2052 = vmatprep.subr.mxu0 %v1892
  %2053 = vmatpush1.msra.mxu0 %v1891
  %2054 = vmatprep.subr.mxu0 %v1888
  %2055 = vmatpush1.msra.mxu0 %v1887
  %2056 = vmatprep.subr.mxu0 %v1884
  %2057 = vmatpush1.msra.mxu0 %v1883
  %2058 = vmatprep.subr.mxu0 %v1880
  %2059 = vmatpush1.msra.mxu0 %v1879
  %2060 = vmatprep.subr.mxu0 %v1876
  %2061 = vmatpush1.msra.mxu0 %v1875
  %2062 = vmatprep.subr.mxu0 %v1872
  %2063 = vmatpush1.msra.mxu0 %v1871
  %2064 = vmatprep.subr.mxu0 %v1868
  %2065 = vmatpush1.msra.mxu0 %v1867
  %2066 = vmatprep.subr.mxu0 %v1864
  %2067 = vmatpush1.msra.mxu0 %v1863
  %2068 = vmatprep.subr.mxu0 %v1860
  %2069 = vmatpush1.msra.mxu0 %v1859
  %2070 = vmatprep.subr.mxu0 %v1856
  %2071 = vmatpush1.msra.mxu0 %v1855
  %2072 = vmatprep.subr.mxu0 %v1852
  %2073 = vmatpush1.msra.mxu0 %v1851
  %2074 = vmatprep.subr.mxu0 %v1848
  %2075 = vmatpush1.msra.mxu0 %v1847
  %2076 = vmatprep.subr.mxu0 0.0
  %2077 = vmatpush2.msra.mxu0 0.0
  %2078 = vmatprep.subr.mxu0 0.0
  %2079 = vmatpush2.msra.mxu0 0.0
  %2080 = vmatprep.subr.mxu0 0.0
  %2081 = vmatpush2.msra.mxu0 0.0
  %2082 = vmatprep.subr.mxu0 0.0
  %2083 = vmatpush2.msra.mxu0 0.0
  %2084 = vmatprep.subr.mxu0 0.0
  %2085 = vmatpush2.msra.mxu0 0.0
  %2086 = vmatprep.subr.mxu0 0.0
  %2087 = vmatpush2.msra.mxu0 0.0
  %2088 = vmatprep.subr.mxu0 0.0
  %2089 = vmatpush2.msra.mxu0 0.0
  %2090 = vmatprep.subr.mxu0 0.0
  %2091 = vmatpush2.msra.mxu0 0.0
  %2092 = vmatprep.subr.mxu0 0.0
  %2093 = vmatpush2.msra.mxu0 0.0
  %2094 = vmatprep.subr.mxu0 0.0
  %2095 = vmatpush2.msra.mxu0 0.0
  %2096 = vmatprep.subr.mxu0 0.0
  %2097 = vmatpush2.msra.mxu0 0.0
  %2098 = vmatprep.subr.mxu0 0.0
  %2099 = vmatpush2.msra.mxu0 0.0
  %2100 = vmatprep.subr.mxu0 0.0
  %2101 = vmatpush2.msra.mxu0 0.0
  %2102 = vmatprep.subr.mxu0 0.0
  %2103 = vmatpush2.msra.mxu0 0.0
  %2104 = vmatprep.subr.mxu0 0.0
  %2105 = vmatpush2.msra.mxu0 0.0
  %2106 = vmatprep.subr.mxu0 0.0
  %2107 = vmatpush2.msra.mxu0 0.0
  %2108 = vmatprep.mubr.f32.mxu0 0.0
  %2109 = vmatmul.mubr.f32.gmra.mxu0 %v1837
  %v2110 = vpop.f32.mrf.mxu0
  %v2111 = vadd.f32 %v1922, %v2110
  %v2112 = vpop.f32.mrf.mxu0
  %v2113 = vadd.f32 %v1926, %v2112
  %2114 = vmatprep.mubr.f32.mxu0 0.0
  %2115 = vmatmul.mubr.f32.gmra.mxu0 %v1838
  %v2116 = vpop.f32.mrf.mxu0
  %v2117 = vadd.f32 %v1922, %v2116
  %v2118 = vpop.f32.mrf.mxu0
  %v2119 = vadd.f32 %v1926, %v2118
  %2120 = vmatprep.mubr.f32.mxu0 0.0
  %2121 = vmatmul.mubr.f32.gmra.mxu0 %v1839
  %v2122 = vpop.f32.mrf.mxu0
  %v2123 = vadd.f32 %v1922, %v2122
  %v2124 = vpop.f32.mrf.mxu0
  %v2125 = vadd.f32 %v1926, %v2124
  %2126 = vmatprep.mubr.f32.mxu0 0.0
  %2127 = vmatmul.mubr.f32.gmra.mxu0 %v1840
  %v2128 = vpop.f32.mrf.mxu0
  %v2129 = vadd.f32 %v1922, %v2128
  %v2130 = vpop.f32.mrf.mxu0
  %v2131 = vadd.f32 %v1926, %v2130
  %2132 = vmatprep.mubr.f32.mxu0 0.0
  %2133 = vmatmul.mubr.f32.gmra.mxu0 %v1841
  %v2134 = vpop.f32.mrf.mxu0
  %v2135 = vadd.f32 %v1922, %v2134
  %v2136 = vpop.f32.mrf.mxu0
  %v2137 = vadd.f32 %v1926, %v2136
  %2138 = vmatprep.mubr.f32.mxu0 0.0
  %2139 = vmatmul.mubr.f32.gmra.mxu0 %v1842
  %v2140 = vpop.f32.mrf.mxu0
  %v2141 = vadd.f32 %v1922, %v2140
  %v2142 = vpop.f32.mrf.mxu0
  %v2143 = vadd.f32 %v1926, %v2142
  %2144 = vmatprep.mubr.f32.mxu0 0.0
  %2145 = vmatmul.mubr.f32.gmra.mxu0 %v1843
  %v2146 = vpop.f32.mrf.mxu0
  %v2147 = vadd.f32 %v1922, %v2146
  %v2148 = vpop.f32.mrf.mxu0
  %v2149 = vadd.f32 %v1926, %v2148
  %2150 = vmatprep.mubr.f32.mxu0 0.0
  %2151 = vmatmul.mubr.f32.gmra.mxu0 %v1844
  %v2152 = vpop.f32.mrf.mxu0
  %v2153 = vadd.f32 %v1922, %v2152
  %v2154 = vpop.f32.mrf.mxu0
  %v2155 = vadd.f32 %v1926, %v2154
  %2156 = vdwg.mxu0
  %2157 = vst [vmem:[#allocation2] sm:$0xff] %v1998
  %2158 = vst [vmem:[#allocation2 + $0x8] sm:$0xff] %v2000
  %2159 = vst [vmem:[#allocation2 + $0x10] sm:$0xff] %v2111
  %2160 = vst [vmem:[#allocation2 + $0x18] sm:$0xff] %v2113
  %2161 = vst [vmem:[#allocation2 + $0x20] sm:$0xff] %v2004
  %2162 = vst [vmem:[#allocation2 + $0x28] sm:$0xff] %v2006
  %2163 = vst [vmem:[#allocation2 + $0x30] sm:$0xff] %v2117
  %2164 = vst [vmem:[#allocation2 + $0x38] sm:$0xff] %v2119
  %2165 = vst [vmem:[#allocation2 + $0x40] sm:$0xff] %v2010
  %2166 = vst [vmem:[#allocation2 + $0x48] sm:$0xff] %v2012
  %2167 = vst [vmem:[#allocation2 + $0x50] sm:$0xff] %v2123
  %2168 = vst [vmem:[#allocation2 + $0x58] sm:$0xff] %v2125
  %2169 = vst [vmem:[#allocation2 + $0x60] sm:$0xff] %v2016
  %2170 = vst [vmem:[#allocation2 + $0x68] sm:$0xff] %v2018
  %2171 = vst [vmem:[#allocation2 + $0x70] sm:$0xff] %v2129
  %2172 = vst [vmem:[#allocation2 + $0x78] sm:$0xff] %v2131
  %2173 = vst [vmem:[#allocation2 + $0x80] sm:$0xff] %v2022
  %2174 = vst [vmem:[#allocation2 + $0x88] sm:$0xff] %v2024
  %2175 = vst [vmem:[#allocation2 + $0x90] sm:$0xff] %v2135
  %2176 = vst [vmem:[#allocation2 + $0x98] sm:$0xff] %v2137
  %2177 = vst [vmem:[#allocation2 + $0xa0] sm:$0xff] %v2028
  %2178 = vst [vmem:[#allocation2 + $0xa8] sm:$0xff] %v2030
  %2179 = vst [vmem:[#allocation2 + $0xb0] sm:$0xff] %v2141
  %2180 = vst [vmem:[#allocation2 + $0xb8] sm:$0xff] %v2143
  %2181 = vst [vmem:[#allocation2 + $0xc0] sm:$0xff] %v2034
  %2182 = vst [vmem:[#allocation2 + $0xc8] sm:$0xff] %v2036
  %2183 = vst [vmem:[#allocation2 + $0xd0] sm:$0xff] %v2147
  %2184 = vst [vmem:[#allocation2 + $0xd8] sm:$0xff] %v2149
  %2185 = vst [vmem:[#allocation2 + $0xe0] sm:$0xff] %v2040
  %2186 = vst [vmem:[#allocation2 + $0xe8] sm:$0xff] %v2042
  %2187 = vst [vmem:[#allocation2 + $0xf0] sm:$0xff] %v2153
  %2188 = vst [vmem:[#allocation2 + $0xf8] sm:$0xff] %v2155
  %v2189 = vld [vmem:[%s7] sm:$0xff]
  %v2190 = vld [vmem:[%s7 + $0x8] sm:$0xff]
  %v2191 = vld [vmem:[%s7 + $0x10] sm:$0xff]
  %v2192 = vld [vmem:[%s7 + $0x18] sm:$0xff]
  %v2193 = vld [vmem:[%s7 + $0x20] sm:$0xff]
  %v2194 = vld [vmem:[%s7 + $0x28] sm:$0xff]
  %v2195 = vld [vmem:[%s7 + $0x30] sm:$0xff]
  %v2196 = vld [vmem:[%s7 + $0x38] sm:$0xff]
  %v2197 = vld [vmem:[%s7 + $0x40] sm:$0xff]
  %v2198 = vld [vmem:[%s7 + $0x48] sm:$0xff]
  %v2199 = vld [vmem:[%s7 + $0x50] sm:$0xff]
  %v2200 = vld [vmem:[%s7 + $0x58] sm:$0xff]
  %v2201 = vld [vmem:[%s7 + $0x60] sm:$0xff]
  %v2202 = vld [vmem:[%s7 + $0x68] sm:$0xff]
  %v2203 = vld [vmem:[%s7 + $0x70] sm:$0xff]
  %v2204 = vld [vmem:[%s7 + $0x78] sm:$0xff]
  %v2205 = vld [vmem:[%s7 + $0x80] sm:$0xff]
  %v2206 = vld [vmem:[%s7 + $0x88] sm:$0xff]
  %v2207 = vld [vmem:[%s7 + $0x90] sm:$0xff]
  %v2208 = vld [vmem:[%s7 + $0x98] sm:$0xff]
  %v2209 = vld [vmem:[%s7 + $0xa0] sm:$0xff]
  %v2210 = vld [vmem:[%s7 + $0xa8] sm:$0xff]
  %v2211 = vld [vmem:[%s7 + $0xb0] sm:$0xff]
  %v2212 = vld [vmem:[%s7 + $0xb8] sm:$0xff]
  %v2213 = vld [vmem:[%s7 + $0xc0] sm:$0xff]
  %v2214 = vld [vmem:[%s7 + $0xc8] sm:$0xff]
  %v2215 = vld [vmem:[%s7 + $0xd0] sm:$0xff]
  %v2216 = vld [vmem:[%s7 + $0xd8] sm:$0xff]
  %v2217 = vld [vmem:[%s7 + $0xe0] sm:$0xff]
  %v2218 = vld [vmem:[%s7 + $0xe8] sm:$0xff]
  %v2219 = vld [vmem:[%s7 + $0xf0] sm:$0xff]
  %v2220 = vld [vmem:[%s7 + $0xf8] sm:$0xff]
  %v2221 = vld [vmem:[%s7 + $0x100] sm:$0xff]
  %v2222 = vld [vmem:[%s7 + $0x108] sm:$0xff]
  %v2223 = vld [vmem:[%s7 + $0x110] sm:$0xff]
  %v2224 = vld [vmem:[%s7 + $0x118] sm:$0xff]
  %v2225 = vld [vmem:[%s7 + $0x120] sm:$0xff]
  %v2226 = vld [vmem:[%s7 + $0x128] sm:$0xff]
  %v2227 = vld [vmem:[%s7 + $0x130] sm:$0xff]
  %v2228 = vld [vmem:[%s7 + $0x138] sm:$0xff]
  %v2229 = vld [vmem:[%s7 + $0x140] sm:$0xff]
  %v2230 = vld [vmem:[%s7 + $0x148] sm:$0xff]
  %v2231 = vld [vmem:[%s7 + $0x150] sm:$0xff]
  %v2232 = vld [vmem:[%s7 + $0x158] sm:$0xff]
  %v2233 = vld [vmem:[%s7 + $0x160] sm:$0xff]
  %v2234 = vld [vmem:[%s7 + $0x168] sm:$0xff]
  %v2235 = vld [vmem:[%s7 + $0x170] sm:$0xff]
  %v2236 = vld [vmem:[%s7 + $0x178] sm:$0xff]
  %v2237 = vld [vmem:[%s7 + $0x180] sm:$0xff]
  %v2238 = vld [vmem:[%s7 + $0x188] sm:$0xff]
  %v2239 = vld [vmem:[%s7 + $0x190] sm:$0xff]
  %v2240 = vld [vmem:[%s7 + $0x198] sm:$0xff]
  %v2241 = vld [vmem:[%s7 + $0x1a0] sm:$0xff]
  %v2242 = vld [vmem:[%s7 + $0x1a8] sm:$0xff]
  %v2243 = vld [vmem:[%s7 + $0x1b0] sm:$0xff]
  %v2244 = vld [vmem:[%s7 + $0x1b8] sm:$0xff]
  %v2245 = vld [vmem:[%s7 + $0x1c0] sm:$0xff]
  %v2246 = vld [vmem:[%s7 + $0x1c8] sm:$0xff]
  %v2247 = vld [vmem:[%s7 + $0x1d0] sm:$0xff]
  %v2248 = vld [vmem:[%s7 + $0x1d8] sm:$0xff]
  %v2249 = vld [vmem:[%s7 + $0x1e0] sm:$0xff]
  %v2250 = vld [vmem:[%s7 + $0x1e8] sm:$0xff]
  %v2251 = vld [vmem:[%s7 + $0x1f0] sm:$0xff]
  %v2252 = vld [vmem:[%s7 + $0x1f8] sm:$0xff]
  %s2253 = scalar_lea.vmem %s1, 8
  %v2254 = vld [vmem:[%s2253] sm:$0xff]
  %s2255 = scalar_lea.vmem %s2, 8
  %v2256 = vld [vmem:[%s2255] sm:$0xff]
  %v2257 = vld [vmem:[#allocation2] sm:$0xff]
  %v2258 = vld [vmem:[#allocation2 + $0x8] sm:$0xff]
  %v2259 = vld [vmem:[#allocation2 + $0x10] sm:$0xff]
  %v2260 = vld [vmem:[#allocation2 + $0x18] sm:$0xff]
  %2261 = vmatprep.subr.mxu0 %v2250
  %2262 = vmatpush1.msra.mxu0 %v2249
  %2263 = vmatprep.subr.mxu0 %v2246
  %2264 = vmatpush1.msra.mxu0 %v2245
  %2265 = vmatprep.subr.mxu0 %v2242
  %2266 = vmatpush1.msra.mxu0 %v2241
  %2267 = vmatprep.subr.mxu0 %v2238
  %2268 = vmatpush1.msra.mxu0 %v2237
  %2269 = vmatprep.subr.mxu0 %v2234
  %2270 = vmatpush1.msra.mxu0 %v2233
  %2271 = vmatprep.subr.mxu0 %v2230
  %2272 = vmatpush1.msra.mxu0 %v2229
  %2273 = vmatprep.subr.mxu0 %v2226
  %2274 = vmatpush1.msra.mxu0 %v2225
  %2275 = vmatprep.subr.mxu0 %v2222
  %2276 = vmatpush1.msra.mxu0 %v2221
  %2277 = vmatprep.subr.mxu0 %v2218
  %2278 = vmatpush1.msra.mxu0 %v2217
  %2279 = vmatprep.subr.mxu0 %v2214
  %2280 = vmatpush1.msra.mxu0 %v2213
  %2281 = vmatprep.subr.mxu0 %v2210
  %2282 = vmatpush1.msra.mxu0 %v2209
  %2283 = vmatprep.subr.mxu0 %v2206
  %2284 = vmatpush1.msra.mxu0 %v2205
  %2285 = vmatprep.subr.mxu0 %v2202
  %2286 = vmatpush1.msra.mxu0 %v2201
  %2287 = vmatprep.subr.mxu0 %v2198
  %2288 = vmatpush1.msra.mxu0 %v2197
  %2289 = vmatprep.subr.mxu0 %v2194
  %2290 = vmatpush1.msra.mxu0 %v2193
  %2291 = vmatprep.subr.mxu0 %v2190
  %2292 = vmatpush1.msra.mxu0 %v2189
  %2293 = vmatprep.subr.mxu0 0.0
  %2294 = vmatpush2.msra.mxu0 0.0
  %2295 = vmatprep.subr.mxu0 0.0
  %2296 = vmatpush2.msra.mxu0 0.0
  %2297 = vmatprep.subr.mxu0 0.0
  %2298 = vmatpush2.msra.mxu0 0.0
  %2299 = vmatprep.subr.mxu0 0.0
  %2300 = vmatpush2.msra.mxu0 0.0
  %2301 = vmatprep.subr.mxu0 0.0
  %2302 = vmatpush2.msra.mxu0 0.0
  %2303 = vmatprep.subr.mxu0 0.0
  %2304 = vmatpush2.msra.mxu0 0.0
  %2305 = vmatprep.subr.mxu0 0.0
  %2306 = vmatpush2.msra.mxu0 0.0
  %2307 = vmatprep.subr.mxu0 0.0
  %2308 = vmatpush2.msra.mxu0 0.0
  %2309 = vmatprep.subr.mxu0 0.0
  %2310 = vmatpush2.msra.mxu0 0.0
  %2311 = vmatprep.subr.mxu0 0.0
  %2312 = vmatpush2.msra.mxu0 0.0
  %2313 = vmatprep.subr.mxu0 0.0
  %2314 = vmatpush2.msra.mxu0 0.0
  %2315 = vmatprep.subr.mxu0 0.0
  %2316 = vmatpush2.msra.mxu0 0.0
  %2317 = vmatprep.subr.mxu0 0.0
  %2318 = vmatpush2.msra.mxu0 0.0
  %2319 = vmatprep.subr.mxu0 0.0
  %2320 = vmatpush2.msra.mxu0 0.0
  %2321 = vmatprep.subr.mxu0 0.0
  %2322 = vmatpush2.msra.mxu0 0.0
  %2323 = vmatprep.subr.mxu0 0.0
  %2324 = vmatpush2.msra.mxu0 0.0
  %2325 = vmatprep.mubr.f32.mxu0 0.0
  %2326 = vmatmul.mubr.f32.gmra.mxu0 %v2254
  %v2327 = vpop.f32.mrf.mxu0
  %v2328 = vadd.f32 %v2257, %v2327
  %v2329 = vpop.f32.mrf.mxu0
  %v2330 = vadd.f32 %v2258, %v2329
  %2331 = vdwg.mxu0
  %2332 = vmatprep.subr.mxu0 %v2252
  %2333 = vmatpush1.msra.mxu0 %v2251
  %2334 = vmatprep.subr.mxu0 %v2248
  %2335 = vmatpush1.msra.mxu0 %v2247
  %2336 = vmatprep.subr.mxu0 %v2244
  %2337 = vmatpush1.msra.mxu0 %v2243
  %2338 = vmatprep.subr.mxu0 %v2240
  %2339 = vmatpush1.msra.mxu0 %v2239
  %2340 = vmatprep.subr.mxu0 %v2236
  %2341 = vmatpush1.msra.mxu0 %v2235
  %2342 = vmatprep.subr.mxu0 %v2232
  %2343 = vmatpush1.msra.mxu0 %v2231
  %2344 = vmatprep.subr.mxu0 %v2228
  %2345 = vmatpush1.msra.mxu0 %v2227
  %2346 = vmatprep.subr.mxu0 %v2224
  %2347 = vmatpush1.msra.mxu0 %v2223
  %2348 = vmatprep.subr.mxu0 %v2220
  %2349 = vmatpush1.msra.mxu0 %v2219
  %2350 = vmatprep.subr.mxu0 %v2216
  %2351 = vmatpush1.msra.mxu0 %v2215
  %2352 = vmatprep.subr.mxu0 %v2212
  %2353 = vmatpush1.msra.mxu0 %v2211
  %2354 = vmatprep.subr.mxu0 %v2208
  %2355 = vmatpush1.msra.mxu0 %v2207
  %2356 = vmatprep.subr.mxu0 %v2204
  %2357 = vmatpush1.msra.mxu0 %v2203
  %2358 = vmatprep.subr.mxu0 %v2200
  %2359 = vmatpush1.msra.mxu0 %v2199
  %2360 = vmatprep.subr.mxu0 %v2196
  %2361 = vmatpush1.msra.mxu0 %v2195
  %2362 = vmatprep.subr.mxu0 %v2192
  %2363 = vmatpush1.msra.mxu0 %v2191
  %2364 = vmatprep.subr.mxu0 0.0
  %2365 = vmatpush2.msra.mxu0 0.0
  %2366 = vmatprep.subr.mxu0 0.0
  %2367 = vmatpush2.msra.mxu0 0.0
  %2368 = vmatprep.subr.mxu0 0.0
  %2369 = vmatpush2.msra.mxu0 0.0
  %2370 = vmatprep.subr.mxu0 0.0
  %2371 = vmatpush2.msra.mxu0 0.0
  %2372 = vmatprep.subr.mxu0 0.0
  %2373 = vmatpush2.msra.mxu0 0.0
  %2374 = vmatprep.subr.mxu0 0.0
  %2375 = vmatpush2.msra.mxu0 0.0
  %2376 = vmatprep.subr.mxu0 0.0
  %2377 = vmatpush2.msra.mxu0 0.0
  %2378 = vmatprep.subr.mxu0 0.0
  %2379 = vmatpush2.msra.mxu0 0.0
  %2380 = vmatprep.subr.mxu0 0.0
  %2381 = vmatpush2.msra.mxu0 0.0
  %2382 = vmatprep.subr.mxu0 0.0
  %2383 = vmatpush2.msra.mxu0 0.0
  %2384 = vmatprep.subr.mxu0 0.0
  %2385 = vmatpush2.msra.mxu0 0.0
  %2386 = vmatprep.subr.mxu0 0.0
  %2387 = vmatpush2.msra.mxu0 0.0
  %2388 = vmatprep.subr.mxu0 0.0
  %2389 = vmatpush2.msra.mxu0 0.0
  %2390 = vmatprep.subr.mxu0 0.0
  %2391 = vmatpush2.msra.mxu0 0.0
  %2392 = vmatprep.subr.mxu0 0.0
  %2393 = vmatpush2.msra.mxu0 0.0
  %2394 = vmatprep.subr.mxu0 0.0
  %2395 = vmatpush2.msra.mxu0 0.0
  %2396 = vmatprep.mubr.f32.mxu0 0.0
  %2397 = vmatmul.mubr.f32.gmra.mxu0 %v2254
  %v2398 = vpop.f32.mrf.mxu0
  %v2399 = vadd.f32 %v2259, %v2398
  %v2400 = vpop.f32.mrf.mxu0
  %v2401 = vadd.f32 %v2260, %v2400
  %2402 = vdwg.mxu0
  %v2403 = vxor.u32 %v2328, 2147483648
  %v2404 = vmul.f32 %v2403, 1.442695
  %v2405 = vpow.pop %v2404
  %v2406 = vadd.f32 %v2405, 1.0
  %v2407 = vrcp.pop %v2406
  %v2408 = vmul.f32 1.0, %v2407
  %v2409 = vxor.u32 %v2330, 2147483648
  %v2410 = vmul.f32 %v2409, 1.442695
  %v2411 = vpow.pop %v2410
  %v2412 = vadd.f32 %v2411, 1.0
  %v2413 = vrcp.pop %v2412
  %v2414 = vmul.f32 1.0, %v2413
  %v2415 = vtanh.pop %v2399
  %v2416 = vxor.u32 %v2401, 2147483648
  %v2417 = vmul.f32 %v2416, 1.442695
  %v2418 = vpow.pop %v2417
  %v2419 = vadd.f32 %v2418, 1.0
  %v2420 = vrcp.pop %v2419
  %v2421 = vmul.f32 1.0, %v2420
  %v2422 = vmul.f32 %v2414, %v2256
  %v2423 = vmul.f32 %v2408, %v2415
  %v2424 = vadd.f32 %v2422, %v2423
  %v2425 = vtanh.pop %v2424
  %v2426 = vmul.f32 %v2421, %v2425
  %2427 = vst [vmem:[%s9] sm:$0xff] %v2426
  %v2428 = vld [vmem:[%s624] sm:$0xff]
  %v2429 = vld [vmem:[%s624 + $0x8] sm:$0xff]
  %v2430 = vld [vmem:[%s624 + $0x10] sm:$0xff]
  %v2431 = vld [vmem:[%s624 + $0x18] sm:$0xff]
  %2432 = vmatprep.subr.mxu0 %v2250
  %2433 = vmatpush1.msra.mxu0 %v2249
  %2434 = vmatprep.subr.mxu0 %v2246
  %2435 = vmatpush1.msra.mxu0 %v2245
  %2436 = vmatprep.subr.mxu0 %v2242
  %2437 = vmatpush1.msra.mxu0 %v2241
  %2438 = vmatprep.subr.mxu0 %v2238
  %2439 = vmatpush1.msra.mxu0 %v2237
  %2440 = vmatprep.subr.mxu0 %v2234
  %2441 = vmatpush1.msra.mxu0 %v2233
  %2442 = vmatprep.subr.mxu0 %v2230
  %2443 = vmatpush1.msra.mxu0 %v2229
  %2444 = vmatprep.subr.mxu0 %v2226
  %2445 = vmatpush1.msra.mxu0 %v2225
  %2446 = vmatprep.subr.mxu0 %v2222
  %2447 = vmatpush1.msra.mxu0 %v2221
  %2448 = vmatprep.subr.mxu0 %v2218
  %2449 = vmatpush1.msra.mxu0 %v2217
  %2450 = vmatprep.subr.mxu0 %v2214
  %2451 = vmatpush1.msra.mxu0 %v2213
  %2452 = vmatprep.subr.mxu0 %v2210
  %2453 = vmatpush1.msra.mxu0 %v2209
  %2454 = vmatprep.subr.mxu0 %v2206
  %2455 = vmatpush1.msra.mxu0 %v2205
  %2456 = vmatprep.subr.mxu0 %v2202
  %2457 = vmatpush1.msra.mxu0 %v2201
  %2458 = vmatprep.subr.mxu0 %v2198
  %2459 = vmatpush1.msra.mxu0 %v2197
  %2460 = vmatprep.subr.mxu0 %v2194
  %2461 = vmatpush1.msra.mxu0 %v2193
  %2462 = vmatprep.subr.mxu0 %v2190
  %2463 = vmatpush1.msra.mxu0 %v2189
  %2464 = vmatprep.subr.mxu0 0.0
  %2465 = vmatpush2.msra.mxu0 0.0
  %2466 = vmatprep.subr.mxu0 0.0
  %2467 = vmatpush2.msra.mxu0 0.0
  %2468 = vmatprep.subr.mxu0 0.0
  %2469 = vmatpush2.msra.mxu0 0.0
  %2470 = vmatprep.subr.mxu0 0.0
  %2471 = vmatpush2.msra.mxu0 0.0
  %2472 = vmatprep.subr.mxu0 0.0
  %2473 = vmatpush2.msra.mxu0 0.0
  %2474 = vmatprep.subr.mxu0 0.0
  %2475 = vmatpush2.msra.mxu0 0.0
  %2476 = vmatprep.subr.mxu0 0.0
  %2477 = vmatpush2.msra.mxu0 0.0
  %2478 = vmatprep.subr.mxu0 0.0
  %2479 = vmatpush2.msra.mxu0 0.0
  %2480 = vmatprep.subr.mxu0 0.0
  %2481 = vmatpush2.msra.mxu0 0.0
  %2482 = vmatprep.subr.mxu0 0.0
  %2483 = vmatpush2.msra.mxu0 0.0
  %2484 = vmatprep.subr.mxu0 0.0
  %2485 = vmatpush2.msra.mxu0 0.0
  %2486 = vmatprep.subr.mxu0 0.0
  %2487 = vmatpush2.msra.mxu0 0.0
  %2488 = vmatprep.subr.mxu0 0.0
  %2489 = vmatpush2.msra.mxu0 0.0
  %2490 = vmatprep.subr.mxu0 0.0
  %2491 = vmatpush2.msra.mxu0 0.0
  %2492 = vmatprep.subr.mxu0 0.0
  %2493 = vmatpush2.msra.mxu0 0.0
  %2494 = vmatprep.subr.mxu0 0.0
  %2495 = vmatpush2.msra.mxu0 0.0
  %2496 = vmatprep.mubr.f32.mxu0 0.0
  %2497 = vmatmul.mubr.f32.gmra.mxu0 %v2426
  %v2498 = vpop.f32.mrf.mxu0
  %v2499 = vadd.f32 %v2428, %v2498
  %v2500 = vpop.f32.mrf.mxu0
  %v2501 = vadd.f32 %v2429, %v2500
  %2502 = vdwg.mxu0
  %2503 = vmatprep.subr.mxu0 %v2252
  %2504 = vmatpush1.msra.mxu0 %v2251
  %2505 = vmatprep.subr.mxu0 %v2248
  %2506 = vmatpush1.msra.mxu0 %v2247
  %2507 = vmatprep.subr.mxu0 %v2244
  %2508 = vmatpush1.msra.mxu0 %v2243
  %2509 = vmatprep.subr.mxu0 %v2240
  %2510 = vmatpush1.msra.mxu0 %v2239
  %2511 = vmatprep.subr.mxu0 %v2236
  %2512 = vmatpush1.msra.mxu0 %v2235
  %2513 = vmatprep.subr.mxu0 %v2232
  %2514 = vmatpush1.msra.mxu0 %v2231
  %2515 = vmatprep.subr.mxu0 %v2228
  %2516 = vmatpush1.msra.mxu0 %v2227
  %2517 = vmatprep.subr.mxu0 %v2224
  %2518 = vmatpush1.msra.mxu0 %v2223
  %2519 = vmatprep.subr.mxu0 %v2220
  %2520 = vmatpush1.msra.mxu0 %v2219
  %2521 = vmatprep.subr.mxu0 %v2216
  %2522 = vmatpush1.msra.mxu0 %v2215
  %2523 = vmatprep.subr.mxu0 %v2212
  %2524 = vmatpush1.msra.mxu0 %v2211
  %2525 = vmatprep.subr.mxu0 %v2208
  %2526 = vmatpush1.msra.mxu0 %v2207
  %2527 = vmatprep.subr.mxu0 %v2204
  %2528 = vmatpush1.msra.mxu0 %v2203
  %2529 = vmatprep.subr.mxu0 %v2200
  %2530 = vmatpush1.msra.mxu0 %v2199
  %2531 = vmatprep.subr.mxu0 %v2196
  %2532 = vmatpush1.msra.mxu0 %v2195
  %2533 = vmatprep.subr.mxu0 %v2192
  %2534 = vmatpush1.msra.mxu0 %v2191
  %2535 = vmatprep.subr.mxu0 0.0
  %2536 = vmatpush2.msra.mxu0 0.0
  %2537 = vmatprep.subr.mxu0 0.0
  %2538 = vmatpush2.msra.mxu0 0.0
  %2539 = vmatprep.subr.mxu0 0.0
  %2540 = vmatpush2.msra.mxu0 0.0
  %2541 = vmatprep.subr.mxu0 0.0
  %2542 = vmatpush2.msra.mxu0 0.0
  %2543 = vmatprep.subr.mxu0 0.0
  %2544 = vmatpush2.msra.mxu0 0.0
  %2545 = vmatprep.subr.mxu0 0.0
  %2546 = vmatpush2.msra.mxu0 0.0
  %2547 = vmatprep.subr.mxu0 0.0
  %2548 = vmatpush2.msra.mxu0 0.0
  %2549 = vmatprep.subr.mxu0 0.0
  %2550 = vmatpush2.msra.mxu0 0.0
  %2551 = vmatprep.subr.mxu0 0.0
  %2552 = vmatpush2.msra.mxu0 0.0
  %2553 = vmatprep.subr.mxu0 0.0
  %2554 = vmatpush2.msra.mxu0 0.0
  %2555 = vmatprep.subr.mxu0 0.0
  %2556 = vmatpush2.msra.mxu0 0.0
  %2557 = vmatprep.subr.mxu0 0.0
  %2558 = vmatpush2.msra.mxu0 0.0
  %2559 = vmatprep.subr.mxu0 0.0
  %2560 = vmatpush2.msra.mxu0 0.0
  %2561 = vmatprep.subr.mxu0 0.0
  %2562 = vmatpush2.msra.mxu0 0.0
  %2563 = vmatprep.subr.mxu0 0.0
  %2564 = vmatpush2.msra.mxu0 0.0
  %2565 = vmatprep.subr.mxu0 0.0
  %2566 = vmatpush2.msra.mxu0 0.0
  %2567 = vmatprep.mubr.f32.mxu0 0.0
  %2568 = vmatmul.mubr.f32.gmra.mxu0 %v2426
  %v2569 = vpop.f32.mrf.mxu0
  %v2570 = vadd.f32 %v2430, %v2569
  %v2571 = vpop.f32.mrf.mxu0
  %v2572 = vadd.f32 %v2431, %v2571
  %2573 = vdwg.mxu0
  %v2574 = vxor.u32 %v2499, 2147483648
  %v2575 = vmul.f32 %v2574, 1.442695
  %v2576 = vpow.pop %v2575
  %v2577 = vadd.f32 %v2576, 1.0
  %v2578 = vrcp.pop %v2577
  %v2579 = vmul.f32 1.0, %v2578
  %v2580 = vxor.u32 %v2501, 2147483648
  %v2581 = vmul.f32 %v2580, 1.442695
  %v2582 = vpow.pop %v2581
  %v2583 = vadd.f32 %v2582, 1.0
  %v2584 = vrcp.pop %v2583
  %v2585 = vmul.f32 1.0, %v2584
  %v2586 = vtanh.pop %v2570
  %v2587 = vxor.u32 %v2572, 2147483648
  %v2588 = vmul.f32 %v2587, 1.442695
  %v2589 = vpow.pop %v2588
  %v2590 = vadd.f32 %v2589, 1.0
  %v2591 = vrcp.pop %v2590
  %v2592 = vmul.f32 1.0, %v2591
  %v2593 = vmul.f32 %v2585, %v2424
  %v2594 = vmul.f32 %v2579, %v2586
  %v2595 = vadd.f32 %v2593, %v2594
  %v2596 = vtanh.pop %v2595
  %v2597 = vmul.f32 %v2592, %v2596
  %2598 = vst [vmem:[%s795] sm:$0xff] %v2597
  %v2599 = vld [vmem:[%s797] sm:$0xff]
  %v2600 = vld [vmem:[%s797 + $0x8] sm:$0xff]
  %v2601 = vld [vmem:[%s797 + $0x10] sm:$0xff]
  %v2602 = vld [vmem:[%s797 + $0x18] sm:$0xff]
  %2603 = vmatprep.subr.mxu0 %v2250
  %2604 = vmatpush1.msra.mxu0 %v2249
  %2605 = vmatprep.subr.mxu0 %v2246
  %2606 = vmatpush1.msra.mxu0 %v2245
  %2607 = vmatprep.subr.mxu0 %v2242
  %2608 = vmatpush1.msra.mxu0 %v2241
  %2609 = vmatprep.subr.mxu0 %v2238
  %2610 = vmatpush1.msra.mxu0 %v2237
  %2611 = vmatprep.subr.mxu0 %v2234
  %2612 = vmatpush1.msra.mxu0 %v2233
  %2613 = vmatprep.subr.mxu0 %v2230
  %2614 = vmatpush1.msra.mxu0 %v2229
  %2615 = vmatprep.subr.mxu0 %v2226
  %2616 = vmatpush1.msra.mxu0 %v2225
  %2617 = vmatprep.subr.mxu0 %v2222
  %2618 = vmatpush1.msra.mxu0 %v2221
  %2619 = vmatprep.subr.mxu0 %v2218
  %2620 = vmatpush1.msra.mxu0 %v2217
  %2621 = vmatprep.subr.mxu0 %v2214
  %2622 = vmatpush1.msra.mxu0 %v2213
  %2623 = vmatprep.subr.mxu0 %v2210
  %2624 = vmatpush1.msra.mxu0 %v2209
  %2625 = vmatprep.subr.mxu0 %v2206
  %2626 = vmatpush1.msra.mxu0 %v2205
  %2627 = vmatprep.subr.mxu0 %v2202
  %2628 = vmatpush1.msra.mxu0 %v2201
  %2629 = vmatprep.subr.mxu0 %v2198
  %2630 = vmatpush1.msra.mxu0 %v2197
  %2631 = vmatprep.subr.mxu0 %v2194
  %2632 = vmatpush1.msra.mxu0 %v2193
  %2633 = vmatprep.subr.mxu0 %v2190
  %2634 = vmatpush1.msra.mxu0 %v2189
  %2635 = vmatprep.subr.mxu0 0.0
  %2636 = vmatpush2.msra.mxu0 0.0
  %2637 = vmatprep.subr.mxu0 0.0
  %2638 = vmatpush2.msra.mxu0 0.0
  %2639 = vmatprep.subr.mxu0 0.0
  %2640 = vmatpush2.msra.mxu0 0.0
  %2641 = vmatprep.subr.mxu0 0.0
  %2642 = vmatpush2.msra.mxu0 0.0
  %2643 = vmatprep.subr.mxu0 0.0
  %2644 = vmatpush2.msra.mxu0 0.0
  %2645 = vmatprep.subr.mxu0 0.0
  %2646 = vmatpush2.msra.mxu0 0.0
  %2647 = vmatprep.subr.mxu0 0.0
  %2648 = vmatpush2.msra.mxu0 0.0
  %2649 = vmatprep.subr.mxu0 0.0
  %2650 = vmatpush2.msra.mxu0 0.0
  %2651 = vmatprep.subr.mxu0 0.0
  %2652 = vmatpush2.msra.mxu0 0.0
  %2653 = vmatprep.subr.mxu0 0.0
  %2654 = vmatpush2.msra.mxu0 0.0
  %2655 = vmatprep.subr.mxu0 0.0
  %2656 = vmatpush2.msra.mxu0 0.0
  %2657 = vmatprep.subr.mxu0 0.0
  %2658 = vmatpush2.msra.mxu0 0.0
  %2659 = vmatprep.subr.mxu0 0.0
  %2660 = vmatpush2.msra.mxu0 0.0
  %2661 = vmatprep.subr.mxu0 0.0
  %2662 = vmatpush2.msra.mxu0 0.0
  %2663 = vmatprep.subr.mxu0 0.0
  %2664 = vmatpush2.msra.mxu0 0.0
  %2665 = vmatprep.subr.mxu0 0.0
  %2666 = vmatpush2.msra.mxu0 0.0
  %2667 = vmatprep.mubr.f32.mxu0 0.0
  %2668 = vmatmul.mubr.f32.gmra.mxu0 %v2597
  %v2669 = vpop.f32.mrf.mxu0
  %v2670 = vadd.f32 %v2599, %v2669
  %v2671 = vpop.f32.mrf.mxu0
  %v2672 = vadd.f32 %v2600, %v2671
  %2673 = vdwg.mxu0
  %2674 = vmatprep.subr.mxu0 %v2252
  %2675 = vmatpush1.msra.mxu0 %v2251
  %2676 = vmatprep.subr.mxu0 %v2248
  %2677 = vmatpush1.msra.mxu0 %v2247
  %2678 = vmatprep.subr.mxu0 %v2244
  %2679 = vmatpush1.msra.mxu0 %v2243
  %2680 = vmatprep.subr.mxu0 %v2240
  %2681 = vmatpush1.msra.mxu0 %v2239
  %2682 = vmatprep.subr.mxu0 %v2236
  %2683 = vmatpush1.msra.mxu0 %v2235
  %2684 = vmatprep.subr.mxu0 %v2232
  %2685 = vmatpush1.msra.mxu0 %v2231
  %2686 = vmatprep.subr.mxu0 %v2228
  %2687 = vmatpush1.msra.mxu0 %v2227
  %2688 = vmatprep.subr.mxu0 %v2224
  %2689 = vmatpush1.msra.mxu0 %v2223
  %2690 = vmatprep.subr.mxu0 %v2220
  %2691 = vmatpush1.msra.mxu0 %v2219
  %2692 = vmatprep.subr.mxu0 %v2216
  %2693 = vmatpush1.msra.mxu0 %v2215
  %2694 = vmatprep.subr.mxu0 %v2212
  %2695 = vmatpush1.msra.mxu0 %v2211
  %2696 = vmatprep.subr.mxu0 %v2208
  %2697 = vmatpush1.msra.mxu0 %v2207
  %2698 = vmatprep.subr.mxu0 %v2204
  %2699 = vmatpush1.msra.mxu0 %v2203
  %2700 = vmatprep.subr.mxu0 %v2200
  %2701 = vmatpush1.msra.mxu0 %v2199
  %2702 = vmatprep.subr.mxu0 %v2196
  %2703 = vmatpush1.msra.mxu0 %v2195
  %2704 = vmatprep.subr.mxu0 %v2192
  %2705 = vmatpush1.msra.mxu0 %v2191
  %2706 = vmatprep.subr.mxu0 0.0
  %2707 = vmatpush2.msra.mxu0 0.0
  %2708 = vmatprep.subr.mxu0 0.0
  %2709 = vmatpush2.msra.mxu0 0.0
  %2710 = vmatprep.subr.mxu0 0.0
  %2711 = vmatpush2.msra.mxu0 0.0
  %2712 = vmatprep.subr.mxu0 0.0
  %2713 = vmatpush2.msra.mxu0 0.0
  %2714 = vmatprep.subr.mxu0 0.0
  %2715 = vmatpush2.msra.mxu0 0.0
  %2716 = vmatprep.subr.mxu0 0.0
  %2717 = vmatpush2.msra.mxu0 0.0
  %2718 = vmatprep.subr.mxu0 0.0
  %2719 = vmatpush2.msra.mxu0 0.0
  %2720 = vmatprep.subr.mxu0 0.0
  %2721 = vmatpush2.msra.mxu0 0.0
  %2722 = vmatprep.subr.mxu0 0.0
  %2723 = vmatpush2.msra.mxu0 0.0
  %2724 = vmatprep.subr.mxu0 0.0
  %2725 = vmatpush2.msra.mxu0 0.0
  %2726 = vmatprep.subr.mxu0 0.0
  %2727 = vmatpush2.msra.mxu0 0.0
  %2728 = vmatprep.subr.mxu0 0.0
  %2729 = vmatpush2.msra.mxu0 0.0
  %2730 = vmatprep.subr.mxu0 0.0
  %2731 = vmatpush2.msra.mxu0 0.0
  %2732 = vmatprep.subr.mxu0 0.0
  %2733 = vmatpush2.msra.mxu0 0.0
  %2734 = vmatprep.subr.mxu0 0.0
  %2735 = vmatpush2.msra.mxu0 0.0
  %2736 = vmatprep.subr.mxu0 0.0
  %2737 = vmatpush2.msra.mxu0 0.0
  %2738 = vmatprep.mubr.f32.mxu0 0.0
  %2739 = vmatmul.mubr.f32.gmra.mxu0 %v2597
  %v2740 = vpop.f32.mrf.mxu0
  %v2741 = vadd.f32 %v2601, %v2740
  %v2742 = vpop.f32.mrf.mxu0
  %v2743 = vadd.f32 %v2602, %v2742
  %2744 = vdwg.mxu0
  %v2745 = vxor.u32 %v2670, 2147483648
  %v2746 = vmul.f32 %v2745, 1.442695
  %v2747 = vpow.pop %v2746
  %v2748 = vadd.f32 %v2747, 1.0
  %v2749 = vrcp.pop %v2748
  %v2750 = vmul.f32 1.0, %v2749
  %v2751 = vxor.u32 %v2672, 2147483648
  %v2752 = vmul.f32 %v2751, 1.442695
  %v2753 = vpow.pop %v2752
  %v2754 = vadd.f32 %v2753, 1.0
  %v2755 = vrcp.pop %v2754
  %v2756 = vmul.f32 1.0, %v2755
  %v2757 = vtanh.pop %v2741
  %v2758 = vxor.u32 %v2743, 2147483648
  %v2759 = vmul.f32 %v2758, 1.442695
  %v2760 = vpow.pop %v2759
  %v2761 = vadd.f32 %v2760, 1.0
  %v2762 = vrcp.pop %v2761
  %v2763 = vmul.f32 1.0, %v2762
  %v2764 = vmul.f32 %v2756, %v2595
  %v2765 = vmul.f32 %v2750, %v2757
  %v2766 = vadd.f32 %v2764, %v2765
  %v2767 = vtanh.pop %v2766
  %v2768 = vmul.f32 %v2763, %v2767
  %2769 = vst [vmem:[%s968] sm:$0xff] %v2768
  %v2770 = vld [vmem:[%s970] sm:$0xff]
  %v2771 = vld [vmem:[%s970 + $0x8] sm:$0xff]
  %v2772 = vld [vmem:[%s970 + $0x10] sm:$0xff]
  %v2773 = vld [vmem:[%s970 + $0x18] sm:$0xff]
  %2774 = vmatprep.subr.mxu0 %v2250
  %2775 = vmatpush1.msra.mxu0 %v2249
  %2776 = vmatprep.subr.mxu0 %v2246
  %2777 = vmatpush1.msra.mxu0 %v2245
  %2778 = vmatprep.subr.mxu0 %v2242
  %2779 = vmatpush1.msra.mxu0 %v2241
  %2780 = vmatprep.subr.mxu0 %v2238
  %2781 = vmatpush1.msra.mxu0 %v2237
  %2782 = vmatprep.subr.mxu0 %v2234
  %2783 = vmatpush1.msra.mxu0 %v2233
  %2784 = vmatprep.subr.mxu0 %v2230
  %2785 = vmatpush1.msra.mxu0 %v2229
  %2786 = vmatprep.subr.mxu0 %v2226
  %2787 = vmatpush1.msra.mxu0 %v2225
  %2788 = vmatprep.subr.mxu0 %v2222
  %2789 = vmatpush1.msra.mxu0 %v2221
  %2790 = vmatprep.subr.mxu0 %v2218
  %2791 = vmatpush1.msra.mxu0 %v2217
  %2792 = vmatprep.subr.mxu0 %v2214
  %2793 = vmatpush1.msra.mxu0 %v2213
  %2794 = vmatprep.subr.mxu0 %v2210
  %2795 = vmatpush1.msra.mxu0 %v2209
  %2796 = vmatprep.subr.mxu0 %v2206
  %2797 = vmatpush1.msra.mxu0 %v2205
  %2798 = vmatprep.subr.mxu0 %v2202
  %2799 = vmatpush1.msra.mxu0 %v2201
  %2800 = vmatprep.subr.mxu0 %v2198
  %2801 = vmatpush1.msra.mxu0 %v2197
  %2802 = vmatprep.subr.mxu0 %v2194
  %2803 = vmatpush1.msra.mxu0 %v2193
  %2804 = vmatprep.subr.mxu0 %v2190
  %2805 = vmatpush1.msra.mxu0 %v2189
  %2806 = vmatprep.subr.mxu0 0.0
  %2807 = vmatpush2.msra.mxu0 0.0
  %2808 = vmatprep.subr.mxu0 0.0
  %2809 = vmatpush2.msra.mxu0 0.0
  %2810 = vmatprep.subr.mxu0 0.0
  %2811 = vmatpush2.msra.mxu0 0.0
  %2812 = vmatprep.subr.mxu0 0.0
  %2813 = vmatpush2.msra.mxu0 0.0
  %2814 = vmatprep.subr.mxu0 0.0
  %2815 = vmatpush2.msra.mxu0 0.0
  %2816 = vmatprep.subr.mxu0 0.0
  %2817 = vmatpush2.msra.mxu0 0.0
  %2818 = vmatprep.subr.mxu0 0.0
  %2819 = vmatpush2.msra.mxu0 0.0
  %2820 = vmatprep.subr.mxu0 0.0
  %2821 = vmatpush2.msra.mxu0 0.0
  %2822 = vmatprep.subr.mxu0 0.0
  %2823 = vmatpush2.msra.mxu0 0.0
  %2824 = vmatprep.subr.mxu0 0.0
  %2825 = vmatpush2.msra.mxu0 0.0
  %2826 = vmatprep.subr.mxu0 0.0
  %2827 = vmatpush2.msra.mxu0 0.0
  %2828 = vmatprep.subr.mxu0 0.0
  %2829 = vmatpush2.msra.mxu0 0.0
  %2830 = vmatprep.subr.mxu0 0.0
  %2831 = vmatpush2.msra.mxu0 0.0
  %2832 = vmatprep.subr.mxu0 0.0
  %2833 = vmatpush2.msra.mxu0 0.0
  %2834 = vmatprep.subr.mxu0 0.0
  %2835 = vmatpush2.msra.mxu0 0.0
  %2836 = vmatprep.subr.mxu0 0.0
  %2837 = vmatpush2.msra.mxu0 0.0
  %2838 = vmatprep.mubr.f32.mxu0 0.0
  %2839 = vmatmul.mubr.f32.gmra.mxu0 %v2768
  %v2840 = vpop.f32.mrf.mxu0
  %v2841 = vadd.f32 %v2770, %v2840
  %v2842 = vpop.f32.mrf.mxu0
  %v2843 = vadd.f32 %v2771, %v2842
  %2844 = vdwg.mxu0
  %2845 = vmatprep.subr.mxu0 %v2252
  %2846 = vmatpush1.msra.mxu0 %v2251
  %2847 = vmatprep.subr.mxu0 %v2248
  %2848 = vmatpush1.msra.mxu0 %v2247
  %2849 = vmatprep.subr.mxu0 %v2244
  %2850 = vmatpush1.msra.mxu0 %v2243
  %2851 = vmatprep.subr.mxu0 %v2240
  %2852 = vmatpush1.msra.mxu0 %v2239
  %2853 = vmatprep.subr.mxu0 %v2236
  %2854 = vmatpush1.msra.mxu0 %v2235
  %2855 = vmatprep.subr.mxu0 %v2232
  %2856 = vmatpush1.msra.mxu0 %v2231
  %2857 = vmatprep.subr.mxu0 %v2228
  %2858 = vmatpush1.msra.mxu0 %v2227
  %2859 = vmatprep.subr.mxu0 %v2224
  %2860 = vmatpush1.msra.mxu0 %v2223
  %2861 = vmatprep.subr.mxu0 %v2220
  %2862 = vmatpush1.msra.mxu0 %v2219
  %2863 = vmatprep.subr.mxu0 %v2216
  %2864 = vmatpush1.msra.mxu0 %v2215
  %2865 = vmatprep.subr.mxu0 %v2212
  %2866 = vmatpush1.msra.mxu0 %v2211
  %2867 = vmatprep.subr.mxu0 %v2208
  %2868 = vmatpush1.msra.mxu0 %v2207
  %2869 = vmatprep.subr.mxu0 %v2204
  %2870 = vmatpush1.msra.mxu0 %v2203
  %2871 = vmatprep.subr.mxu0 %v2200
  %2872 = vmatpush1.msra.mxu0 %v2199
  %2873 = vmatprep.subr.mxu0 %v2196
  %2874 = vmatpush1.msra.mxu0 %v2195
  %2875 = vmatprep.subr.mxu0 %v2192
  %2876 = vmatpush1.msra.mxu0 %v2191
  %2877 = vmatprep.subr.mxu0 0.0
  %2878 = vmatpush2.msra.mxu0 0.0
  %2879 = vmatprep.subr.mxu0 0.0
  %2880 = vmatpush2.msra.mxu0 0.0
  %2881 = vmatprep.subr.mxu0 0.0
  %2882 = vmatpush2.msra.mxu0 0.0
  %2883 = vmatprep.subr.mxu0 0.0
  %2884 = vmatpush2.msra.mxu0 0.0
  %2885 = vmatprep.subr.mxu0 0.0
  %2886 = vmatpush2.msra.mxu0 0.0
  %2887 = vmatprep.subr.mxu0 0.0
  %2888 = vmatpush2.msra.mxu0 0.0
  %2889 = vmatprep.subr.mxu0 0.0
  %2890 = vmatpush2.msra.mxu0 0.0
  %2891 = vmatprep.subr.mxu0 0.0
  %2892 = vmatpush2.msra.mxu0 0.0
  %2893 = vmatprep.subr.mxu0 0.0
  %2894 = vmatpush2.msra.mxu0 0.0
  %2895 = vmatprep.subr.mxu0 0.0
  %2896 = vmatpush2.msra.mxu0 0.0
  %2897 = vmatprep.subr.mxu0 0.0
  %2898 = vmatpush2.msra.mxu0 0.0
  %2899 = vmatprep.subr.mxu0 0.0
  %2900 = vmatpush2.msra.mxu0 0.0
  %2901 = vmatprep.subr.mxu0 0.0
  %2902 = vmatpush2.msra.mxu0 0.0
  %2903 = vmatprep.subr.mxu0 0.0
  %2904 = vmatpush2.msra.mxu0 0.0
  %2905 = vmatprep.subr.mxu0 0.0
  %2906 = vmatpush2.msra.mxu0 0.0
  %2907 = vmatprep.subr.mxu0 0.0
  %2908 = vmatpush2.msra.mxu0 0.0
  %2909 = vmatprep.mubr.f32.mxu0 0.0
  %2910 = vmatmul.mubr.f32.gmra.mxu0 %v2768
  %v2911 = vpop.f32.mrf.mxu0
  %v2912 = vadd.f32 %v2772, %v2911
  %v2913 = vpop.f32.mrf.mxu0
  %v2914 = vadd.f32 %v2773, %v2913
  %2915 = vdwg.mxu0
  %v2916 = vxor.u32 %v2841, 2147483648
  %v2917 = vmul.f32 %v2916, 1.442695
  %v2918 = vpow.pop %v2917
  %v2919 = vadd.f32 %v2918, 1.0
  %v2920 = vrcp.pop %v2919
  %v2921 = vmul.f32 1.0, %v2920
  %v2922 = vxor.u32 %v2843, 2147483648
  %v2923 = vmul.f32 %v2922, 1.442695
  %v2924 = vpow.pop %v2923
  %v2925 = vadd.f32 %v2924, 1.0
  %v2926 = vrcp.pop %v2925
  %v2927 = vmul.f32 1.0, %v2926
  %v2928 = vtanh.pop %v2912
  %v2929 = vxor.u32 %v2914, 2147483648
  %v2930 = vmul.f32 %v2929, 1.442695
  %v2931 = vpow.pop %v2930
  %v2932 = vadd.f32 %v2931, 1.0
  %v2933 = vrcp.pop %v2932
  %v2934 = vmul.f32 1.0, %v2933
  %v2935 = vmul.f32 %v2927, %v2766
  %v2936 = vmul.f32 %v2921, %v2928
  %v2937 = vadd.f32 %v2935, %v2936
  %v2938 = vtanh.pop %v2937
  %v2939 = vmul.f32 %v2934, %v2938
  %2940 = vst [vmem:[%s1141] sm:$0xff] %v2939
  %v2941 = vld [vmem:[%s1143] sm:$0xff]
  %v2942 = vld [vmem:[%s1143 + $0x8] sm:$0xff]
  %v2943 = vld [vmem:[%s1143 + $0x10] sm:$0xff]
  %v2944 = vld [vmem:[%s1143 + $0x18] sm:$0xff]
  %2945 = vmatprep.subr.mxu0 %v2250
  %2946 = vmatpush1.msra.mxu0 %v2249
  %2947 = vmatprep.subr.mxu0 %v2246
  %2948 = vmatpush1.msra.mxu0 %v2245
  %2949 = vmatprep.subr.mxu0 %v2242
  %2950 = vmatpush1.msra.mxu0 %v2241
  %2951 = vmatprep.subr.mxu0 %v2238
  %2952 = vmatpush1.msra.mxu0 %v2237
  %2953 = vmatprep.subr.mxu0 %v2234
  %2954 = vmatpush1.msra.mxu0 %v2233
  %2955 = vmatprep.subr.mxu0 %v2230
  %2956 = vmatpush1.msra.mxu0 %v2229
  %2957 = vmatprep.subr.mxu0 %v2226
  %2958 = vmatpush1.msra.mxu0 %v2225
  %2959 = vmatprep.subr.mxu0 %v2222
  %2960 = vmatpush1.msra.mxu0 %v2221
  %2961 = vmatprep.subr.mxu0 %v2218
  %2962 = vmatpush1.msra.mxu0 %v2217
  %2963 = vmatprep.subr.mxu0 %v2214
  %2964 = vmatpush1.msra.mxu0 %v2213
  %2965 = vmatprep.subr.mxu0 %v2210
  %2966 = vmatpush1.msra.mxu0 %v2209
  %2967 = vmatprep.subr.mxu0 %v2206
  %2968 = vmatpush1.msra.mxu0 %v2205
  %2969 = vmatprep.subr.mxu0 %v2202
  %2970 = vmatpush1.msra.mxu0 %v2201
  %2971 = vmatprep.subr.mxu0 %v2198
  %2972 = vmatpush1.msra.mxu0 %v2197
  %2973 = vmatprep.subr.mxu0 %v2194
  %2974 = vmatpush1.msra.mxu0 %v2193
  %2975 = vmatprep.subr.mxu0 %v2190
  %2976 = vmatpush1.msra.mxu0 %v2189
  %2977 = vmatprep.subr.mxu0 0.0
  %2978 = vmatpush2.msra.mxu0 0.0
  %2979 = vmatprep.subr.mxu0 0.0
  %2980 = vmatpush2.msra.mxu0 0.0
  %2981 = vmatprep.subr.mxu0 0.0
  %2982 = vmatpush2.msra.mxu0 0.0
  %2983 = vmatprep.subr.mxu0 0.0
  %2984 = vmatpush2.msra.mxu0 0.0
  %2985 = vmatprep.subr.mxu0 0.0
  %2986 = vmatpush2.msra.mxu0 0.0
  %2987 = vmatprep.subr.mxu0 0.0
  %2988 = vmatpush2.msra.mxu0 0.0
  %2989 = vmatprep.subr.mxu0 0.0
  %2990 = vmatpush2.msra.mxu0 0.0
  %2991 = vmatprep.subr.mxu0 0.0
  %2992 = vmatpush2.msra.mxu0 0.0
  %2993 = vmatprep.subr.mxu0 0.0
  %2994 = vmatpush2.msra.mxu0 0.0
  %2995 = vmatprep.subr.mxu0 0.0
  %2996 = vmatpush2.msra.mxu0 0.0
  %2997 = vmatprep.subr.mxu0 0.0
  %2998 = vmatpush2.msra.mxu0 0.0
  %2999 = vmatprep.subr.mxu0 0.0
  %3000 = vmatpush2.msra.mxu0 0.0
  %3001 = vmatprep.subr.mxu0 0.0
  %3002 = vmatpush2.msra.mxu0 0.0
  %3003 = vmatprep.subr.mxu0 0.0
  %3004 = vmatpush2.msra.mxu0 0.0
  %3005 = vmatprep.subr.mxu0 0.0
  %3006 = vmatpush2.msra.mxu0 0.0
  %3007 = vmatprep.subr.mxu0 0.0
  %3008 = vmatpush2.msra.mxu0 0.0
  %3009 = vmatprep.mubr.f32.mxu0 0.0
  %3010 = vmatmul.mubr.f32.gmra.mxu0 %v2939
  %v3011 = vpop.f32.mrf.mxu0
  %v3012 = vadd.f32 %v2941, %v3011
  %v3013 = vpop.f32.mrf.mxu0
  %v3014 = vadd.f32 %v2942, %v3013
  %3015 = vdwg.mxu0
  %3016 = vmatprep.subr.mxu0 %v2252
  %3017 = vmatpush1.msra.mxu0 %v2251
  %3018 = vmatprep.subr.mxu0 %v2248
  %3019 = vmatpush1.msra.mxu0 %v2247
  %3020 = vmatprep.subr.mxu0 %v2244
  %3021 = vmatpush1.msra.mxu0 %v2243
  %3022 = vmatprep.subr.mxu0 %v2240
  %3023 = vmatpush1.msra.mxu0 %v2239
  %3024 = vmatprep.subr.mxu0 %v2236
  %3025 = vmatpush1.msra.mxu0 %v2235
  %3026 = vmatprep.subr.mxu0 %v2232
  %3027 = vmatpush1.msra.mxu0 %v2231
  %3028 = vmatprep.subr.mxu0 %v2228
  %3029 = vmatpush1.msra.mxu0 %v2227
  %3030 = vmatprep.subr.mxu0 %v2224
  %3031 = vmatpush1.msra.mxu0 %v2223
  %3032 = vmatprep.subr.mxu0 %v2220
  %3033 = vmatpush1.msra.mxu0 %v2219
  %3034 = vmatprep.subr.mxu0 %v2216
  %3035 = vmatpush1.msra.mxu0 %v2215
  %3036 = vmatprep.subr.mxu0 %v2212
  %3037 = vmatpush1.msra.mxu0 %v2211
  %3038 = vmatprep.subr.mxu0 %v2208
  %3039 = vmatpush1.msra.mxu0 %v2207
  %3040 = vmatprep.subr.mxu0 %v2204
  %3041 = vmatpush1.msra.mxu0 %v2203
  %3042 = vmatprep.subr.mxu0 %v2200
  %3043 = vmatpush1.msra.mxu0 %v2199
  %3044 = vmatprep.subr.mxu0 %v2196
  %3045 = vmatpush1.msra.mxu0 %v2195
  %3046 = vmatprep.subr.mxu0 %v2192
  %3047 = vmatpush1.msra.mxu0 %v2191
  %3048 = vmatprep.subr.mxu0 0.0
  %3049 = vmatpush2.msra.mxu0 0.0
  %3050 = vmatprep.subr.mxu0 0.0
  %3051 = vmatpush2.msra.mxu0 0.0
  %3052 = vmatprep.subr.mxu0 0.0
  %3053 = vmatpush2.msra.mxu0 0.0
  %3054 = vmatprep.subr.mxu0 0.0
  %3055 = vmatpush2.msra.mxu0 0.0
  %3056 = vmatprep.subr.mxu0 0.0
  %3057 = vmatpush2.msra.mxu0 0.0
  %3058 = vmatprep.subr.mxu0 0.0
  %3059 = vmatpush2.msra.mxu0 0.0
  %3060 = vmatprep.subr.mxu0 0.0
  %3061 = vmatpush2.msra.mxu0 0.0
  %3062 = vmatprep.subr.mxu0 0.0
  %3063 = vmatpush2.msra.mxu0 0.0
  %3064 = vmatprep.subr.mxu0 0.0
  %3065 = vmatpush2.msra.mxu0 0.0
  %3066 = vmatprep.subr.mxu0 0.0
  %3067 = vmatpush2.msra.mxu0 0.0
  %3068 = vmatprep.subr.mxu0 0.0
  %3069 = vmatpush2.msra.mxu0 0.0
  %3070 = vmatprep.subr.mxu0 0.0
  %3071 = vmatpush2.msra.mxu0 0.0
  %3072 = vmatprep.subr.mxu0 0.0
  %3073 = vmatpush2.msra.mxu0 0.0
  %3074 = vmatprep.subr.mxu0 0.0
  %3075 = vmatpush2.msra.mxu0 0.0
  %3076 = vmatprep.subr.mxu0 0.0
  %3077 = vmatpush2.msra.mxu0 0.0
  %3078 = vmatprep.subr.mxu0 0.0
  %3079 = vmatpush2.msra.mxu0 0.0
  %3080 = vmatprep.mubr.f32.mxu0 0.0
  %3081 = vmatmul.mubr.f32.gmra.mxu0 %v2939
  %v3082 = vpop.f32.mrf.mxu0
  %v3083 = vadd.f32 %v2943, %v3082
  %v3084 = vpop.f32.mrf.mxu0
  %v3085 = vadd.f32 %v2944, %v3084
  %3086 = vdwg.mxu0
  %v3087 = vxor.u32 %v3012, 2147483648
  %v3088 = vmul.f32 %v3087, 1.442695
  %v3089 = vpow.pop %v3088
  %v3090 = vadd.f32 %v3089, 1.0
  %v3091 = vrcp.pop %v3090
  %v3092 = vmul.f32 1.0, %v3091
  %v3093 = vxor.u32 %v3014, 2147483648
  %v3094 = vmul.f32 %v3093, 1.442695
  %v3095 = vpow.pop %v3094
  %v3096 = vadd.f32 %v3095, 1.0
  %v3097 = vrcp.pop %v3096
  %v3098 = vmul.f32 1.0, %v3097
  %v3099 = vtanh.pop %v3083
  %v3100 = vxor.u32 %v3085, 2147483648
  %v3101 = vmul.f32 %v3100, 1.442695
  %v3102 = vpow.pop %v3101
  %v3103 = vadd.f32 %v3102, 1.0
  %v3104 = vrcp.pop %v3103
  %v3105 = vmul.f32 1.0, %v3104
  %v3106 = vmul.f32 %v3098, %v2937
  %v3107 = vmul.f32 %v3092, %v3099
  %v3108 = vadd.f32 %v3106, %v3107
  %v3109 = vtanh.pop %v3108
  %v3110 = vmul.f32 %v3105, %v3109
  %3111 = vst [vmem:[%s1314] sm:$0xff] %v3110
  %v3112 = vld [vmem:[%s1316] sm:$0xff]
  %v3113 = vld [vmem:[%s1316 + $0x8] sm:$0xff]
  %v3114 = vld [vmem:[%s1316 + $0x10] sm:$0xff]
  %v3115 = vld [vmem:[%s1316 + $0x18] sm:$0xff]
  %3116 = vmatprep.subr.mxu0 %v2250
  %3117 = vmatpush1.msra.mxu0 %v2249
  %3118 = vmatprep.subr.mxu0 %v2246
  %3119 = vmatpush1.msra.mxu0 %v2245
  %3120 = vmatprep.subr.mxu0 %v2242
  %3121 = vmatpush1.msra.mxu0 %v2241
  %3122 = vmatprep.subr.mxu0 %v2238
  %3123 = vmatpush1.msra.mxu0 %v2237
  %3124 = vmatprep.subr.mxu0 %v2234
  %3125 = vmatpush1.msra.mxu0 %v2233
  %3126 = vmatprep.subr.mxu0 %v2230
  %3127 = vmatpush1.msra.mxu0 %v2229
  %3128 = vmatprep.subr.mxu0 %v2226
  %3129 = vmatpush1.msra.mxu0 %v2225
  %3130 = vmatprep.subr.mxu0 %v2222
  %3131 = vmatpush1.msra.mxu0 %v2221
  %3132 = vmatprep.subr.mxu0 %v2218
  %3133 = vmatpush1.msra.mxu0 %v2217
  %3134 = vmatprep.subr.mxu0 %v2214
  %3135 = vmatpush1.msra.mxu0 %v2213
  %3136 = vmatprep.subr.mxu0 %v2210
  %3137 = vmatpush1.msra.mxu0 %v2209
  %3138 = vmatprep.subr.mxu0 %v2206
  %3139 = vmatpush1.msra.mxu0 %v2205
  %3140 = vmatprep.subr.mxu0 %v2202
  %3141 = vmatpush1.msra.mxu0 %v2201
  %3142 = vmatprep.subr.mxu0 %v2198
  %3143 = vmatpush1.msra.mxu0 %v2197
  %3144 = vmatprep.subr.mxu0 %v2194
  %3145 = vmatpush1.msra.mxu0 %v2193
  %3146 = vmatprep.subr.mxu0 %v2190
  %3147 = vmatpush1.msra.mxu0 %v2189
  %3148 = vmatprep.subr.mxu0 0.0
  %3149 = vmatpush2.msra.mxu0 0.0
  %3150 = vmatprep.subr.mxu0 0.0
  %3151 = vmatpush2.msra.mxu0 0.0
  %3152 = vmatprep.subr.mxu0 0.0
  %3153 = vmatpush2.msra.mxu0 0.0
  %3154 = vmatprep.subr.mxu0 0.0
  %3155 = vmatpush2.msra.mxu0 0.0
  %3156 = vmatprep.subr.mxu0 0.0
  %3157 = vmatpush2.msra.mxu0 0.0
  %3158 = vmatprep.subr.mxu0 0.0
  %3159 = vmatpush2.msra.mxu0 0.0
  %3160 = vmatprep.subr.mxu0 0.0
  %3161 = vmatpush2.msra.mxu0 0.0
  %3162 = vmatprep.subr.mxu0 0.0
  %3163 = vmatpush2.msra.mxu0 0.0
  %3164 = vmatprep.subr.mxu0 0.0
  %3165 = vmatpush2.msra.mxu0 0.0
  %3166 = vmatprep.subr.mxu0 0.0
  %3167 = vmatpush2.msra.mxu0 0.0
  %3168 = vmatprep.subr.mxu0 0.0
  %3169 = vmatpush2.msra.mxu0 0.0
  %3170 = vmatprep.subr.mxu0 0.0
  %3171 = vmatpush2.msra.mxu0 0.0
  %3172 = vmatprep.subr.mxu0 0.0
  %3173 = vmatpush2.msra.mxu0 0.0
  %3174 = vmatprep.subr.mxu0 0.0
  %3175 = vmatpush2.msra.mxu0 0.0
  %3176 = vmatprep.subr.mxu0 0.0
  %3177 = vmatpush2.msra.mxu0 0.0
  %3178 = vmatprep.subr.mxu0 0.0
  %3179 = vmatpush2.msra.mxu0 0.0
  %3180 = vmatprep.mubr.f32.mxu0 0.0
  %3181 = vmatmul.mubr.f32.gmra.mxu0 %v3110
  %v3182 = vpop.f32.mrf.mxu0
  %v3183 = vadd.f32 %v3112, %v3182
  %v3184 = vpop.f32.mrf.mxu0
  %v3185 = vadd.f32 %v3113, %v3184
  %3186 = vdwg.mxu0
  %3187 = vmatprep.subr.mxu0 %v2252
  %3188 = vmatpush1.msra.mxu0 %v2251
  %3189 = vmatprep.subr.mxu0 %v2248
  %3190 = vmatpush1.msra.mxu0 %v2247
  %3191 = vmatprep.subr.mxu0 %v2244
  %3192 = vmatpush1.msra.mxu0 %v2243
  %3193 = vmatprep.subr.mxu0 %v2240
  %3194 = vmatpush1.msra.mxu0 %v2239
  %3195 = vmatprep.subr.mxu0 %v2236
  %3196 = vmatpush1.msra.mxu0 %v2235
  %3197 = vmatprep.subr.mxu0 %v2232
  %3198 = vmatpush1.msra.mxu0 %v2231
  %3199 = vmatprep.subr.mxu0 %v2228
  %3200 = vmatpush1.msra.mxu0 %v2227
  %3201 = vmatprep.subr.mxu0 %v2224
  %3202 = vmatpush1.msra.mxu0 %v2223
  %3203 = vmatprep.subr.mxu0 %v2220
  %3204 = vmatpush1.msra.mxu0 %v2219
  %3205 = vmatprep.subr.mxu0 %v2216
  %3206 = vmatpush1.msra.mxu0 %v2215
  %3207 = vmatprep.subr.mxu0 %v2212
  %3208 = vmatpush1.msra.mxu0 %v2211
  %3209 = vmatprep.subr.mxu0 %v2208
  %3210 = vmatpush1.msra.mxu0 %v2207
  %3211 = vmatprep.subr.mxu0 %v2204
  %3212 = vmatpush1.msra.mxu0 %v2203
  %3213 = vmatprep.subr.mxu0 %v2200
  %3214 = vmatpush1.msra.mxu0 %v2199
  %3215 = vmatprep.subr.mxu0 %v2196
  %3216 = vmatpush1.msra.mxu0 %v2195
  %3217 = vmatprep.subr.mxu0 %v2192
  %3218 = vmatpush1.msra.mxu0 %v2191
  %3219 = vmatprep.subr.mxu0 0.0
  %3220 = vmatpush2.msra.mxu0 0.0
  %3221 = vmatprep.subr.mxu0 0.0
  %3222 = vmatpush2.msra.mxu0 0.0
  %3223 = vmatprep.subr.mxu0 0.0
  %3224 = vmatpush2.msra.mxu0 0.0
  %3225 = vmatprep.subr.mxu0 0.0
  %3226 = vmatpush2.msra.mxu0 0.0
  %3227 = vmatprep.subr.mxu0 0.0
  %3228 = vmatpush2.msra.mxu0 0.0
  %3229 = vmatprep.subr.mxu0 0.0
  %3230 = vmatpush2.msra.mxu0 0.0
  %3231 = vmatprep.subr.mxu0 0.0
  %3232 = vmatpush2.msra.mxu0 0.0
  %3233 = vmatprep.subr.mxu0 0.0
  %3234 = vmatpush2.msra.mxu0 0.0
  %3235 = vmatprep.subr.mxu0 0.0
  %3236 = vmatpush2.msra.mxu0 0.0
  %3237 = vmatprep.subr.mxu0 0.0
  %3238 = vmatpush2.msra.mxu0 0.0
  %3239 = vmatprep.subr.mxu0 0.0
  %3240 = vmatpush2.msra.mxu0 0.0
  %3241 = vmatprep.subr.mxu0 0.0
  %3242 = vmatpush2.msra.mxu0 0.0
  %3243 = vmatprep.subr.mxu0 0.0
  %3244 = vmatpush2.msra.mxu0 0.0
  %3245 = vmatprep.subr.mxu0 0.0
  %3246 = vmatpush2.msra.mxu0 0.0
  %3247 = vmatprep.subr.mxu0 0.0
  %3248 = vmatpush2.msra.mxu0 0.0
  %3249 = vmatprep.subr.mxu0 0.0
  %3250 = vmatpush2.msra.mxu0 0.0
  %3251 = vmatprep.mubr.f32.mxu0 0.0
  %3252 = vmatmul.mubr.f32.gmra.mxu0 %v3110
  %v3253 = vpop.f32.mrf.mxu0
  %v3254 = vadd.f32 %v3114, %v3253
  %v3255 = vpop.f32.mrf.mxu0
  %v3256 = vadd.f32 %v3115, %v3255
  %3257 = vdwg.mxu0
  %v3258 = vxor.u32 %v3183, 2147483648
  %v3259 = vmul.f32 %v3258, 1.442695
  %v3260 = vpow.pop %v3259
  %v3261 = vadd.f32 %v3260, 1.0
  %v3262 = vrcp.pop %v3261
  %v3263 = vmul.f32 1.0, %v3262
  %v3264 = vxor.u32 %v3185, 2147483648
  %v3265 = vmul.f32 %v3264, 1.442695
  %v3266 = vpow.pop %v3265
  %v3267 = vadd.f32 %v3266, 1.0
  %v3268 = vrcp.pop %v3267
  %v3269 = vmul.f32 1.0, %v3268
  %v3270 = vtanh.pop %v3254
  %v3271 = vxor.u32 %v3256, 2147483648
  %v3272 = vmul.f32 %v3271, 1.442695
  %v3273 = vpow.pop %v3272
  %v3274 = vadd.f32 %v3273, 1.0
  %v3275 = vrcp.pop %v3274
  %v3276 = vmul.f32 1.0, %v3275
  %v3277 = vmul.f32 %v3269, %v3108
  %v3278 = vmul.f32 %v3263, %v3270
  %v3279 = vadd.f32 %v3277, %v3278
  %v3280 = vtanh.pop %v3279
  %v3281 = vmul.f32 %v3276, %v3280
  %3282 = vst [vmem:[%s1487] sm:$0xff] %v3281
  %v3283 = vld [vmem:[%s1489] sm:$0xff]
  %v3284 = vld [vmem:[%s1489 + $0x8] sm:$0xff]
  %v3285 = vld [vmem:[%s1489 + $0x10] sm:$0xff]
  %v3286 = vld [vmem:[%s1489 + $0x18] sm:$0xff]
  %3287 = vmatprep.subr.mxu0 %v2250
  %3288 = vmatpush1.msra.mxu0 %v2249
  %3289 = vmatprep.subr.mxu0 %v2246
  %3290 = vmatpush1.msra.mxu0 %v2245
  %3291 = vmatprep.subr.mxu0 %v2242
  %3292 = vmatpush1.msra.mxu0 %v2241
  %3293 = vmatprep.subr.mxu0 %v2238
  %3294 = vmatpush1.msra.mxu0 %v2237
  %3295 = vmatprep.subr.mxu0 %v2234
  %3296 = vmatpush1.msra.mxu0 %v2233
  %3297 = vmatprep.subr.mxu0 %v2230
  %3298 = vmatpush1.msra.mxu0 %v2229
  %3299 = vmatprep.subr.mxu0 %v2226
  %3300 = vmatpush1.msra.mxu0 %v2225
  %3301 = vmatprep.subr.mxu0 %v2222
  %3302 = vmatpush1.msra.mxu0 %v2221
  %3303 = vmatprep.subr.mxu0 %v2218
  %3304 = vmatpush1.msra.mxu0 %v2217
  %3305 = vmatprep.subr.mxu0 %v2214
  %3306 = vmatpush1.msra.mxu0 %v2213
  %3307 = vmatprep.subr.mxu0 %v2210
  %3308 = vmatpush1.msra.mxu0 %v2209
  %3309 = vmatprep.subr.mxu0 %v2206
  %3310 = vmatpush1.msra.mxu0 %v2205
  %3311 = vmatprep.subr.mxu0 %v2202
  %3312 = vmatpush1.msra.mxu0 %v2201
  %3313 = vmatprep.subr.mxu0 %v2198
  %3314 = vmatpush1.msra.mxu0 %v2197
  %3315 = vmatprep.subr.mxu0 %v2194
  %3316 = vmatpush1.msra.mxu0 %v2193
  %3317 = vmatprep.subr.mxu0 %v2190
  %3318 = vmatpush1.msra.mxu0 %v2189
  %3319 = vmatprep.subr.mxu0 0.0
  %3320 = vmatpush2.msra.mxu0 0.0
  %3321 = vmatprep.subr.mxu0 0.0
  %3322 = vmatpush2.msra.mxu0 0.0
  %3323 = vmatprep.subr.mxu0 0.0
  %3324 = vmatpush2.msra.mxu0 0.0
  %3325 = vmatprep.subr.mxu0 0.0
  %3326 = vmatpush2.msra.mxu0 0.0
  %3327 = vmatprep.subr.mxu0 0.0
  %3328 = vmatpush2.msra.mxu0 0.0
  %3329 = vmatprep.subr.mxu0 0.0
  %3330 = vmatpush2.msra.mxu0 0.0
  %3331 = vmatprep.subr.mxu0 0.0
  %3332 = vmatpush2.msra.mxu0 0.0
  %3333 = vmatprep.subr.mxu0 0.0
  %3334 = vmatpush2.msra.mxu0 0.0
  %3335 = vmatprep.subr.mxu0 0.0
  %3336 = vmatpush2.msra.mxu0 0.0
  %3337 = vmatprep.subr.mxu0 0.0
  %3338 = vmatpush2.msra.mxu0 0.0
  %3339 = vmatprep.subr.mxu0 0.0
  %3340 = vmatpush2.msra.mxu0 0.0
  %3341 = vmatprep.subr.mxu0 0.0
  %3342 = vmatpush2.msra.mxu0 0.0
  %3343 = vmatprep.subr.mxu0 0.0
  %3344 = vmatpush2.msra.mxu0 0.0
  %3345 = vmatprep.subr.mxu0 0.0
  %3346 = vmatpush2.msra.mxu0 0.0
  %3347 = vmatprep.subr.mxu0 0.0
  %3348 = vmatpush2.msra.mxu0 0.0
  %3349 = vmatprep.subr.mxu0 0.0
  %3350 = vmatpush2.msra.mxu0 0.0
  %3351 = vmatprep.mubr.f32.mxu0 0.0
  %3352 = vmatmul.mubr.f32.gmra.mxu0 %v3281
  %v3353 = vpop.f32.mrf.mxu0
  %v3354 = vadd.f32 %v3283, %v3353
  %v3355 = vpop.f32.mrf.mxu0
  %v3356 = vadd.f32 %v3284, %v3355
  %3357 = vdwg.mxu0
  %3358 = vmatprep.subr.mxu0 %v2252
  %3359 = vmatpush1.msra.mxu0 %v2251
  %3360 = vmatprep.subr.mxu0 %v2248
  %3361 = vmatpush1.msra.mxu0 %v2247
  %3362 = vmatprep.subr.mxu0 %v2244
  %3363 = vmatpush1.msra.mxu0 %v2243
  %3364 = vmatprep.subr.mxu0 %v2240
  %3365 = vmatpush1.msra.mxu0 %v2239
  %3366 = vmatprep.subr.mxu0 %v2236
  %3367 = vmatpush1.msra.mxu0 %v2235
  %3368 = vmatprep.subr.mxu0 %v2232
  %3369 = vmatpush1.msra.mxu0 %v2231
  %3370 = vmatprep.subr.mxu0 %v2228
  %3371 = vmatpush1.msra.mxu0 %v2227
  %3372 = vmatprep.subr.mxu0 %v2224
  %3373 = vmatpush1.msra.mxu0 %v2223
  %3374 = vmatprep.subr.mxu0 %v2220
  %3375 = vmatpush1.msra.mxu0 %v2219
  %3376 = vmatprep.subr.mxu0 %v2216
  %3377 = vmatpush1.msra.mxu0 %v2215
  %3378 = vmatprep.subr.mxu0 %v2212
  %3379 = vmatpush1.msra.mxu0 %v2211
  %3380 = vmatprep.subr.mxu0 %v2208
  %3381 = vmatpush1.msra.mxu0 %v2207
  %3382 = vmatprep.subr.mxu0 %v2204
  %3383 = vmatpush1.msra.mxu0 %v2203
  %3384 = vmatprep.subr.mxu0 %v2200
  %3385 = vmatpush1.msra.mxu0 %v2199
  %3386 = vmatprep.subr.mxu0 %v2196
  %3387 = vmatpush1.msra.mxu0 %v2195
  %3388 = vmatprep.subr.mxu0 %v2192
  %3389 = vmatpush1.msra.mxu0 %v2191
  %3390 = vmatprep.subr.mxu0 0.0
  %3391 = vmatpush2.msra.mxu0 0.0
  %3392 = vmatprep.subr.mxu0 0.0
  %3393 = vmatpush2.msra.mxu0 0.0
  %3394 = vmatprep.subr.mxu0 0.0
  %3395 = vmatpush2.msra.mxu0 0.0
  %3396 = vmatprep.subr.mxu0 0.0
  %3397 = vmatpush2.msra.mxu0 0.0
  %3398 = vmatprep.subr.mxu0 0.0
  %3399 = vmatpush2.msra.mxu0 0.0
  %3400 = vmatprep.subr.mxu0 0.0
  %3401 = vmatpush2.msra.mxu0 0.0
  %3402 = vmatprep.subr.mxu0 0.0
  %3403 = vmatpush2.msra.mxu0 0.0
  %3404 = vmatprep.subr.mxu0 0.0
  %3405 = vmatpush2.msra.mxu0 0.0
  %3406 = vmatprep.subr.mxu0 0.0
  %3407 = vmatpush2.msra.mxu0 0.0
  %3408 = vmatprep.subr.mxu0 0.0
  %3409 = vmatpush2.msra.mxu0 0.0
  %3410 = vmatprep.subr.mxu0 0.0
  %3411 = vmatpush2.msra.mxu0 0.0
  %3412 = vmatprep.subr.mxu0 0.0
  %3413 = vmatpush2.msra.mxu0 0.0
  %3414 = vmatprep.subr.mxu0 0.0
  %3415 = vmatpush2.msra.mxu0 0.0
  %3416 = vmatprep.subr.mxu0 0.0
  %3417 = vmatpush2.msra.mxu0 0.0
  %3418 = vmatprep.subr.mxu0 0.0
  %3419 = vmatpush2.msra.mxu0 0.0
  %3420 = vmatprep.subr.mxu0 0.0
  %3421 = vmatpush2.msra.mxu0 0.0
  %3422 = vmatprep.mubr.f32.mxu0 0.0
  %3423 = vmatmul.mubr.f32.gmra.mxu0 %v3281
  %v3424 = vpop.f32.mrf.mxu0
  %v3425 = vadd.f32 %v3285, %v3424
  %v3426 = vpop.f32.mrf.mxu0
  %v3427 = vadd.f32 %v3286, %v3426
  %3428 = vdwg.mxu0
  %v3429 = vxor.u32 %v3354, 2147483648
  %v3430 = vmul.f32 %v3429, 1.442695
  %v3431 = vpow.pop %v3430
  %v3432 = vadd.f32 %v3431, 1.0
  %v3433 = vrcp.pop %v3432
  %v3434 = vmul.f32 1.0, %v3433
  %v3435 = vxor.u32 %v3356, 2147483648
  %v3436 = vmul.f32 %v3435, 1.442695
  %v3437 = vpow.pop %v3436
  %v3438 = vadd.f32 %v3437, 1.0
  %v3439 = vrcp.pop %v3438
  %v3440 = vmul.f32 1.0, %v3439
  %v3441 = vtanh.pop %v3425
  %v3442 = vxor.u32 %v3427, 2147483648
  %v3443 = vmul.f32 %v3442, 1.442695
  %v3444 = vpow.pop %v3443
  %v3445 = vadd.f32 %v3444, 1.0
  %v3446 = vrcp.pop %v3445
  %v3447 = vmul.f32 1.0, %v3446
  %v3448 = vmul.f32 %v3440, %v3279
  %v3449 = vmul.f32 %v3434, %v3441
  %v3450 = vadd.f32 %v3448, %v3449
  %v3451 = vtanh.pop %v3450
  %v3452 = vmul.f32 %v3447, %v3451
  %3453 = vst [vmem:[%s1660] sm:$0xff] %v3452
  %v3454 = vld [vmem:[%s1662] sm:$0xff]
  %v3455 = vld [vmem:[%s1662 + $0x8] sm:$0xff]
  %v3456 = vld [vmem:[%s1662 + $0x10] sm:$0xff]
  %v3457 = vld [vmem:[%s1662 + $0x18] sm:$0xff]
  %3458 = vmatprep.subr.mxu0 %v2250
  %3459 = vmatpush1.msra.mxu0 %v2249
  %3460 = vmatprep.subr.mxu0 %v2246
  %3461 = vmatpush1.msra.mxu0 %v2245
  %3462 = vmatprep.subr.mxu0 %v2242
  %3463 = vmatpush1.msra.mxu0 %v2241
  %3464 = vmatprep.subr.mxu0 %v2238
  %3465 = vmatpush1.msra.mxu0 %v2237
  %3466 = vmatprep.subr.mxu0 %v2234
  %3467 = vmatpush1.msra.mxu0 %v2233
  %3468 = vmatprep.subr.mxu0 %v2230
  %3469 = vmatpush1.msra.mxu0 %v2229
  %3470 = vmatprep.subr.mxu0 %v2226
  %3471 = vmatpush1.msra.mxu0 %v2225
  %3472 = vmatprep.subr.mxu0 %v2222
  %3473 = vmatpush1.msra.mxu0 %v2221
  %3474 = vmatprep.subr.mxu0 %v2218
  %3475 = vmatpush1.msra.mxu0 %v2217
  %3476 = vmatprep.subr.mxu0 %v2214
  %3477 = vmatpush1.msra.mxu0 %v2213
  %3478 = vmatprep.subr.mxu0 %v2210
  %3479 = vmatpush1.msra.mxu0 %v2209
  %3480 = vmatprep.subr.mxu0 %v2206
  %3481 = vmatpush1.msra.mxu0 %v2205
  %3482 = vmatprep.subr.mxu0 %v2202
  %3483 = vmatpush1.msra.mxu0 %v2201
  %3484 = vmatprep.subr.mxu0 %v2198
  %3485 = vmatpush1.msra.mxu0 %v2197
  %3486 = vmatprep.subr.mxu0 %v2194
  %3487 = vmatpush1.msra.mxu0 %v2193
  %3488 = vmatprep.subr.mxu0 %v2190
  %3489 = vmatpush1.msra.mxu0 %v2189
  %3490 = vmatprep.subr.mxu0 0.0
  %3491 = vmatpush2.msra.mxu0 0.0
  %3492 = vmatprep.subr.mxu0 0.0
  %3493 = vmatpush2.msra.mxu0 0.0
  %3494 = vmatprep.subr.mxu0 0.0
  %3495 = vmatpush2.msra.mxu0 0.0
  %3496 = vmatprep.subr.mxu0 0.0
  %3497 = vmatpush2.msra.mxu0 0.0
  %3498 = vmatprep.subr.mxu0 0.0
  %3499 = vmatpush2.msra.mxu0 0.0
  %3500 = vmatprep.subr.mxu0 0.0
  %3501 = vmatpush2.msra.mxu0 0.0
  %3502 = vmatprep.subr.mxu0 0.0
  %3503 = vmatpush2.msra.mxu0 0.0
  %3504 = vmatprep.subr.mxu0 0.0
  %3505 = vmatpush2.msra.mxu0 0.0
  %3506 = vmatprep.subr.mxu0 0.0
  %3507 = vmatpush2.msra.mxu0 0.0
  %3508 = vmatprep.subr.mxu0 0.0
  %3509 = vmatpush2.msra.mxu0 0.0
  %3510 = vmatprep.subr.mxu0 0.0
  %3511 = vmatpush2.msra.mxu0 0.0
  %3512 = vmatprep.subr.mxu0 0.0
  %3513 = vmatpush2.msra.mxu0 0.0
  %3514 = vmatprep.subr.mxu0 0.0
  %3515 = vmatpush2.msra.mxu0 0.0
  %3516 = vmatprep.subr.mxu0 0.0
  %3517 = vmatpush2.msra.mxu0 0.0
  %3518 = vmatprep.subr.mxu0 0.0
  %3519 = vmatpush2.msra.mxu0 0.0
  %3520 = vmatprep.subr.mxu0 0.0
  %3521 = vmatpush2.msra.mxu0 0.0
  %3522 = vmatprep.mubr.f32.mxu0 0.0
  %3523 = vmatmul.mubr.f32.gmra.mxu0 %v3452
  %v3524 = vpop.f32.mrf.mxu0
  %v3525 = vadd.f32 %v3454, %v3524
  %v3526 = vpop.f32.mrf.mxu0
  %v3527 = vadd.f32 %v3455, %v3526
  %3528 = vdwg.mxu0
  %3529 = vmatprep.subr.mxu0 %v2252
  %3530 = vmatpush1.msra.mxu0 %v2251
  %3531 = vmatprep.subr.mxu0 %v2248
  %3532 = vmatpush1.msra.mxu0 %v2247
  %3533 = vmatprep.subr.mxu0 %v2244
  %3534 = vmatpush1.msra.mxu0 %v2243
  %3535 = vmatprep.subr.mxu0 %v2240
  %3536 = vmatpush1.msra.mxu0 %v2239
  %3537 = vmatprep.subr.mxu0 %v2236
  %3538 = vmatpush1.msra.mxu0 %v2235
  %3539 = vmatprep.subr.mxu0 %v2232
  %3540 = vmatpush1.msra.mxu0 %v2231
  %3541 = vmatprep.subr.mxu0 %v2228
  %3542 = vmatpush1.msra.mxu0 %v2227
  %3543 = vmatprep.subr.mxu0 %v2224
  %3544 = vmatpush1.msra.mxu0 %v2223
  %3545 = vmatprep.subr.mxu0 %v2220
  %3546 = vmatpush1.msra.mxu0 %v2219
  %3547 = vmatprep.subr.mxu0 %v2216
  %3548 = vmatpush1.msra.mxu0 %v2215
  %3549 = vmatprep.subr.mxu0 %v2212
  %3550 = vmatpush1.msra.mxu0 %v2211
  %3551 = vmatprep.subr.mxu0 %v2208
  %3552 = vmatpush1.msra.mxu0 %v2207
  %3553 = vmatprep.subr.mxu0 %v2204
  %3554 = vmatpush1.msra.mxu0 %v2203
  %3555 = vmatprep.subr.mxu0 %v2200
  %3556 = vmatpush1.msra.mxu0 %v2199
  %3557 = vmatprep.subr.mxu0 %v2196
  %3558 = vmatpush1.msra.mxu0 %v2195
  %3559 = vmatprep.subr.mxu0 %v2192
  %3560 = vmatpush1.msra.mxu0 %v2191
  %3561 = vmatprep.subr.mxu0 0.0
  %3562 = vmatpush2.msra.mxu0 0.0
  %3563 = vmatprep.subr.mxu0 0.0
  %3564 = vmatpush2.msra.mxu0 0.0
  %3565 = vmatprep.subr.mxu0 0.0
  %3566 = vmatpush2.msra.mxu0 0.0
  %3567 = vmatprep.subr.mxu0 0.0
  %3568 = vmatpush2.msra.mxu0 0.0
  %3569 = vmatprep.subr.mxu0 0.0
  %3570 = vmatpush2.msra.mxu0 0.0
  %3571 = vmatprep.subr.mxu0 0.0
  %3572 = vmatpush2.msra.mxu0 0.0
  %3573 = vmatprep.subr.mxu0 0.0
  %3574 = vmatpush2.msra.mxu0 0.0
  %3575 = vmatprep.subr.mxu0 0.0
  %3576 = vmatpush2.msra.mxu0 0.0
  %3577 = vmatprep.subr.mxu0 0.0
  %3578 = vmatpush2.msra.mxu0 0.0
  %3579 = vmatprep.subr.mxu0 0.0
  %3580 = vmatpush2.msra.mxu0 0.0
  %3581 = vmatprep.subr.mxu0 0.0
  %3582 = vmatpush2.msra.mxu0 0.0
  %3583 = vmatprep.subr.mxu0 0.0
  %3584 = vmatpush2.msra.mxu0 0.0
  %3585 = vmatprep.subr.mxu0 0.0
  %3586 = vmatpush2.msra.mxu0 0.0
  %3587 = vmatprep.subr.mxu0 0.0
  %3588 = vmatpush2.msra.mxu0 0.0
  %3589 = vmatprep.subr.mxu0 0.0
  %3590 = vmatpush2.msra.mxu0 0.0
  %3591 = vmatprep.subr.mxu0 0.0
  %3592 = vmatpush2.msra.mxu0 0.0
  %3593 = vmatprep.mubr.f32.mxu0 0.0
  %3594 = vmatmul.mubr.f32.gmra.mxu0 %v3452
  %v3595 = vpop.f32.mrf.mxu0
  %v3596 = vadd.f32 %v3456, %v3595
  %v3597 = vpop.f32.mrf.mxu0
  %v3598 = vadd.f32 %v3457, %v3597
  %3599 = vdwg.mxu0
  %v3600 = vxor.u32 %v3525, 2147483648
  %v3601 = vmul.f32 %v3600, 1.442695
  %v3602 = vpow.pop %v3601
  %v3603 = vadd.f32 %v3602, 1.0
  %v3604 = vrcp.pop %v3603
  %v3605 = vmul.f32 1.0, %v3604
  %v3606 = vxor.u32 %v3527, 2147483648
  %v3607 = vmul.f32 %v3606, 1.442695
  %v3608 = vpow.pop %v3607
  %v3609 = vadd.f32 %v3608, 1.0
  %v3610 = vrcp.pop %v3609
  %v3611 = vmul.f32 1.0, %v3610
  %v3612 = vtanh.pop %v3596
  %v3613 = vxor.u32 %v3598, 2147483648
  %v3614 = vmul.f32 %v3613, 1.442695
  %v3615 = vpow.pop %v3614
  %v3616 = vadd.f32 %v3615, 1.0
  %v3617 = vrcp.pop %v3616
  %v3618 = vmul.f32 1.0, %v3617
  %v3619 = vmul.f32 %v3611, %v3450
  %v3620 = vmul.f32 %v3605, %v3612
  %v3621 = vadd.f32 %v3619, %v3620
  %v3622 = vtanh.pop %v3621
  %v3623 = vmul.f32 %v3618, %v3622
  %3624 = vst [vmem:[%s1833] sm:$0xff] %v3623
  %s3625 = scalar_lea.vmem %s10, 8
  %3626 = vst [vmem:[%s3625] sm:$0xff] %v3623
  %s3627 = scalar_lea.vmem %s11, 8
  %3628 = vst [vmem:[%s3627] sm:$0xff] %v3621
  // Predicated region
  $region38: #{encoder_rnn_forward.1} parent=0 // pred_check
    _
  $region39: #{encoder_rnn_forward.1} parent=0 // pred_check_branch
    %3630 = sbr.rel (0) target = $region41
  $region40: #{encoder_rnn_forward.1} parent=0 // pred_region
    _
  $region41: #{encoder_rnn_forward.1} parent=0 // pred_fallthru
    _
  // Predicated region
  $region42: #{encoder_rnn_forward.1} parent=0 // pred_check
    _
  $region43: #{encoder_rnn_forward.1} parent=0 // pred_check_branch
    %3632 = sbr.rel (0) target = $region45
  $region44: #{encoder_rnn_forward.1} parent=0 // pred_region
    _
  $region45: #{encoder_rnn_forward.1} parent=0 // pred_fallthru
    _
  // Predicated region
  $region46: #{encoder_rnn_forward.1} parent=0 // pred_check
    _
  $region47: #{encoder_rnn_forward.1} parent=0 // pred_check_branch
    %3634 = sbr.rel (0) target = $region49
  $region48: #{encoder_rnn_forward.1} parent=0 // pred_region
    _
  $region49: #{encoder_rnn_forward.1} parent=0 // pred_fallthru
    _
  // Predicated region
  $region50: #{encoder_rnn_forward.1} parent=0 // pred_check
    _
  $region51: #{encoder_rnn_forward.1} parent=0 // pred_check_branch
    %3636 = sbr.rel (0) target = $region53
  $region52: #{encoder_rnn_forward.1} parent=0 // pred_region
    _
  $region53: #{encoder_rnn_forward.1} parent=0 // pred_fallthru
    _
  // Predicated region
  $region54: #{encoder_rnn_forward.1} parent=0 // pred_check
    _
  $region55: #{encoder_rnn_forward.1} parent=0 // pred_check_branch
    %3638 = sbr.rel (0) target = $region57
  $region56: #{encoder_rnn_forward.1} parent=0 // pred_region
    _
  $region57: #{encoder_rnn_forward.1} parent=0 // pred_fallthru
    _
  // Predicated region
  $region58: #{encoder_rnn_forward.1} parent=0 // pred_check
    _
  $region59: #{encoder_rnn_forward.1} parent=0 // pred_check_branch
    %3640 = sbr.rel (0) target = $region61
  $region60: #{encoder_rnn_forward.1} parent=0 // pred_region
    _
  $region61: #{encoder_rnn_forward.1} parent=0 // pred_fallthru
    _

</llo_original>
